<compile_context>
chip_gen: v5e
topology: v5e:2x2
jax: 0.10.0
libtpu: 0.0.40
codegen_flags: <defaults>
</compile_context>

<pallas_src>
import functools
import math

import jax
import jax.numpy as jnp
from jax.experimental import pallas as pl
from jax.experimental.pallas import tpu as pltpu

KSIZE = 4
STRIDE = 2
PAD = 1
# TODO(synk): output_padding != 0 for ConvTranspose2d is not handled (it is 0
# in the reference module).


# ---------------------------------------------------------------------------
# In-kernel helpers
# ---------------------------------------------------------------------------
def _mish_f32(x):
    # mish(x) = x * tanh(softplus(x));  tanh(ln(1+e^x)) = (u^2 - 1)/(u^2 + 1)
    # with u = 1 + e^x  -> one EUP exp + one divide instead of exp+log1p+tanh.
    xs = jnp.minimum(x, 20.0)                       # avoid overflow in exp
    u = 1.0 + jnp.exp(xs)
    u2 = u * u
    t = (u2 - 1.0) / (u2 + 1.0)
    return x * jnp.where(x > 20.0, 1.0, t)          # for x>20, tanh(softplus)==1


def _layer(a, r_ref, g_ref, b_ref, transposed, act):
    """One (transposed) conv layer:  act( sum_kh R_kh @ A @ G_kh + bias )."""
    acc = None
    for kh in range(KSIZE):
        r = r_ref[kh]                               # (Hout, Hin)   0/1 selection
        g = g_ref[kh]                               # (Cin*Win, Cout*Wout)
        if transposed:
            # contract in the (small) input spatial domain first
            ag = jnp.dot(a, g, preferred_element_type=jnp.float32)
            term = jnp.dot(r, ag.astype(a.dtype),
                           preferred_element_type=jnp.float32)
        else:
            # R @ A is an exact row selection -> cast back to bf16 is lossless
            ra = jnp.dot(r, a, preferred_element_type=jnp.float32)
            term = jnp.dot(ra.astype(a.dtype), g,
                           preferred_element_type=jnp.float32)
        acc = term if acc is None else acc + term
    acc = acc + b_ref[...]                          # (1, Cout*Wout) f32 broadcast
    if act == "mish":
        return _mish_f32(acc)
    return jax.nn.sigmoid(acc)


def _fused_ae_kernel(*refs, layer_kinds, compute_dtype):
    # refs = [a0] + [r, g, bias] * 6 + [enc_out, dec_out]
    a0_ref = refs[0]
    enc_ref, dec_ref = refs[-2], refs[-1]
    op_refs = refs[1:-2]

    n_layers = len(layer_kinds)
    a = a0_ref[...]                                 # (H0, C0*W0) bf16
    for li in range(n_layers):
        transposed, act = layer_kinds[li]
        r_ref = op_refs[3 * li + 0]
        g_ref = op_refs[3 * li + 1]
        b_ref = op_refs[3 * li + 2]
        out_f32 = _layer(a, r_ref, g_ref, b_ref, transposed, act)
        if li == 2:                                 # bottleneck == `encoded`
            enc_ref[...] = out_f32
        if li == n_layers - 1:                      # final sigmoid == `decoded`
            dec_ref[...] = out_f32
        a = out_f32.astype(compute_dtype)


# ---------------------------------------------------------------------------
# Host-side operand construction (row-tap selection + folded column weights)
# ---------------------------------------------------------------------------
def _row_select(h_in, h_out, transposed, dtype):
    """(KSIZE, h_out, h_in) 0/1 matrices: output row <- input row per H-tap."""
    taps = jnp.arange(KSIZE)[:, None, None]
    oh = jnp.arange(h_out)[None, :, None]
    hi = jnp.arange(h_in)[None, None, :]
    if transposed:
        r = (oh == STRIDE * hi + taps - PAD)
    else:
        r = (hi == STRIDE * oh + taps - PAD)
    return r.astype(dtype)


def _col_weight(w, w_in, w_out, transposed, dtype):
    """(KSIZE, Cin*w_in, Cout*w_out): weights folded with the W-tap selection."""
    taps = jnp.arange(KSIZE)
    wi = jnp.arange(w_in)[:, None]
    wo = jnp.arange(w_out)[None, :]
    if transposed:
        kw = wo - STRIDE * wi + PAD                 # (w_in, w_out)
    else:
        kw = wi - STRIDE * wo + PAD
    onehot = (kw[:, :, None] == taps[None, None, :]).astype(dtype)  # (w_in,w_out,4)
    wc = w.astype(dtype)
    if transposed:                                  # w: (Cin, Cout, kh, kw)
        g = jnp.einsum('wok,cndk->dcwno', onehot, wc)
        cin, cout = w.shape[0], w.shape[1]
    else:                                           # w: (Cout, Cin, kh, kw)
        g = jnp.einsum('wok,ncdk->dcwno', onehot, wc)
        cout, cin = w.shape[0], w.shape[1]
    return g.reshape(KSIZE, cin * w_in, cout * w_out)


# ---------------------------------------------------------------------------
# Forward pass (matches AutoencoderCIFAR10.forward)
# ---------------------------------------------------------------------------
def autoencoder_forward(x, params):
    B, C0, H0, W0 = x.shape
    cdt = jnp.bfloat16

    layer_defs = [
        ("conv",  params["w1"], params["b1"]),
        ("conv",  params["w2"], params["b2"]),
        ("conv",  params["w3"], params["b3"]),
        ("convT", params["w4"], params["b4"]),
        ("convT", params["w5"], params["b5"]),
        ("convT", params["w6"], params["b6"]),
    ]
    n_layers = len(layer_defs)

    # Input:  (B, C, H, W) -> (B, H, C*W)   (one XLA transpose, done once)
    a0 = x.transpose(0, 2, 1, 3).reshape(B, H0, C0 * W0).astype(cdt)

    operands = []
    in_specs = [pl.BlockSpec((None, H0, C0 * W0), lambda b: (b, 0, 0))]
    layer_kinds = []
    enc_dims = None
    dec_dims = None
    h, w = H0, W0
    for li, (kind, wgt, bias) in enumerate(layer_defs):
        transposed = (kind == "convT")
        if transposed:
            cin, cout = wgt.shape[0], wgt.shape[1]
            ho = (h - 1) * STRIDE - 2 * PAD + KSIZE
            wo = (w - 1) * STRIDE - 2 * PAD + KSIZE
        else:
            cout, cin = wgt.shape[0], wgt.shape[1]
            ho = (h + 2 * PAD - KSIZE) // STRIDE + 1
            wo = (w + 2 * PAD - KSIZE) // STRIDE + 1

        r = _row_select(h, ho, transposed, cdt)                 # (4, ho, h)
        g = _col_weight(wgt, w, wo, transposed, cdt)            # (4, cin*w, cout*wo)
        brow = jnp.repeat(bias.astype(jnp.float32), wo).reshape(1, cout * wo)

        operands += [r, g, brow]
        in_specs += [
            pl.BlockSpec(r.shape, lambda b: (0, 0, 0)),
            pl.BlockSpec(g.shape, lambda b: (0, 0, 0)),
            pl.BlockSpec(brow.shape, lambda b: (0, 0)),
        ]
        layer_kinds.append((transposed, "sigmoid" if li == n_layers - 1 else "mish"))
        if li == 2:
            enc_dims = (cout, ho, wo)
        if li == n_layers - 1:
            dec_dims = (cout, ho, wo)
        h, w = ho, wo

    ce, he, we = enc_dims
    cd, hd, wd = dec_dims
    out_shape = (
        jax.ShapeDtypeStruct((B, he, ce * we), jnp.float32),    # encoded slab
        jax.ShapeDtypeStruct((B, hd, cd * wd), jnp.float32),    # decoded slab
    )
    out_specs = (
        pl.BlockSpec((None, he, ce * we), lambda b: (b, 0, 0)),
        pl.BlockSpec((None, hd, cd * wd), lambda b: (b, 0, 0)),
    )

    kernel = functools.partial(
        _fused_ae_kernel, layer_kinds=tuple(layer_kinds), compute_dtype=cdt)

    enc_flat, dec_flat = pl.pallas_call(
        kernel,
        out_shape=out_shape,
        grid=(B,),
        in_specs=in_specs,
        out_specs=list(out_specs),
        compiler_params=pltpu.CompilerParams(
            dimension_semantics=("parallel",),
            vmem_limit_bytes=32 * 1024 * 1024),
    )(a0, *operands)

    encoded = enc_flat.reshape(B, he, ce, we).transpose(0, 2, 1, 3)
    decoded = dec_flat.reshape(B, hd, cd, wd).transpose(0, 2, 1, 3)
    return encoded, decoded


# ---------------------------------------------------------------------------
# Deterministic parameter init (PyTorch-default-like uniform bounds)
# ---------------------------------------------------------------------------
def init_params(seed=0):
    key = jax.random.PRNGKey(seed)
    ks = jax.random.split(key, 12)
    k = KSIZE

    def conv_init(kw_, kb_, cout, cin):
        fan_in = cin * k * k
        bound = 1.0 / math.sqrt(fan_in)
        w = jax.random.uniform(kw_, (cout, cin, k, k), jnp.float32, -bound, bound)
        b = jax.random.uniform(kb_, (cout,), jnp.float32, -bound, bound)
        return w, b

    def convT_init(kw_, kb_, cin, cout):
        fan_in = cout * k * k   # PyTorch ConvTranspose2d fan_in = w.size(1)*k*k
        bound = 1.0 / math.sqrt(fan_in)
        w = jax.random.uniform(kw_, (cin, cout, k, k), jnp.float32, -bound, bound)
        b = jax.random.uniform(kb_, (cout,), jnp.float32, -bound, bound)
        return w, b

    p = {}
    p["w1"], p["b1"] = conv_init(ks[0], ks[1], 12, 3)
    p["w2"], p["b2"] = conv_init(ks[2], ks[3], 24, 12)
    p["w3"], p["b3"] = conv_init(ks[4], ks[5], 48, 24)
    p["w4"], p["b4"] = convT_init(ks[6], ks[7], 48, 24)
    p["w5"], p["b5"] = convT_init(ks[8], ks[9], 24, 12)
    p["w6"], p["b6"] = convT_init(ks[10], ks[11], 12, 3)
    return p


# ---------------------------------------------------------------------------
# Pure-JAX (XLA) reference for a correctness sanity check
# ---------------------------------------------------------------------------
def _reference_forward(x, params):
    def mish(v):
        return v * jnp.tanh(jax.nn.softplus(v))

    def conv(v, w, b):
        B, C, H, W = v.shape
        vp = jnp.pad(v, ((0, 0), (0, 0), (PAD, PAD), (PAD, PAD)))
        Ho = (H + 2 * PAD - KSIZE) // STRIDE + 1
        Wo = (W + 2 * PAD - KSIZE) // STRIDE + 1
        out = jnp.zeros((B, w.shape[0], Ho, Wo), jnp.float32)
        for kh in range(KSIZE):
            for kw in range(KSIZE):
                xs = vp[:, :, kh:kh + STRIDE * Ho:STRIDE, kw:kw + STRIDE * Wo:STRIDE]
                out = out + jnp.einsum('bchw,nc->bnhw', xs, w[:, :, kh, kw])
        return out + b[None, :, None, None]

    def convT(v, w, b):
        B, C, H, W = v.shape
        Ho = (H - 1) * STRIDE - 2 * PAD + KSIZE
        Wo = (W - 1) * STRIDE - 2 * PAD + KSIZE
        full = jnp.zeros((B, w.shape[1], (H - 1) * STRIDE + KSIZE,
                          (W - 1) * STRIDE + KSIZE), jnp.float32)
        for kh in range(KSIZE):
            for kw in range(KSIZE):
                full = full.at[:, :, kh:kh + STRIDE * H:STRIDE,
                               kw:kw + STRIDE * W:STRIDE].add(
                    jnp.einsum('bchw,cn->bnhw', v, w[:, :, kh, kw]))
        out = full[:, :, PAD:PAD + Ho, PAD:PAD + Wo]
        return out + b[None, :, None, None]

    h = mish(conv(x, params["w1"], params["b1"]))
    h = mish(conv(h, params["w2"], params["b2"]))
    enc = mish(conv(h, params["w3"], params["b3"]))
    h = mish(convT(enc, params["w4"], params["b4"]))
    h = mish(convT(h, params["w5"], params["b5"]))
    dec = jax.nn.sigmoid(convT(h, params["w6"], params["b6"]))
    return enc, dec


if __name__ == "__main__":
    key = jax.random.PRNGKey(0)
    x = jax.random.uniform(key, (2, 3, 32, 32), jnp.float32)   # NCHW, CIFAR-size
    params = init_params(seed=0)

    fwd = jax.jit(autoencoder_forward)
    encoded, decoded = fwd(x, params)
    jax.block_until_ready((encoded, decoded))

    assert encoded.shape == (2, 48, 4, 4), encoded.shape
    assert decoded.shape == (2, 3, 32, 32), decoded.shape

    enc_ref, dec_ref = jax.jit(_reference_forward)(x, params)
    jax.block_until_ready((enc_ref, dec_ref))
    enc_err = float(jnp.max(jnp.abs(encoded - enc_ref)))
    dec_err = float(jnp.max(jnp.abs(decoded - dec_ref)))
    assert enc_err < 0.1, f"encoded mismatch vs reference: {enc_err}"
    assert dec_err < 0.1, f"decoded mismatch vs reference: {dec_err}"

    print("KERNEL_OK")
</pallas_src>

<mosaic_0001>
module attributes {stable_mosaic.version = 11 : i64} {
  func.func @_fused_ae_kernel(%arg0: i32, %arg1: memref<1x32x96xbf16, #tpu.memory_space<vmem>>, %arg2: memref<4x16x32xbf16, #tpu.memory_space<vmem>>, %arg3: memref<4x96x192xbf16, #tpu.memory_space<vmem>>, %arg4: memref<1x192xf32, #tpu.memory_space<vmem>>, %arg5: memref<4x8x16xbf16, #tpu.memory_space<vmem>>, %arg6: memref<4x192x192xbf16, #tpu.memory_space<vmem>>, %arg7: memref<1x192xf32, #tpu.memory_space<vmem>>, %arg8: memref<4x4x8xbf16, #tpu.memory_space<vmem>>, %arg9: memref<4x192x192xbf16, #tpu.memory_space<vmem>>, %arg10: memref<1x192xf32, #tpu.memory_space<vmem>>, %arg11: memref<4x8x4xbf16, #tpu.memory_space<vmem>>, %arg12: memref<4x192x192xbf16, #tpu.memory_space<vmem>>, %arg13: memref<1x192xf32, #tpu.memory_space<vmem>>, %arg14: memref<4x16x8xbf16, #tpu.memory_space<vmem>>, %arg15: memref<4x192x192xbf16, #tpu.memory_space<vmem>>, %arg16: memref<1x192xf32, #tpu.memory_space<vmem>>, %arg17: memref<4x32x16xbf16, #tpu.memory_space<vmem>>, %arg18: memref<4x192x96xbf16, #tpu.memory_space<vmem>>, %arg19: memref<1x96xf32, #tpu.memory_space<vmem>>, %arg20: memref<1x4x192xf32, #tpu.memory_space<vmem>>, %arg21: memref<1x32x96xf32, #tpu.memory_space<vmem>>) attributes {dimension_semantics = [#tpu.dimension_semantics<parallel>], iteration_bounds = array<i64: 2>, scalar_prefetch = 0 : i64, scratch_operands = 0 : i64, tpu.core_type = #tpu.core_type<tc>, window_params = [{transform_indices = @transform_0, window_bounds = array<i64: 1, 32, 96>}, {pipeline_mode = #tpu.pipeline_mode<synchronous>, transform_indices = @transform_1, window_bounds = array<i64: 4, 16, 32>}, {pipeline_mode = #tpu.pipeline_mode<synchronous>, transform_indices = @transform_2, window_bounds = array<i64: 4, 96, 192>}, {pipeline_mode = #tpu.pipeline_mode<synchronous>, transform_indices = @transform_3, window_bounds = array<i64: 1, 192>}, {pipeline_mode = #tpu.pipeline_mode<synchronous>, transform_indices = @transform_4, window_bounds = array<i64: 4, 8, 16>}, {pipeline_mode = #tpu.pipeline_mode<synchronous>, transform_indices = @transform_5, window_bounds = array<i64: 4, 192, 192>}, {pipeline_mode = #tpu.pipeline_mode<synchronous>, transform_indices = @transform_6, window_bounds = array<i64: 1, 192>}, {pipeline_mode = #tpu.pipeline_mode<synchronous>, transform_indices = @transform_7, window_bounds = array<i64: 4, 4, 8>}, {pipeline_mode = #tpu.pipeline_mode<synchronous>, transform_indices = @transform_8, window_bounds = array<i64: 4, 192, 192>}, {pipeline_mode = #tpu.pipeline_mode<synchronous>, transform_indices = @transform_9, window_bounds = array<i64: 1, 192>}, {pipeline_mode = #tpu.pipeline_mode<synchronous>, transform_indices = @transform_10, window_bounds = array<i64: 4, 8, 4>}, {pipeline_mode = #tpu.pipeline_mode<synchronous>, transform_indices = @transform_11, window_bounds = array<i64: 4, 192, 192>}, {pipeline_mode = #tpu.pipeline_mode<synchronous>, transform_indices = @transform_12, window_bounds = array<i64: 1, 192>}, {pipeline_mode = #tpu.pipeline_mode<synchronous>, transform_indices = @transform_13, window_bounds = array<i64: 4, 16, 8>}, {pipeline_mode = #tpu.pipeline_mode<synchronous>, transform_indices = @transform_14, window_bounds = array<i64: 4, 192, 192>}, {pipeline_mode = #tpu.pipeline_mode<synchronous>, transform_indices = @transform_15, window_bounds = array<i64: 1, 192>}, {pipeline_mode = #tpu.pipeline_mode<synchronous>, transform_indices = @transform_16, window_bounds = array<i64: 4, 32, 16>}, {pipeline_mode = #tpu.pipeline_mode<synchronous>, transform_indices = @transform_17, window_bounds = array<i64: 4, 192, 96>}, {pipeline_mode = #tpu.pipeline_mode<synchronous>, transform_indices = @transform_18, window_bounds = array<i64: 1, 96>}, {transform_indices = @transform_19, window_bounds = array<i64: 1, 4, 192>}, {transform_indices = @transform_20, window_bounds = array<i64: 1, 32, 96>}]} {
    %c0 = arith.constant 0 : index
    %c0_0 = arith.constant 0 : index
    %c0_1 = arith.constant 0 : index
    %0 = vector.load %arg1[%c0, %c0_0, %c0_1] : memref<1x32x96xbf16, #tpu.memory_space<vmem>>, vector<1x32x96xbf16>
    %1 = vector.shape_cast %0 : vector<1x32x96xbf16> to vector<32x96xbf16>
    %c0_2 = arith.constant 0 : index
    %c0_3 = arith.constant 0 : index
    %c0_4 = arith.constant 0 : index
    %2 = vector.load %arg2[%c0_2, %c0_3, %c0_4] : memref<4x16x32xbf16, #tpu.memory_space<vmem>>, vector<1x16x32xbf16>
    %3 = vector.shape_cast %2 : vector<1x16x32xbf16> to vector<16x32xbf16>
    %c0_5 = arith.constant 0 : index
    %c0_6 = arith.constant 0 : index
    %c0_7 = arith.constant 0 : index
    %4 = vector.load %arg3[%c0_5, %c0_6, %c0_7] : memref<4x96x192xbf16, #tpu.memory_space<vmem>>, vector<1x96x192xbf16>
    %5 = vector.shape_cast %4 : vector<1x96x192xbf16> to vector<96x192xbf16>
    %cst = arith.constant dense<0.000000e+00> : vector<16x96xf32>
    %6 = tpu.matmul %3, %1, %cst {dimension_numbers = #tpu.dot_dimension_numbers<[1], [0], [0], [1], [0, 0, 1, 1], [], []>} : vector<16x32xbf16>, vector<32x96xbf16>, vector<16x96xf32> -> vector<16x96xf32>
    %7 = arith.truncf %6 : vector<16x96xf32> to vector<16x96xbf16>
    %cst_8 = arith.constant dense<0.000000e+00> : vector<16x192xf32>
    %8 = tpu.matmul %7, %5, %cst_8 {dimension_numbers = #tpu.dot_dimension_numbers<[1], [0], [0], [1], [0, 0, 1, 1], [], []>} : vector<16x96xbf16>, vector<96x192xbf16>, vector<16x192xf32> -> vector<16x192xf32>
    %c1 = arith.constant 1 : index
    %c0_9 = arith.constant 0 : index
    %c0_10 = arith.constant 0 : index
    %9 = vector.load %arg2[%c1, %c0_9, %c0_10] : memref<4x16x32xbf16, #tpu.memory_space<vmem>>, vector<1x16x32xbf16>
    %10 = vector.shape_cast %9 : vector<1x16x32xbf16> to vector<16x32xbf16>
    %c1_11 = arith.constant 1 : index
    %c0_12 = arith.constant 0 : index
    %c0_13 = arith.constant 0 : index
    %11 = vector.load %arg3[%c1_11, %c0_12, %c0_13] : memref<4x96x192xbf16, #tpu.memory_space<vmem>>, vector<1x96x192xbf16>
    %12 = vector.shape_cast %11 : vector<1x96x192xbf16> to vector<96x192xbf16>
    %cst_14 = arith.constant dense<0.000000e+00> : vector<16x96xf32>
    %13 = tpu.matmul %10, %1, %cst_14 {dimension_numbers = #tpu.dot_dimension_numbers<[1], [0], [0], [1], [0, 0, 1, 1], [], []>} : vector<16x32xbf16>, vector<32x96xbf16>, vector<16x96xf32> -> vector<16x96xf32>
    %14 = arith.truncf %13 : vector<16x96xf32> to vector<16x96xbf16>
    %cst_15 = arith.constant dense<0.000000e+00> : vector<16x192xf32>
    %15 = tpu.matmul %14, %12, %cst_15 {dimension_numbers = #tpu.dot_dimension_numbers<[1], [0], [0], [1], [0, 0, 1, 1], [], []>} : vector<16x96xbf16>, vector<96x192xbf16>, vector<16x192xf32> -> vector<16x192xf32>
    %16 = arith.addf %8, %15 : vector<16x192xf32>
    %c2 = arith.constant 2 : index
    %c0_16 = arith.constant 0 : index
    %c0_17 = arith.constant 0 : index
    %17 = vector.load %arg2[%c2, %c0_16, %c0_17] : memref<4x16x32xbf16, #tpu.memory_space<vmem>>, vector<1x16x32xbf16>
    %18 = vector.shape_cast %17 : vector<1x16x32xbf16> to vector<16x32xbf16>
    %c2_18 = arith.constant 2 : index
    %c0_19 = arith.constant 0 : index
    %c0_20 = arith.constant 0 : index
    %19 = vector.load %arg3[%c2_18, %c0_19, %c0_20] : memref<4x96x192xbf16, #tpu.memory_space<vmem>>, vector<1x96x192xbf16>
    %20 = vector.shape_cast %19 : vector<1x96x192xbf16> to vector<96x192xbf16>
    %cst_21 = arith.constant dense<0.000000e+00> : vector<16x96xf32>
    %21 = tpu.matmul %18, %1, %cst_21 {dimension_numbers = #tpu.dot_dimension_numbers<[1], [0], [0], [1], [0, 0, 1, 1], [], []>} : vector<16x32xbf16>, vector<32x96xbf16>, vector<16x96xf32> -> vector<16x96xf32>
    %22 = arith.truncf %21 : vector<16x96xf32> to vector<16x96xbf16>
    %cst_22 = arith.constant dense<0.000000e+00> : vector<16x192xf32>
    %23 = tpu.matmul %22, %20, %cst_22 {dimension_numbers = #tpu.dot_dimension_numbers<[1], [0], [0], [1], [0, 0, 1, 1], [], []>} : vector<16x96xbf16>, vector<96x192xbf16>, vector<16x192xf32> -> vector<16x192xf32>
    %24 = arith.addf %16, %23 : vector<16x192xf32>
    %c3 = arith.constant 3 : index
    %c0_23 = arith.constant 0 : index
    %c0_24 = arith.constant 0 : index
    %25 = vector.load %arg2[%c3, %c0_23, %c0_24] : memref<4x16x32xbf16, #tpu.memory_space<vmem>>, vector<1x16x32xbf16>
    %26 = vector.shape_cast %25 : vector<1x16x32xbf16> to vector<16x32xbf16>
    %c3_25 = arith.constant 3 : index
    %c0_26 = arith.constant 0 : index
    %c0_27 = arith.constant 0 : index
    %27 = vector.load %arg3[%c3_25, %c0_26, %c0_27] : memref<4x96x192xbf16, #tpu.memory_space<vmem>>, vector<1x96x192xbf16>
    %28 = vector.shape_cast %27 : vector<1x96x192xbf16> to vector<96x192xbf16>
    %cst_28 = arith.constant dense<0.000000e+00> : vector<16x96xf32>
    %29 = tpu.matmul %26, %1, %cst_28 {dimension_numbers = #tpu.dot_dimension_numbers<[1], [0], [0], [1], [0, 0, 1, 1], [], []>} : vector<16x32xbf16>, vector<32x96xbf16>, vector<16x96xf32> -> vector<16x96xf32>
    %30 = arith.truncf %29 : vector<16x96xf32> to vector<16x96xbf16>
    %cst_29 = arith.constant dense<0.000000e+00> : vector<16x192xf32>
    %31 = tpu.matmul %30, %28, %cst_29 {dimension_numbers = #tpu.dot_dimension_numbers<[1], [0], [0], [1], [0, 0, 1, 1], [], []>} : vector<16x96xbf16>, vector<96x192xbf16>, vector<16x192xf32> -> vector<16x192xf32>
    %32 = arith.addf %24, %31 : vector<16x192xf32>
    %c0_30 = arith.constant 0 : index
    %c0_31 = arith.constant 0 : index
    %33 = vector.load %arg4[%c0_30, %c0_31] : memref<1x192xf32, #tpu.memory_space<vmem>>, vector<1x192xf32>
    %34 = vector.broadcast %33 : vector<1x192xf32> to vector<16x192xf32>
    %35 = arith.addf %32, %34 : vector<16x192xf32>
    %cst_32 = arith.constant 2.000000e+01 : f32
    %36 = vector.broadcast %cst_32 : f32 to vector<16x192xf32>
    %37 = arith.minimumf %35, %36 : vector<16x192xf32>
    %38 = math.exp %37 : vector<16x192xf32>
    %cst_33 = arith.constant 1.000000e+00 : f32
    %39 = vector.broadcast %cst_33 : f32 to vector<16x192xf32>
    %40 = arith.addf %39, %38 : vector<16x192xf32>
    %41 = arith.mulf %40, %40 : vector<16x192xf32>
    %cst_34 = arith.constant 1.000000e+00 : f32
    %42 = vector.broadcast %cst_34 : f32 to vector<16x192xf32>
    %43 = arith.subf %41, %42 : vector<16x192xf32>
    %cst_35 = arith.constant 1.000000e+00 : f32
    %44 = vector.broadcast %cst_35 : f32 to vector<16x192xf32>
    %45 = arith.addf %41, %44 : vector<16x192xf32>
    %46 = arith.divf %43, %45 : vector<16x192xf32>
    %cst_36 = arith.constant 2.000000e+01 : f32
    %47 = vector.broadcast %cst_36 : f32 to vector<16x192xf32>
    %48 = arith.cmpf ogt, %35, %47 : vector<16x192xf32>
    %cst_37 = arith.constant 1.000000e+00 : f32
    %49 = vector.broadcast %cst_37 : f32 to vector<16x192xf32>
    %50 = arith.select %48, %49, %46 : vector<16x192xi1>, vector<16x192xf32>
    %51 = arith.mulf %35, %50 : vector<16x192xf32>
    %52 = arith.truncf %51 : vector<16x192xf32> to vector<16x192xbf16>
    %c0_38 = arith.constant 0 : index
    %c0_39 = arith.constant 0 : index
    %c0_40 = arith.constant 0 : index
    %53 = vector.load %arg5[%c0_38, %c0_39, %c0_40] : memref<4x8x16xbf16, #tpu.memory_space<vmem>>, vector<1x8x16xbf16>
    %54 = vector.shape_cast %53 : vector<1x8x16xbf16> to vector<8x16xbf16>
    %c0_41 = arith.constant 0 : index
    %c0_42 = arith.constant 0 : index
    %c0_43 = arith.constant 0 : index
    %55 = vector.load %arg6[%c0_41, %c0_42, %c0_43] : memref<4x192x192xbf16, #tpu.memory_space<vmem>>, vector<1x192x192xbf16>
    %56 = vector.shape_cast %55 : vector<1x192x192xbf16> to vector<192x192xbf16>
    %cst_44 = arith.constant dense<0.000000e+00> : vector<8x192xf32>
    %57 = tpu.matmul %54, %52, %cst_44 {dimension_numbers = #tpu.dot_dimension_numbers<[1], [0], [0], [1], [0, 0, 1, 1], [], []>} : vector<8x16xbf16>, vector<16x192xbf16>, vector<8x192xf32> -> vector<8x192xf32>
    %58 = arith.truncf %57 : vector<8x192xf32> to vector<8x192xbf16>
    %cst_45 = arith.constant dense<0.000000e+00> : vector<8x192xf32>
    %59 = tpu.matmul %58, %56, %cst_45 {dimension_numbers = #tpu.dot_dimension_numbers<[1], [0], [0], [1], [0, 0, 1, 1], [], []>} : vector<8x192xbf16>, vector<192x192xbf16>, vector<8x192xf32> -> vector<8x192xf32>
    %c1_46 = arith.constant 1 : index
    %c0_47 = arith.constant 0 : index
    %c0_48 = arith.constant 0 : index
    %60 = vector.load %arg5[%c1_46, %c0_47, %c0_48] : memref<4x8x16xbf16, #tpu.memory_space<vmem>>, vector<1x8x16xbf16>
    %61 = vector.shape_cast %60 : vector<1x8x16xbf16> to vector<8x16xbf16>
    %c1_49 = arith.constant 1 : index
    %c0_50 = arith.constant 0 : index
    %c0_51 = arith.constant 0 : index
    %62 = vector.load %arg6[%c1_49, %c0_50, %c0_51] : memref<4x192x192xbf16, #tpu.memory_space<vmem>>, vector<1x192x192xbf16>
    %63 = vector.shape_cast %62 : vector<1x192x192xbf16> to vector<192x192xbf16>
    %cst_52 = arith.constant dense<0.000000e+00> : vector<8x192xf32>
    %64 = tpu.matmul %61, %52, %cst_52 {dimension_numbers = #tpu.dot_dimension_numbers<[1], [0], [0], [1], [0, 0, 1, 1], [], []>} : vector<8x16xbf16>, vector<16x192xbf16>, vector<8x192xf32> -> vector<8x192xf32>
    %65 = arith.truncf %64 : vector<8x192xf32> to vector<8x192xbf16>
    %cst_53 = arith.constant dense<0.000000e+00> : vector<8x192xf32>
    %66 = tpu.matmul %65, %63, %cst_53 {dimension_numbers = #tpu.dot_dimension_numbers<[1], [0], [0], [1], [0, 0, 1, 1], [], []>} : vector<8x192xbf16>, vector<192x192xbf16>, vector<8x192xf32> -> vector<8x192xf32>
    %67 = arith.addf %59, %66 : vector<8x192xf32>
    %c2_54 = arith.constant 2 : index
    %c0_55 = arith.constant 0 : index
    %c0_56 = arith.constant 0 : index
    %68 = vector.load %arg5[%c2_54, %c0_55, %c0_56] : memref<4x8x16xbf16, #tpu.memory_space<vmem>>, vector<1x8x16xbf16>
    %69 = vector.shape_cast %68 : vector<1x8x16xbf16> to vector<8x16xbf16>
    %c2_57 = arith.constant 2 : index
    %c0_58 = arith.constant 0 : index
    %c0_59 = arith.constant 0 : index
    %70 = vector.load %arg6[%c2_57, %c0_58, %c0_59] : memref<4x192x192xbf16, #tpu.memory_space<vmem>>, vector<1x192x192xbf16>
    %71 = vector.shape_cast %70 : vector<1x192x192xbf16> to vector<192x192xbf16>
    %cst_60 = arith.constant dense<0.000000e+00> : vector<8x192xf32>
    %72 = tpu.matmul %69, %52, %cst_60 {dimension_numbers = #tpu.dot_dimension_numbers<[1], [0], [0], [1], [0, 0, 1, 1], [], []>} : vector<8x16xbf16>, vector<16x192xbf16>, vector<8x192xf32> -> vector<8x192xf32>
    %73 = arith.truncf %72 : vector<8x192xf32> to vector<8x192xbf16>
    %cst_61 = arith.constant dense<0.000000e+00> : vector<8x192xf32>
    %74 = tpu.matmul %73, %71, %cst_61 {dimension_numbers = #tpu.dot_dimension_numbers<[1], [0], [0], [1], [0, 0, 1, 1], [], []>} : vector<8x192xbf16>, vector<192x192xbf16>, vector<8x192xf32> -> vector<8x192xf32>
    %75 = arith.addf %67, %74 : vector<8x192xf32>
    %c3_62 = arith.constant 3 : index
    %c0_63 = arith.constant 0 : index
    %c0_64 = arith.constant 0 : index
    %76 = vector.load %arg5[%c3_62, %c0_63, %c0_64] : memref<4x8x16xbf16, #tpu.memory_space<vmem>>, vector<1x8x16xbf16>
    %77 = vector.shape_cast %76 : vector<1x8x16xbf16> to vector<8x16xbf16>
    %c3_65 = arith.constant 3 : index
    %c0_66 = arith.constant 0 : index
    %c0_67 = arith.constant 0 : index
    %78 = vector.load %arg6[%c3_65, %c0_66, %c0_67] : memref<4x192x192xbf16, #tpu.memory_space<vmem>>, vector<1x192x192xbf16>
    %79 = vector.shape_cast %78 : vector<1x192x192xbf16> to vector<192x192xbf16>
    %cst_68 = arith.constant dense<0.000000e+00> : vector<8x192xf32>
    %80 = tpu.matmul %77, %52, %cst_68 {dimension_numbers = #tpu.dot_dimension_numbers<[1], [0], [0], [1], [0, 0, 1, 1], [], []>} : vector<8x16xbf16>, vector<16x192xbf16>, vector<8x192xf32> -> vector<8x192xf32>
    %81 = arith.truncf %80 : vector<8x192xf32> to vector<8x192xbf16>
    %cst_69 = arith.constant dense<0.000000e+00> : vector<8x192xf32>
    %82 = tpu.matmul %81, %79, %cst_69 {dimension_numbers = #tpu.dot_dimension_numbers<[1], [0], [0], [1], [0, 0, 1, 1], [], []>} : vector<8x192xbf16>, vector<192x192xbf16>, vector<8x192xf32> -> vector<8x192xf32>
    %83 = arith.addf %75, %82 : vector<8x192xf32>
    %c0_70 = arith.constant 0 : index
    %c0_71 = arith.constant 0 : index
    %84 = vector.load %arg7[%c0_70, %c0_71] : memref<1x192xf32, #tpu.memory_space<vmem>>, vector<1x192xf32>
    %85 = vector.broadcast %84 : vector<1x192xf32> to vector<8x192xf32>
    %86 = arith.addf %83, %85 : vector<8x192xf32>
    %cst_72 = arith.constant 2.000000e+01 : f32
    %87 = vector.broadcast %cst_72 : f32 to vector<8x192xf32>
    %88 = arith.minimumf %86, %87 : vector<8x192xf32>
    %89 = math.exp %88 : vector<8x192xf32>
    %cst_73 = arith.constant 1.000000e+00 : f32
    %90 = vector.broadcast %cst_73 : f32 to vector<8x192xf32>
    %91 = arith.addf %90, %89 : vector<8x192xf32>
    %92 = arith.mulf %91, %91 : vector<8x192xf32>
    %cst_74 = arith.constant 1.000000e+00 : f32
    %93 = vector.broadcast %cst_74 : f32 to vector<8x192xf32>
    %94 = arith.subf %92, %93 : vector<8x192xf32>
    %cst_75 = arith.constant 1.000000e+00 : f32
    %95 = vector.broadcast %cst_75 : f32 to vector<8x192xf32>
    %96 = arith.addf %92, %95 : vector<8x192xf32>
    %97 = arith.divf %94, %96 : vector<8x192xf32>
    %cst_76 = arith.constant 2.000000e+01 : f32
    %98 = vector.broadcast %cst_76 : f32 to vector<8x192xf32>
    %99 = arith.cmpf ogt, %86, %98 : vector<8x192xf32>
    %cst_77 = arith.constant 1.000000e+00 : f32
    %100 = vector.broadcast %cst_77 : f32 to vector<8x192xf32>
    %101 = arith.select %99, %100, %97 : vector<8x192xi1>, vector<8x192xf32>
    %102 = arith.mulf %86, %101 : vector<8x192xf32>
    %103 = arith.truncf %102 : vector<8x192xf32> to vector<8x192xbf16>
    %c0_78 = arith.constant 0 : index
    %c0_79 = arith.constant 0 : index
    %c0_80 = arith.constant 0 : index
    %104 = vector.load %arg8[%c0_78, %c0_79, %c0_80] : memref<4x4x8xbf16, #tpu.memory_space<vmem>>, vector<1x4x8xbf16>
    %105 = vector.shape_cast %104 : vector<1x4x8xbf16> to vector<4x8xbf16>
    %c0_81 = arith.constant 0 : index
    %c0_82 = arith.constant 0 : index
    %c0_83 = arith.constant 0 : index
    %106 = vector.load %arg9[%c0_81, %c0_82, %c0_83] : memref<4x192x192xbf16, #tpu.memory_space<vmem>>, vector<1x192x192xbf16>
    %107 = vector.shape_cast %106 : vector<1x192x192xbf16> to vector<192x192xbf16>
    %cst_84 = arith.constant dense<0.000000e+00> : vector<4x192xf32>
    %108 = tpu.matmul %105, %103, %cst_84 {dimension_numbers = #tpu.dot_dimension_numbers<[1], [0], [0], [1], [0, 0, 1, 1], [], []>} : vector<4x8xbf16>, vector<8x192xbf16>, vector<4x192xf32> -> vector<4x192xf32>
    %109 = arith.truncf %108 : vector<4x192xf32> to vector<4x192xbf16>
    %cst_85 = arith.constant dense<0.000000e+00> : vector<4x192xf32>
    %110 = tpu.matmul %109, %107, %cst_85 {dimension_numbers = #tpu.dot_dimension_numbers<[1], [0], [0], [1], [0, 0, 1, 1], [], []>} : vector<4x192xbf16>, vector<192x192xbf16>, vector<4x192xf32> -> vector<4x192xf32>
    %c1_86 = arith.constant 1 : index
    %c0_87 = arith.constant 0 : index
    %c0_88 = arith.constant 0 : index
    %111 = vector.load %arg8[%c1_86, %c0_87, %c0_88] : memref<4x4x8xbf16, #tpu.memory_space<vmem>>, vector<1x4x8xbf16>
    %112 = vector.shape_cast %111 : vector<1x4x8xbf16> to vector<4x8xbf16>
    %c1_89 = arith.constant 1 : index
    %c0_90 = arith.constant 0 : index
    %c0_91 = arith.constant 0 : index
    %113 = vector.load %arg9[%c1_89, %c0_90, %c0_91] : memref<4x192x192xbf16, #tpu.memory_space<vmem>>, vector<1x192x192xbf16>
    %114 = vector.shape_cast %113 : vector<1x192x192xbf16> to vector<192x192xbf16>
    %cst_92 = arith.constant dense<0.000000e+00> : vector<4x192xf32>
    %115 = tpu.matmul %112, %103, %cst_92 {dimension_numbers = #tpu.dot_dimension_numbers<[1], [0], [0], [1], [0, 0, 1, 1], [], []>} : vector<4x8xbf16>, vector<8x192xbf16>, vector<4x192xf32> -> vector<4x192xf32>
    %116 = arith.truncf %115 : vector<4x192xf32> to vector<4x192xbf16>
    %cst_93 = arith.constant dense<0.000000e+00> : vector<4x192xf32>
    %117 = tpu.matmul %116, %114, %cst_93 {dimension_numbers = #tpu.dot_dimension_numbers<[1], [0], [0], [1], [0, 0, 1, 1], [], []>} : vector<4x192xbf16>, vector<192x192xbf16>, vector<4x192xf32> -> vector<4x192xf32>
    %118 = arith.addf %110, %117 : vector<4x192xf32>
    %c2_94 = arith.constant 2 : index
    %c0_95 = arith.constant 0 : index
    %c0_96 = arith.constant 0 : index
    %119 = vector.load %arg8[%c2_94, %c0_95, %c0_96] : memref<4x4x8xbf16, #tpu.memory_space<vmem>>, vector<1x4x8xbf16>
    %120 = vector.shape_cast %119 : vector<1x4x8xbf16> to vector<4x8xbf16>
    %c2_97 = arith.constant 2 : index
    %c0_98 = arith.constant 0 : index
    %c0_99 = arith.constant 0 : index
    %121 = vector.load %arg9[%c2_97, %c0_98, %c0_99] : memref<4x192x192xbf16, #tpu.memory_space<vmem>>, vector<1x192x192xbf16>
    %122 = vector.shape_cast %121 : vector<1x192x192xbf16> to vector<192x192xbf16>
    %cst_100 = arith.constant dense<0.000000e+00> : vector<4x192xf32>
    %123 = tpu.matmul %120, %103, %cst_100 {dimension_numbers = #tpu.dot_dimension_numbers<[1], [0], [0], [1], [0, 0, 1, 1], [], []>} : vector<4x8xbf16>, vector<8x192xbf16>, vector<4x192xf32> -> vector<4x192xf32>
    %124 = arith.truncf %123 : vector<4x192xf32> to vector<4x192xbf16>
    %cst_101 = arith.constant dense<0.000000e+00> : vector<4x192xf32>
    %125 = tpu.matmul %124, %122, %cst_101 {dimension_numbers = #tpu.dot_dimension_numbers<[1], [0], [0], [1], [0, 0, 1, 1], [], []>} : vector<4x192xbf16>, vector<192x192xbf16>, vector<4x192xf32> -> vector<4x192xf32>
    %126 = arith.addf %118, %125 : vector<4x192xf32>
    %c3_102 = arith.constant 3 : index
    %c0_103 = arith.constant 0 : index
    %c0_104 = arith.constant 0 : index
    %127 = vector.load %arg8[%c3_102, %c0_103, %c0_104] : memref<4x4x8xbf16, #tpu.memory_space<vmem>>, vector<1x4x8xbf16>
    %128 = vector.shape_cast %127 : vector<1x4x8xbf16> to vector<4x8xbf16>
    %c3_105 = arith.constant 3 : index
    %c0_106 = arith.constant 0 : index
    %c0_107 = arith.constant 0 : index
    %129 = vector.load %arg9[%c3_105, %c0_106, %c0_107] : memref<4x192x192xbf16, #tpu.memory_space<vmem>>, vector<1x192x192xbf16>
    %130 = vector.shape_cast %129 : vector<1x192x192xbf16> to vector<192x192xbf16>
    %cst_108 = arith.constant dense<0.000000e+00> : vector<4x192xf32>
    %131 = tpu.matmul %128, %103, %cst_108 {dimension_numbers = #tpu.dot_dimension_numbers<[1], [0], [0], [1], [0, 0, 1, 1], [], []>} : vector<4x8xbf16>, vector<8x192xbf16>, vector<4x192xf32> -> vector<4x192xf32>
    %132 = arith.truncf %131 : vector<4x192xf32> to vector<4x192xbf16>
    %cst_109 = arith.constant dense<0.000000e+00> : vector<4x192xf32>
    %133 = tpu.matmul %132, %130, %cst_109 {dimension_numbers = #tpu.dot_dimension_numbers<[1], [0], [0], [1], [0, 0, 1, 1], [], []>} : vector<4x192xbf16>, vector<192x192xbf16>, vector<4x192xf32> -> vector<4x192xf32>
    %134 = arith.addf %126, %133 : vector<4x192xf32>
    %c0_110 = arith.constant 0 : index
    %c0_111 = arith.constant 0 : index
    %135 = vector.load %arg10[%c0_110, %c0_111] : memref<1x192xf32, #tpu.memory_space<vmem>>, vector<1x192xf32>
    %136 = vector.broadcast %135 : vector<1x192xf32> to vector<4x192xf32>
    %137 = arith.addf %134, %136 : vector<4x192xf32>
    %cst_112 = arith.constant 2.000000e+01 : f32
    %138 = vector.broadcast %cst_112 : f32 to vector<4x192xf32>
    %139 = arith.minimumf %137, %138 : vector<4x192xf32>
    %140 = math.exp %139 : vector<4x192xf32>
    %cst_113 = arith.constant 1.000000e+00 : f32
    %141 = vector.broadcast %cst_113 : f32 to vector<4x192xf32>
    %142 = arith.addf %141, %140 : vector<4x192xf32>
    %143 = arith.mulf %142, %142 : vector<4x192xf32>
    %cst_114 = arith.constant 1.000000e+00 : f32
    %144 = vector.broadcast %cst_114 : f32 to vector<4x192xf32>
    %145 = arith.subf %143, %144 : vector<4x192xf32>
    %cst_115 = arith.constant 1.000000e+00 : f32
    %146 = vector.broadcast %cst_115 : f32 to vector<4x192xf32>
    %147 = arith.addf %143, %146 : vector<4x192xf32>
    %148 = arith.divf %145, %147 : vector<4x192xf32>
    %cst_116 = arith.constant 2.000000e+01 : f32
    %149 = vector.broadcast %cst_116 : f32 to vector<4x192xf32>
    %150 = arith.cmpf ogt, %137, %149 : vector<4x192xf32>
    %cst_117 = arith.constant 1.000000e+00 : f32
    %151 = vector.broadcast %cst_117 : f32 to vector<4x192xf32>
    %152 = arith.select %150, %151, %148 : vector<4x192xi1>, vector<4x192xf32>
    %153 = arith.mulf %137, %152 : vector<4x192xf32>
    %c0_118 = arith.constant 0 : index
    %c0_119 = arith.constant 0 : index
    %c0_120 = arith.constant 0 : index
    %154 = vector.load %arg20[%c0_118, %c0_119, %c0_120] : memref<1x4x192xf32, #tpu.memory_space<vmem>>, vector<1x4x192xf32>
    %155 = vector.shape_cast %154 : vector<1x4x192xf32> to vector<4x192xf32>
    %156 = vector.shape_cast %153 : vector<4x192xf32> to vector<1x4x192xf32>
    tpu.vector_store %arg20[%c0_118, %c0_119, %c0_120], %156 {strides = array<i32>} : memref<1x4x192xf32, #tpu.memory_space<vmem>>, vector<1x4x192xf32>,
    %157 = arith.truncf %153 : vector<4x192xf32> to vector<4x192xbf16>
    %c0_121 = arith.constant 0 : index
    %c0_122 = arith.constant 0 : index
    %c0_123 = arith.constant 0 : index
    %158 = vector.load %arg11[%c0_121, %c0_122, %c0_123] : memref<4x8x4xbf16, #tpu.memory_space<vmem>>, vector<1x8x4xbf16>
    %159 = vector.shape_cast %158 : vector<1x8x4xbf16> to vector<8x4xbf16>
    %c0_124 = arith.constant 0 : index
    %c0_125 = arith.constant 0 : index
    %c0_126 = arith.constant 0 : index
    %160 = vector.load %arg12[%c0_124, %c0_125, %c0_126] : memref<4x192x192xbf16, #tpu.memory_space<vmem>>, vector<1x192x192xbf16>
    %161 = vector.shape_cast %160 : vector<1x192x192xbf16> to vector<192x192xbf16>
    %cst_127 = arith.constant dense<0.000000e+00> : vector<4x192xf32>
    %162 = tpu.matmul %157, %161, %cst_127 {dimension_numbers = #tpu.dot_dimension_numbers<[1], [0], [0], [1], [0, 0, 1, 1], [], []>} : vector<4x192xbf16>, vector<192x192xbf16>, vector<4x192xf32> -> vector<4x192xf32>
    %163 = arith.truncf %162 : vector<4x192xf32> to vector<4x192xbf16>
    %cst_128 = arith.constant dense<0.000000e+00> : vector<8x192xf32>
    %164 = tpu.matmul %159, %163, %cst_128 {dimension_numbers = #tpu.dot_dimension_numbers<[1], [0], [0], [1], [0, 0, 1, 1], [], []>} : vector<8x4xbf16>, vector<4x192xbf16>, vector<8x192xf32> -> vector<8x192xf32>
    %c1_129 = arith.constant 1 : index
    %c0_130 = arith.constant 0 : index
    %c0_131 = arith.constant 0 : index
    %165 = vector.load %arg11[%c1_129, %c0_130, %c0_131] : memref<4x8x4xbf16, #tpu.memory_space<vmem>>, vector<1x8x4xbf16>
    %166 = vector.shape_cast %165 : vector<1x8x4xbf16> to vector<8x4xbf16>
    %c1_132 = arith.constant 1 : index
    %c0_133 = arith.constant 0 : index
    %c0_134 = arith.constant 0 : index
    %167 = vector.load %arg12[%c1_132, %c0_133, %c0_134] : memref<4x192x192xbf16, #tpu.memory_space<vmem>>, vector<1x192x192xbf16>
    %168 = vector.shape_cast %167 : vector<1x192x192xbf16> to vector<192x192xbf16>
    %cst_135 = arith.constant dense<0.000000e+00> : vector<4x192xf32>
    %169 = tpu.matmul %157, %168, %cst_135 {dimension_numbers = #tpu.dot_dimension_numbers<[1], [0], [0], [1], [0, 0, 1, 1], [], []>} : vector<4x192xbf16>, vector<192x192xbf16>, vector<4x192xf32> -> vector<4x192xf32>
    %170 = arith.truncf %169 : vector<4x192xf32> to vector<4x192xbf16>
    %cst_136 = arith.constant dense<0.000000e+00> : vector<8x192xf32>
    %171 = tpu.matmul %166, %170, %cst_136 {dimension_numbers = #tpu.dot_dimension_numbers<[1], [0], [0], [1], [0, 0, 1, 1], [], []>} : vector<8x4xbf16>, vector<4x192xbf16>, vector<8x192xf32> -> vector<8x192xf32>
    %172 = arith.addf %164, %171 : vector<8x192xf32>
    %c2_137 = arith.constant 2 : index
    %c0_138 = arith.constant 0 : index
    %c0_139 = arith.constant 0 : index
    %173 = vector.load %arg11[%c2_137, %c0_138, %c0_139] : memref<4x8x4xbf16, #tpu.memory_space<vmem>>, vector<1x8x4xbf16>
    %174 = vector.shape_cast %173 : vector<1x8x4xbf16> to vector<8x4xbf16>
    %c2_140 = arith.constant 2 : index
    %c0_141 = arith.constant 0 : index
    %c0_142 = arith.constant 0 : index
    %175 = vector.load %arg12[%c2_140, %c0_141, %c0_142] : memref<4x192x192xbf16, #tpu.memory_space<vmem>>, vector<1x192x192xbf16>
    %176 = vector.shape_cast %175 : vector<1x192x192xbf16> to vector<192x192xbf16>
    %cst_143 = arith.constant dense<0.000000e+00> : vector<4x192xf32>
    %177 = tpu.matmul %157, %176, %cst_143 {dimension_numbers = #tpu.dot_dimension_numbers<[1], [0], [0], [1], [0, 0, 1, 1], [], []>} : vector<4x192xbf16>, vector<192x192xbf16>, vector<4x192xf32> -> vector<4x192xf32>
    %178 = arith.truncf %177 : vector<4x192xf32> to vector<4x192xbf16>
    %cst_144 = arith.constant dense<0.000000e+00> : vector<8x192xf32>
    %179 = tpu.matmul %174, %178, %cst_144 {dimension_numbers = #tpu.dot_dimension_numbers<[1], [0], [0], [1], [0, 0, 1, 1], [], []>} : vector<8x4xbf16>, vector<4x192xbf16>, vector<8x192xf32> -> vector<8x192xf32>
    %180 = arith.addf %172, %179 : vector<8x192xf32>
    %c3_145 = arith.constant 3 : index
    %c0_146 = arith.constant 0 : index
    %c0_147 = arith.constant 0 : index
    %181 = vector.load %arg11[%c3_145, %c0_146, %c0_147] : memref<4x8x4xbf16, #tpu.memory_space<vmem>>, vector<1x8x4xbf16>
    %182 = vector.shape_cast %181 : vector<1x8x4xbf16> to vector<8x4xbf16>
    %c3_148 = arith.constant 3 : index
    %c0_149 = arith.constant 0 : index
    %c0_150 = arith.constant 0 : index
    %183 = vector.load %arg12[%c3_148, %c0_149, %c0_150] : memref<4x192x192xbf16, #tpu.memory_space<vmem>>, vector<1x192x192xbf16>
    %184 = vector.shape_cast %183 : vector<1x192x192xbf16> to vector<192x192xbf16>
    %cst_151 = arith.constant dense<0.000000e+00> : vector<4x192xf32>
    %185 = tpu.matmul %157, %184, %cst_151 {dimension_numbers = #tpu.dot_dimension_numbers<[1], [0], [0], [1], [0, 0, 1, 1], [], []>} : vector<4x192xbf16>, vector<192x192xbf16>, vector<4x192xf32> -> vector<4x192xf32>
    %186 = arith.truncf %185 : vector<4x192xf32> to vector<4x192xbf16>
    %cst_152 = arith.constant dense<0.000000e+00> : vector<8x192xf32>
    %187 = tpu.matmul %182, %186, %cst_152 {dimension_numbers = #tpu.dot_dimension_numbers<[1], [0], [0], [1], [0, 0, 1, 1], [], []>} : vector<8x4xbf16>, vector<4x192xbf16>, vector<8x192xf32> -> vector<8x192xf32>
    %188 = arith.addf %180, %187 : vector<8x192xf32>
    %c0_153 = arith.constant 0 : index
    %c0_154 = arith.constant 0 : index
    %189 = vector.load %arg13[%c0_153, %c0_154] : memref<1x192xf32, #tpu.memory_space<vmem>>, vector<1x192xf32>
    %190 = vector.broadcast %189 : vector<1x192xf32> to vector<8x192xf32>
    %191 = arith.addf %188, %190 : vector<8x192xf32>
    %cst_155 = arith.constant 2.000000e+01 : f32
    %192 = vector.broadcast %cst_155 : f32 to vector<8x192xf32>
    %193 = arith.minimumf %191, %192 : vector<8x192xf32>
    %194 = math.exp %193 : vector<8x192xf32>
    %cst_156 = arith.constant 1.000000e+00 : f32
    %195 = vector.broadcast %cst_156 : f32 to vector<8x192xf32>
    %196 = arith.addf %195, %194 : vector<8x192xf32>
    %197 = arith.mulf %196, %196 : vector<8x192xf32>
    %cst_157 = arith.constant 1.000000e+00 : f32
    %198 = vector.broadcast %cst_157 : f32 to vector<8x192xf32>
    %199 = arith.subf %197, %198 : vector<8x192xf32>
    %cst_158 = arith.constant 1.000000e+00 : f32
    %200 = vector.broadcast %cst_158 : f32 to vector<8x192xf32>
    %201 = arith.addf %197, %200 : vector<8x192xf32>
    %202 = arith.divf %199, %201 : vector<8x192xf32>
    %cst_159 = arith.constant 2.000000e+01 : f32
    %203 = vector.broadcast %cst_159 : f32 to vector<8x192xf32>
    %204 = arith.cmpf ogt, %191, %203 : vector<8x192xf32>
    %cst_160 = arith.constant 1.000000e+00 : f32
    %205 = vector.broadcast %cst_160 : f32 to vector<8x192xf32>
    %206 = arith.select %204, %205, %202 : vector<8x192xi1>, vector<8x192xf32>
    %207 = arith.mulf %191, %206 : vector<8x192xf32>
    %208 = arith.truncf %207 : vector<8x192xf32> to vector<8x192xbf16>
    %c0_161 = arith.constant 0 : index
    %c0_162 = arith.constant 0 : index
    %c0_163 = arith.constant 0 : index
    %209 = vector.load %arg14[%c0_161, %c0_162, %c0_163] : memref<4x16x8xbf16, #tpu.memory_space<vmem>>, vector<1x16x8xbf16>
    %210 = vector.shape_cast %209 : vector<1x16x8xbf16> to vector<16x8xbf16>
    %c0_164 = arith.constant 0 : index
    %c0_165 = arith.constant 0 : index
    %c0_166 = arith.constant 0 : index
    %211 = vector.load %arg15[%c0_164, %c0_165, %c0_166] : memref<4x192x192xbf16, #tpu.memory_space<vmem>>, vector<1x192x192xbf16>
    %212 = vector.shape_cast %211 : vector<1x192x192xbf16> to vector<192x192xbf16>
    %cst_167 = arith.constant dense<0.000000e+00> : vector<8x192xf32>
    %213 = tpu.matmul %208, %212, %cst_167 {dimension_numbers = #tpu.dot_dimension_numbers<[1], [0], [0], [1], [0, 0, 1, 1], [], []>} : vector<8x192xbf16>, vector<192x192xbf16>, vector<8x192xf32> -> vector<8x192xf32>
    %214 = arith.truncf %213 : vector<8x192xf32> to vector<8x192xbf16>
    %cst_168 = arith.constant dense<0.000000e+00> : vector<16x192xf32>
    %215 = tpu.matmul %210, %214, %cst_168 {dimension_numbers = #tpu.dot_dimension_numbers<[1], [0], [0], [1], [0, 0, 1, 1], [], []>} : vector<16x8xbf16>, vector<8x192xbf16>, vector<16x192xf32> -> vector<16x192xf32>
    %c1_169 = arith.constant 1 : index
    %c0_170 = arith.constant 0 : index
    %c0_171 = arith.constant 0 : index
    %216 = vector.load %arg14[%c1_169, %c0_170, %c0_171] : memref<4x16x8xbf16, #tpu.memory_space<vmem>>, vector<1x16x8xbf16>
    %217 = vector.shape_cast %216 : vector<1x16x8xbf16> to vector<16x8xbf16>
    %c1_172 = arith.constant 1 : index
    %c0_173 = arith.constant 0 : index
    %c0_174 = arith.constant 0 : index
    %218 = vector.load %arg15[%c1_172, %c0_173, %c0_174] : memref<4x192x192xbf16, #tpu.memory_space<vmem>>, vector<1x192x192xbf16>
    %219 = vector.shape_cast %218 : vector<1x192x192xbf16> to vector<192x192xbf16>
    %cst_175 = arith.constant dense<0.000000e+00> : vector<8x192xf32>
    %220 = tpu.matmul %208, %219, %cst_175 {dimension_numbers = #tpu.dot_dimension_numbers<[1], [0], [0], [1], [0, 0, 1, 1], [], []>} : vector<8x192xbf16>, vector<192x192xbf16>, vector<8x192xf32> -> vector<8x192xf32>
    %221 = arith.truncf %220 : vector<8x192xf32> to vector<8x192xbf16>
    %cst_176 = arith.constant dense<0.000000e+00> : vector<16x192xf32>
    %222 = tpu.matmul %217, %221, %cst_176 {dimension_numbers = #tpu.dot_dimension_numbers<[1], [0], [0], [1], [0, 0, 1, 1], [], []>} : vector<16x8xbf16>, vector<8x192xbf16>, vector<16x192xf32> -> vector<16x192xf32>
    %223 = arith.addf %215, %222 : vector<16x192xf32>
    %c2_177 = arith.constant 2 : index
    %c0_178 = arith.constant 0 : index
    %c0_179 = arith.constant 0 : index
    %224 = vector.load %arg14[%c2_177, %c0_178, %c0_179] : memref<4x16x8xbf16, #tpu.memory_space<vmem>>, vector<1x16x8xbf16>
    %225 = vector.shape_cast %224 : vector<1x16x8xbf16> to vector<16x8xbf16>
    %c2_180 = arith.constant 2 : index
    %c0_181 = arith.constant 0 : index
    %c0_182 = arith.constant 0 : index
    %226 = vector.load %arg15[%c2_180, %c0_181, %c0_182] : memref<4x192x192xbf16, #tpu.memory_space<vmem>>, vector<1x192x192xbf16>
    %227 = vector.shape_cast %226 : vector<1x192x192xbf16> to vector<192x192xbf16>
    %cst_183 = arith.constant dense<0.000000e+00> : vector<8x192xf32>
    %228 = tpu.matmul %208, %227, %cst_183 {dimension_numbers = #tpu.dot_dimension_numbers<[1], [0], [0], [1], [0, 0, 1, 1], [], []>} : vector<8x192xbf16>, vector<192x192xbf16>, vector<8x192xf32> -> vector<8x192xf32>
    %229 = arith.truncf %228 : vector<8x192xf32> to vector<8x192xbf16>
    %cst_184 = arith.constant dense<0.000000e+00> : vector<16x192xf32>
    %230 = tpu.matmul %225, %229, %cst_184 {dimension_numbers = #tpu.dot_dimension_numbers<[1], [0], [0], [1], [0, 0, 1, 1], [], []>} : vector<16x8xbf16>, vector<8x192xbf16>, vector<16x192xf32> -> vector<16x192xf32>
    %231 = arith.addf %223, %230 : vector<16x192xf32>
    %c3_185 = arith.constant 3 : index
    %c0_186 = arith.constant 0 : index
    %c0_187 = arith.constant 0 : index
    %232 = vector.load %arg14[%c3_185, %c0_186, %c0_187] : memref<4x16x8xbf16, #tpu.memory_space<vmem>>, vector<1x16x8xbf16>
    %233 = vector.shape_cast %232 : vector<1x16x8xbf16> to vector<16x8xbf16>
    %c3_188 = arith.constant 3 : index
    %c0_189 = arith.constant 0 : index
    %c0_190 = arith.constant 0 : index
    %234 = vector.load %arg15[%c3_188, %c0_189, %c0_190] : memref<4x192x192xbf16, #tpu.memory_space<vmem>>, vector<1x192x192xbf16>
    %235 = vector.shape_cast %234 : vector<1x192x192xbf16> to vector<192x192xbf16>
    %cst_191 = arith.constant dense<0.000000e+00> : vector<8x192xf32>
    %236 = tpu.matmul %208, %235, %cst_191 {dimension_numbers = #tpu.dot_dimension_numbers<[1], [0], [0], [1], [0, 0, 1, 1], [], []>} : vector<8x192xbf16>, vector<192x192xbf16>, vector<8x192xf32> -> vector<8x192xf32>
    %237 = arith.truncf %236 : vector<8x192xf32> to vector<8x192xbf16>
    %cst_192 = arith.constant dense<0.000000e+00> : vector<16x192xf32>
    %238 = tpu.matmul %233, %237, %cst_192 {dimension_numbers = #tpu.dot_dimension_numbers<[1], [0], [0], [1], [0, 0, 1, 1], [], []>} : vector<16x8xbf16>, vector<8x192xbf16>, vector<16x192xf32> -> vector<16x192xf32>
    %239 = arith.addf %231, %238 : vector<16x192xf32>
    %c0_193 = arith.constant 0 : index
    %c0_194 = arith.constant 0 : index
    %240 = vector.load %arg16[%c0_193, %c0_194] : memref<1x192xf32, #tpu.memory_space<vmem>>, vector<1x192xf32>
    %241 = vector.broadcast %240 : vector<1x192xf32> to vector<16x192xf32>
    %242 = arith.addf %239, %241 : vector<16x192xf32>
    %cst_195 = arith.constant 2.000000e+01 : f32
    %243 = vector.broadcast %cst_195 : f32 to vector<16x192xf32>
    %244 = arith.minimumf %242, %243 : vector<16x192xf32>
    %245 = math.exp %244 : vector<16x192xf32>
    %cst_196 = arith.constant 1.000000e+00 : f32
    %246 = vector.broadcast %cst_196 : f32 to vector<16x192xf32>
    %247 = arith.addf %246, %245 : vector<16x192xf32>
    %248 = arith.mulf %247, %247 : vector<16x192xf32>
    %cst_197 = arith.constant 1.000000e+00 : f32
    %249 = vector.broadcast %cst_197 : f32 to vector<16x192xf32>
    %250 = arith.subf %248, %249 : vector<16x192xf32>
    %cst_198 = arith.constant 1.000000e+00 : f32
    %251 = vector.broadcast %cst_198 : f32 to vector<16x192xf32>
    %252 = arith.addf %248, %251 : vector<16x192xf32>
    %253 = arith.divf %250, %252 : vector<16x192xf32>
    %cst_199 = arith.constant 2.000000e+01 : f32
    %254 = vector.broadcast %cst_199 : f32 to vector<16x192xf32>
    %255 = arith.cmpf ogt, %242, %254 : vector<16x192xf32>
    %cst_200 = arith.constant 1.000000e+00 : f32
    %256 = vector.broadcast %cst_200 : f32 to vector<16x192xf32>
    %257 = arith.select %255, %256, %253 : vector<16x192xi1>, vector<16x192xf32>
    %258 = arith.mulf %242, %257 : vector<16x192xf32>
    %259 = arith.truncf %258 : vector<16x192xf32> to vector<16x192xbf16>
    %c0_201 = arith.constant 0 : index
    %c0_202 = arith.constant 0 : index
    %c0_203 = arith.constant 0 : index
    %260 = vector.load %arg17[%c0_201, %c0_202, %c0_203] : memref<4x32x16xbf16, #tpu.memory_space<vmem>>, vector<1x32x16xbf16>
    %261 = vector.shape_cast %260 : vector<1x32x16xbf16> to vector<32x16xbf16>
    %c0_204 = arith.constant 0 : index
    %c0_205 = arith.constant 0 : index
    %c0_206 = arith.constant 0 : index
    %262 = vector.load %arg18[%c0_204, %c0_205, %c0_206] : memref<4x192x96xbf16, #tpu.memory_space<vmem>>, vector<1x192x96xbf16>
    %263 = vector.shape_cast %262 : vector<1x192x96xbf16> to vector<192x96xbf16>
    %cst_207 = arith.constant dense<0.000000e+00> : vector<16x96xf32>
    %264 = tpu.matmul %259, %263, %cst_207 {dimension_numbers = #tpu.dot_dimension_numbers<[1], [0], [0], [1], [0, 0, 1, 1], [], []>} : vector<16x192xbf16>, vector<192x96xbf16>, vector<16x96xf32> -> vector<16x96xf32>
    %265 = arith.truncf %264 : vector<16x96xf32> to vector<16x96xbf16>
    %cst_208 = arith.constant dense<0.000000e+00> : vector<32x96xf32>
    %266 = tpu.matmul %261, %265, %cst_208 {dimension_numbers = #tpu.dot_dimension_numbers<[1], [0], [0], [1], [0, 0, 1, 1], [], []>} : vector<32x16xbf16>, vector<16x96xbf16>, vector<32x96xf32> -> vector<32x96xf32>
    %c1_209 = arith.constant 1 : index
    %c0_210 = arith.constant 0 : index
    %c0_211 = arith.constant 0 : index
    %267 = vector.load %arg17[%c1_209, %c0_210, %c0_211] : memref<4x32x16xbf16, #tpu.memory_space<vmem>>, vector<1x32x16xbf16>
    %268 = vector.shape_cast %267 : vector<1x32x16xbf16> to vector<32x16xbf16>
    %c1_212 = arith.constant 1 : index
    %c0_213 = arith.constant 0 : index
    %c0_214 = arith.constant 0 : index
    %269 = vector.load %arg18[%c1_212, %c0_213, %c0_214] : memref<4x192x96xbf16, #tpu.memory_space<vmem>>, vector<1x192x96xbf16>
    %270 = vector.shape_cast %269 : vector<1x192x96xbf16> to vector<192x96xbf16>
    %cst_215 = arith.constant dense<0.000000e+00> : vector<16x96xf32>
    %271 = tpu.matmul %259, %270, %cst_215 {dimension_numbers = #tpu.dot_dimension_numbers<[1], [0], [0], [1], [0, 0, 1, 1], [], []>} : vector<16x192xbf16>, vector<192x96xbf16>, vector<16x96xf32> -> vector<16x96xf32>
    %272 = arith.truncf %271 : vector<16x96xf32> to vector<16x96xbf16>
    %cst_216 = arith.constant dense<0.000000e+00> : vector<32x96xf32>
    %273 = tpu.matmul %268, %272, %cst_216 {dimension_numbers = #tpu.dot_dimension_numbers<[1], [0], [0], [1], [0, 0, 1, 1], [], []>} : vector<32x16xbf16>, vector<16x96xbf16>, vector<32x96xf32> -> vector<32x96xf32>
    %274 = arith.addf %266, %273 : vector<32x96xf32>
    %c2_217 = arith.constant 2 : index
    %c0_218 = arith.constant 0 : index
    %c0_219 = arith.constant 0 : index
    %275 = vector.load %arg17[%c2_217, %c0_218, %c0_219] : memref<4x32x16xbf16, #tpu.memory_space<vmem>>, vector<1x32x16xbf16>
    %276 = vector.shape_cast %275 : vector<1x32x16xbf16> to vector<32x16xbf16>
    %c2_220 = arith.constant 2 : index
    %c0_221 = arith.constant 0 : index
    %c0_222 = arith.constant 0 : index
    %277 = vector.load %arg18[%c2_220, %c0_221, %c0_222] : memref<4x192x96xbf16, #tpu.memory_space<vmem>>, vector<1x192x96xbf16>
    %278 = vector.shape_cast %277 : vector<1x192x96xbf16> to vector<192x96xbf16>
    %cst_223 = arith.constant dense<0.000000e+00> : vector<16x96xf32>
    %279 = tpu.matmul %259, %278, %cst_223 {dimension_numbers = #tpu.dot_dimension_numbers<[1], [0], [0], [1], [0, 0, 1, 1], [], []>} : vector<16x192xbf16>, vector<192x96xbf16>, vector<16x96xf32> -> vector<16x96xf32>
    %280 = arith.truncf %279 : vector<16x96xf32> to vector<16x96xbf16>
    %cst_224 = arith.constant dense<0.000000e+00> : vector<32x96xf32>
    %281 = tpu.matmul %276, %280, %cst_224 {dimension_numbers = #tpu.dot_dimension_numbers<[1], [0], [0], [1], [0, 0, 1, 1], [], []>} : vector<32x16xbf16>, vector<16x96xbf16>, vector<32x96xf32> -> vector<32x96xf32>
    %282 = arith.addf %274, %281 : vector<32x96xf32>
    %c3_225 = arith.constant 3 : index
    %c0_226 = arith.constant 0 : index
    %c0_227 = arith.constant 0 : index
    %283 = vector.load %arg17[%c3_225, %c0_226, %c0_227] : memref<4x32x16xbf16, #tpu.memory_space<vmem>>, vector<1x32x16xbf16>
    %284 = vector.shape_cast %283 : vector<1x32x16xbf16> to vector<32x16xbf16>
    %c3_228 = arith.constant 3 : index
    %c0_229 = arith.constant 0 : index
    %c0_230 = arith.constant 0 : index
    %285 = vector.load %arg18[%c3_228, %c0_229, %c0_230] : memref<4x192x96xbf16, #tpu.memory_space<vmem>>, vector<1x192x96xbf16>
    %286 = vector.shape_cast %285 : vector<1x192x96xbf16> to vector<192x96xbf16>
    %cst_231 = arith.constant dense<0.000000e+00> : vector<16x96xf32>
    %287 = tpu.matmul %259, %286, %cst_231 {dimension_numbers = #tpu.dot_dimension_numbers<[1], [0], [0], [1], [0, 0, 1, 1], [], []>} : vector<16x192xbf16>, vector<192x96xbf16>, vector<16x96xf32> -> vector<16x96xf32>
    %288 = arith.truncf %287 : vector<16x96xf32> to vector<16x96xbf16>
    %cst_232 = arith.constant dense<0.000000e+00> : vector<32x96xf32>
    %289 = tpu.matmul %284, %288, %cst_232 {dimension_numbers = #tpu.dot_dimension_numbers<[1], [0], [0], [1], [0, 0, 1, 1], [], []>} : vector<32x16xbf16>, vector<16x96xbf16>, vector<32x96xf32> -> vector<32x96xf32>
    %290 = arith.addf %282, %289 : vector<32x96xf32>
    %c0_233 = arith.constant 0 : index
    %c0_234 = arith.constant 0 : index
    %291 = vector.load %arg19[%c0_233, %c0_234] : memref<1x96xf32, #tpu.memory_space<vmem>>, vector<1x96xf32>
    %292 = vector.broadcast %291 : vector<1x96xf32> to vector<32x96xf32>
    %293 = arith.addf %290, %292 : vector<32x96xf32>
    %294 = arith.negf %293 : vector<32x96xf32>
    %295 = math.exp %294 : vector<32x96xf32>
    %cst_235 = arith.constant 1.000000e+00 : f32
    %296 = vector.broadcast %cst_235 : f32 to vector<32x96xf32>
    %297 = arith.addf %296, %295 : vector<32x96xf32>
    %298 = arith.divf %296, %297 : vector<32x96xf32>
    %c0_236 = arith.constant 0 : index
    %c0_237 = arith.constant 0 : index
    %c0_238 = arith.constant 0 : index
    %299 = vector.load %arg21[%c0_236, %c0_237, %c0_238] : memref<1x32x96xf32, #tpu.memory_space<vmem>>, vector<1x32x96xf32>
    %300 = vector.shape_cast %299 : vector<1x32x96xf32> to vector<32x96xf32>
    %301 = vector.shape_cast %298 : vector<32x96xf32> to vector<1x32x96xf32>
    tpu.vector_store %arg21[%c0_236, %c0_237, %c0_238], %301 {strides = array<i32>} : memref<1x32x96xf32, #tpu.memory_space<vmem>>, vector<1x32x96xf32>,
    return
  }
  func.func @transform_0(%arg0: i32) -> (i32, i32, i32) {
    %c0_i32 = arith.constant 0 : i32
    %c0_i32_0 = arith.constant 0 : i32
    %c0_i32_1 = arith.constant 0 : i32
    return %arg0, %c0_i32, %c0_i32_0 : i32, i32, i32
  }
  func.func @transform_1(%arg0: i32) -> (i32, i32, i32) {
    %c0_i32 = arith.constant 0 : i32
    %c0_i32_0 = arith.constant 0 : i32
    %c0_i32_1 = arith.constant 0 : i32
    %c0_i32_2 = arith.constant 0 : i32
    return %c0_i32, %c0_i32_0, %c0_i32_1 : i32, i32, i32
  }
  func.func @transform_2(%arg0: i32) -> (i32, i32, i32) {
    %c0_i32 = arith.constant 0 : i32
    %c0_i32_0 = arith.constant 0 : i32
    %c0_i32_1 = arith.constant 0 : i32
    %c0_i32_2 = arith.constant 0 : i32
    return %c0_i32, %c0_i32_0, %c0_i32_1 : i32, i32, i32
  }
  func.func @transform_3(%arg0: i32) -> (i32, i32) {
    %c0_i32 = arith.constant 0 : i32
    %c0_i32_0 = arith.constant 0 : i32
    %c0_i32_1 = arith.constant 0 : i32
    return %c0_i32, %c0_i32_0 : i32, i32
  }
  func.func @transform_4(%arg0: i32) -> (i32, i32, i32) {
    %c0_i32 = arith.constant 0 : i32
    %c0_i32_0 = arith.constant 0 : i32
    %c0_i32_1 = arith.constant 0 : i32
    %c0_i32_2 = arith.constant 0 : i32
    return %c0_i32, %c0_i32_0, %c0_i32_1 : i32, i32, i32
  }
  func.func @transform_5(%arg0: i32) -> (i32, i32, i32) {
    %c0_i32 = arith.constant 0 : i32
    %c0_i32_0 = arith.constant 0 : i32
    %c0_i32_1 = arith.constant 0 : i32
    %c0_i32_2 = arith.constant 0 : i32
    return %c0_i32, %c0_i32_0, %c0_i32_1 : i32, i32, i32
  }
  func.func @transform_6(%arg0: i32) -> (i32, i32) {
    %c0_i32 = arith.constant 0 : i32
    %c0_i32_0 = arith.constant 0 : i32
    %c0_i32_1 = arith.constant 0 : i32
    return %c0_i32, %c0_i32_0 : i32, i32
  }
  func.func @transform_7(%arg0: i32) -> (i32, i32, i32) {
    %c0_i32 = arith.constant 0 : i32
    %c0_i32_0 = arith.constant 0 : i32
    %c0_i32_1 = arith.constant 0 : i32
    %c0_i32_2 = arith.constant 0 : i32
    return %c0_i32, %c0_i32_0, %c0_i32_1 : i32, i32, i32
  }
  func.func @transform_8(%arg0: i32) -> (i32, i32, i32) {
    %c0_i32 = arith.constant 0 : i32
    %c0_i32_0 = arith.constant 0 : i32
    %c0_i32_1 = arith.constant 0 : i32
    %c0_i32_2 = arith.constant 0 : i32
    return %c0_i32, %c0_i32_0, %c0_i32_1 : i32, i32, i32
  }
  func.func @transform_9(%arg0: i32) -> (i32, i32) {
    %c0_i32 = arith.constant 0 : i32
    %c0_i32_0 = arith.constant 0 : i32
    %c0_i32_1 = arith.constant 0 : i32
    return %c0_i32, %c0_i32_0 : i32, i32
  }
  func.func @transform_10(%arg0: i32) -> (i32, i32, i32) {
    %c0_i32 = arith.constant 0 : i32
    %c0_i32_0 = arith.constant 0 : i32
    %c0_i32_1 = arith.constant 0 : i32
    %c0_i32_2 = arith.constant 0 : i32
    return %c0_i32, %c0_i32_0, %c0_i32_1 : i32, i32, i32
  }
  func.func @transform_11(%arg0: i32) -> (i32, i32, i32) {
    %c0_i32 = arith.constant 0 : i32
    %c0_i32_0 = arith.constant 0 : i32
    %c0_i32_1 = arith.constant 0 : i32
    %c0_i32_2 = arith.constant 0 : i32
    return %c0_i32, %c0_i32_0, %c0_i32_1 : i32, i32, i32
  }
  func.func @transform_12(%arg0: i32) -> (i32, i32) {
    %c0_i32 = arith.constant 0 : i32
    %c0_i32_0 = arith.constant 0 : i32
    %c0_i32_1 = arith.constant 0 : i32
    return %c0_i32, %c0_i32_0 : i32, i32
  }
  func.func @transform_13(%arg0: i32) -> (i32, i32, i32) {
    %c0_i32 = arith.constant 0 : i32
    %c0_i32_0 = arith.constant 0 : i32
    %c0_i32_1 = arith.constant 0 : i32
    %c0_i32_2 = arith.constant 0 : i32
    return %c0_i32, %c0_i32_0, %c0_i32_1 : i32, i32, i32
  }
  func.func @transform_14(%arg0: i32) -> (i32, i32, i32) {
    %c0_i32 = arith.constant 0 : i32
    %c0_i32_0 = arith.constant 0 : i32
    %c0_i32_1 = arith.constant 0 : i32
    %c0_i32_2 = arith.constant 0 : i32
    return %c0_i32, %c0_i32_0, %c0_i32_1 : i32, i32, i32
  }
  func.func @transform_15(%arg0: i32) -> (i32, i32) {
    %c0_i32 = arith.constant 0 : i32
    %c0_i32_0 = arith.constant 0 : i32
    %c0_i32_1 = arith.constant 0 : i32
    return %c0_i32, %c0_i32_0 : i32, i32
  }
  func.func @transform_16(%arg0: i32) -> (i32, i32, i32) {
    %c0_i32 = arith.constant 0 : i32
    %c0_i32_0 = arith.constant 0 : i32
    %c0_i32_1 = arith.constant 0 : i32
    %c0_i32_2 = arith.constant 0 : i32
    return %c0_i32, %c0_i32_0, %c0_i32_1 : i32, i32, i32
  }
  func.func @transform_17(%arg0: i32) -> (i32, i32, i32) {
    %c0_i32 = arith.constant 0 : i32
    %c0_i32_0 = arith.constant 0 : i32
    %c0_i32_1 = arith.constant 0 : i32
    %c0_i32_2 = arith.constant 0 : i32
    return %c0_i32, %c0_i32_0, %c0_i32_1 : i32, i32, i32
  }
  func.func @transform_18(%arg0: i32) -> (i32, i32) {
    %c0_i32 = arith.constant 0 : i32
    %c0_i32_0 = arith.constant 0 : i32
    %c0_i32_1 = arith.constant 0 : i32
    return %c0_i32, %c0_i32_0 : i32, i32
  }
  func.func @transform_19(%arg0: i32) -> (i32, i32, i32) {
    %c0_i32 = arith.constant 0 : i32
    %c0_i32_0 = arith.constant 0 : i32
    %c0_i32_1 = arith.constant 0 : i32
    return %arg0, %c0_i32, %c0_i32_0 : i32, i32, i32
  }
  func.func @transform_20(%arg0: i32) -> (i32, i32, i32) {
    %c0_i32 = arith.constant 0 : i32
    %c0_i32_0 = arith.constant 0 : i32
    %c0_i32_1 = arith.constant 0 : i32
    return %arg0, %c0_i32, %c0_i32_0 : i32, i32, i32
  }
}

</mosaic_0001>

<llo_original>
// kernel: autoencoder_forward.1
$region0: #{autoencoder_forward.1}
  #allocation0 [shape = 'u32[]', space=smem, size = 0x4, offset = 0x4, fixed_abs, tag = 'smem constant byte address 0x4 - core index']
  #allocation1 [shape = 'u32[72,128]{1,0:T(1,128)}', space=vmem, size = 0x9000, scoped, tag = 'internal scratch']
  %s0 = inlined_call_operand.vmem [shape: bf16[2,32,96], index: 0, kind: input, shape index: {}]
  %s1 = inlined_call_operand.vmem [shape: bf16[4,16,32], index: 1, kind: input, shape index: {}]
  %s2 = inlined_call_operand.vmem [shape: bf16[4,96,192], index: 2, kind: input, shape index: {}]
  %s3 = inlined_call_operand.vmem [shape: f32[1,192], index: 3, kind: input, shape index: {}]
  %s4 = inlined_call_operand.vmem [shape: bf16[4,8,16], index: 4, kind: input, shape index: {}]
  %s5 = inlined_call_operand.vmem [shape: bf16[4,192,192], index: 5, kind: input, shape index: {}]
  %s6 = inlined_call_operand.vmem [shape: f32[1,192], index: 6, kind: input, shape index: {}]
  %s7 = inlined_call_operand.vmem [shape: bf16[4,4,8], index: 7, kind: input, shape index: {}]
  %s8 = inlined_call_operand.vmem [shape: bf16[4,192,192], index: 8, kind: input, shape index: {}]
  %s9 = inlined_call_operand.vmem [shape: f32[1,192], index: 9, kind: input, shape index: {}]
  %s10 = inlined_call_operand.vmem [shape: bf16[4,8,4], index: 10, kind: input, shape index: {}]
  %s11 = inlined_call_operand.vmem [shape: bf16[4,192,192], index: 11, kind: input, shape index: {}]
  %s12 = inlined_call_operand.vmem [shape: f32[1,192], index: 12, kind: input, shape index: {}]
  %s13 = inlined_call_operand.vmem [shape: bf16[4,16,8], index: 13, kind: input, shape index: {}]
  %s14 = inlined_call_operand.vmem [shape: bf16[4,192,192], index: 14, kind: input, shape index: {}]
  %s15 = inlined_call_operand.vmem [shape: f32[1,192], index: 15, kind: input, shape index: {}]
  %s16 = inlined_call_operand.vmem [shape: bf16[4,32,16], index: 16, kind: input, shape index: {}]
  %s17 = inlined_call_operand.vmem [shape: bf16[4,192,96], index: 17, kind: input, shape index: {}]
  %s18 = inlined_call_operand.vmem [shape: f32[1,96], index: 18, kind: input, shape index: {}]
  %s19 = inlined_call_operand.vmem [shape: f32[2,4,192], index: 19, kind: output, shape index: {0}]
  %s20 = inlined_call_operand.vmem [shape: f32[2,32,96], index: 20, kind: output, shape index: {1}]
  %21 = xla_tuple %s19, %s20
  %s22 = sld [smem:[#allocation0]]
  $region117: #{autoencoder_forward.1} parent=0
    _
  %s24 = ssub.s32 1, %s22
  %s25 = scalar_select 0, %s24, %s22
  loop: start=0, step=1, limit=4
  $region2: #{autoencoder_forward.1} parent=0 // loop_pre_header
    _
  $region3: #{autoencoder_forward.1} parent=0 // loop_header
    %s27 = sphi 0, %s31
    %p28 = scmp.ge.s32.totalorder %s27, 4
    %s37 = sphi 0, %s39
    %s40 = sphi 0, %s37
    %s41 = sphi 0, %s40
    %s57 = sphi 0, %s41
    %s61 = sphi 0, %s61
    %s63 = sphi 0, %s61
    %s64 = sphi 0, %s63
    %s78 = sphi 0, %s64
    %s82 = sphi 0, %s82
    %s84 = sphi 0, %s82
    %s85 = sphi 0, %s84
    %s99 = sphi 0, %s85
    %s103 = sphi 0, %s103
    %s105 = sphi 0, %s103
    %s106 = sphi 0, %s105
    %s120 = sphi 0, %s106
    %s124 = sphi 0, %s124
    %s126 = sphi 0, %s124
    %s127 = sphi 0, %s126
    %s141 = sphi 0, %s127
    %s145 = sphi 0, %s145
    %s147 = sphi 0, %s145
    %s148 = sphi 0, %s147
    %s162 = sphi 0, %s148
    %s166 = sphi 0, %s166
    %s168 = sphi 0, %s166
    %s169 = sphi 0, %s168
    %s183 = sphi 0, %s169
    %s187 = sphi 0, %s187
    %s189 = sphi 0, %s187
    %s190 = sphi 0, %s189
    %s204 = sphi 0, %s190
    %s208 = sphi 0, %s208
    %s210 = sphi 0, %s208
    %s211 = sphi 0, %s210
    %s225 = sphi 0, %s211
    %s229 = sphi 0, %s229
    %s231 = sphi 0, %s229
    %s232 = sphi 0, %s231
    %s246 = sphi 0, %s232
    %s250 = sphi 0, %s250
    %s252 = sphi 0, %s250
    %s253 = sphi 0, %s252
    %s267 = sphi 0, %s253
    %s271 = sphi 0, %s271
    %s273 = sphi 0, %s271
    %s274 = sphi 0, %s273
    %s288 = sphi 0, %s274
    %s292 = sphi 0, %s292
    %s294 = sphi 0, %s292
    %s295 = sphi 0, %s294
    %s309 = sphi 0, %s295
    %s313 = sphi 0, %s313
    %s315 = sphi 0, %s313
    %s316 = sphi 0, %s315
    %s330 = sphi 0, %s316
    %s334 = sphi 0, %s334
    %s336 = sphi 0, %s334
    %s337 = sphi 0, %s336
    %s351 = sphi 0, %s337
    %s355 = sphi 0, %s355
    %s357 = sphi 0, %s355
    %s358 = sphi 0, %s357
    %s372 = sphi 0, %s358
    %s376 = sphi 0, %s376
    %s378 = sphi 0, %s376
    %s379 = sphi 0, %s378
    %s393 = sphi 0, %s379
    %s397 = sphi 0, %s397
    %s399 = sphi 0, %s397
    %s400 = sphi 0, %s399
    %s414 = sphi 0, %s400
    %s418 = sphi 0, %s418
    %s420 = sphi 0, %s418
    %s421 = sphi 0, %s420
    %s435 = sphi 0, %s421
    %s441 = sphi 0, %s443
    %s444 = sphi 0, %s441
    %s445 = sphi 0, %s444
    %s461 = sphi 0, %s445
    %s467 = sphi 0, %s469
    %s470 = sphi 0, %s467
    %s471 = sphi 0, %s470
    %s487 = sphi 0, %s471
  $region4: #{autoencoder_forward.1} parent=0 // loop_header_branch
    %30 = sbr.rel (%p28) target = $region8
  $region5: #{autoencoder_forward.1} parent=0 // loop_body
    %s32 = ssub.s32 %s27, 1
    %s33 = ssub.s32 %s27, 2
    %s34 = sadd.s32 %s27, 1
    %s35 = ssub.s32 %s27, %s34
    %p36 = scmp.eq.s32.totalorder %s35, 0
    %s38 = sadd.s32 %s37, 1
    %s39 = scalar_select %p36, %s37, %s38
    %p42 = pneg %p36
    %p43 = scmp.eq.s32.totalorder %s27, 1
    %p44 = por %p42, %p43
    %p45 = scmp.ne.s32.totalorder %s37, %s40
    %p46 = scmp.eq.s32.totalorder %s27, 0
    %p47 = por %p45, %p46
    %p48 = scmp.ne.s32.totalorder %s37, %s40
    %p49 = scmp.eq.s32.totalorder %s32, 1
    %p50 = por %p48, %p49
    %p51 = scmp.ne.s32.totalorder %s40, %s41
    %p52 = scmp.eq.s32.totalorder %s32, 0
    %p53 = por %p51, %p52
    %p54 = scmp.ne.s32.totalorder %s40, %s41
    %p55 = scmp.eq.s32.totalorder %s33, 1
    %p56 = por %p54, %p55
    %p58 = scmp.ne.s32.totalorder %s41, %s57
    %p59 = scmp.eq.s32.totalorder %s33, 0
    %p60 = por %p58, %p59
    %s62 = sadd.s32 %s61, 1
    %p65 = scmp.eq.s32.totalorder %s27, 1
    %p66 = scmp.ne.s32.totalorder %s61, %s63
    %p67 = scmp.eq.s32.totalorder %s27, 0
    %p68 = por %p66, %p67
    %p69 = scmp.ne.s32.totalorder %s61, %s63
    %p70 = scmp.eq.s32.totalorder %s32, 1
    %p71 = por %p69, %p70
    %p72 = scmp.ne.s32.totalorder %s63, %s64
    %p73 = scmp.eq.s32.totalorder %s32, 0
    %p74 = por %p72, %p73
    %p75 = scmp.ne.s32.totalorder %s63, %s64
    %p76 = scmp.eq.s32.totalorder %s33, 1
    %p77 = por %p75, %p76
    %p79 = scmp.ne.s32.totalorder %s64, %s78
    %p80 = scmp.eq.s32.totalorder %s33, 0
    %p81 = por %p79, %p80
    %s83 = sadd.s32 %s82, 1
    %p86 = scmp.eq.s32.totalorder %s27, 1
    %p87 = scmp.ne.s32.totalorder %s82, %s84
    %p88 = scmp.eq.s32.totalorder %s27, 0
    %p89 = por %p87, %p88
    %p90 = scmp.ne.s32.totalorder %s82, %s84
    %p91 = scmp.eq.s32.totalorder %s32, 1
    %p92 = por %p90, %p91
    %p93 = scmp.ne.s32.totalorder %s84, %s85
    %p94 = scmp.eq.s32.totalorder %s32, 0
    %p95 = por %p93, %p94
    %p96 = scmp.ne.s32.totalorder %s84, %s85
    %p97 = scmp.eq.s32.totalorder %s33, 1
    %p98 = por %p96, %p97
    %p100 = scmp.ne.s32.totalorder %s85, %s99
    %p101 = scmp.eq.s32.totalorder %s33, 0
    %p102 = por %p100, %p101
    %s104 = sadd.s32 %s103, 1
    %p107 = scmp.eq.s32.totalorder %s27, 1
    %p108 = scmp.ne.s32.totalorder %s103, %s105
    %p109 = scmp.eq.s32.totalorder %s27, 0
    %p110 = por %p108, %p109
    %p111 = scmp.ne.s32.totalorder %s103, %s105
    %p112 = scmp.eq.s32.totalorder %s32, 1
    %p113 = por %p111, %p112
    %p114 = scmp.ne.s32.totalorder %s105, %s106
    %p115 = scmp.eq.s32.totalorder %s32, 0
    %p116 = por %p114, %p115
    %p117 = scmp.ne.s32.totalorder %s105, %s106
    %p118 = scmp.eq.s32.totalorder %s33, 1
    %p119 = por %p117, %p118
    %p121 = scmp.ne.s32.totalorder %s106, %s120
    %p122 = scmp.eq.s32.totalorder %s33, 0
    %p123 = por %p121, %p122
    %s125 = sadd.s32 %s124, 1
    %p128 = scmp.eq.s32.totalorder %s27, 1
    %p129 = scmp.ne.s32.totalorder %s124, %s126
    %p130 = scmp.eq.s32.totalorder %s27, 0
    %p131 = por %p129, %p130
    %p132 = scmp.ne.s32.totalorder %s124, %s126
    %p133 = scmp.eq.s32.totalorder %s32, 1
    %p134 = por %p132, %p133
    %p135 = scmp.ne.s32.totalorder %s126, %s127
    %p136 = scmp.eq.s32.totalorder %s32, 0
    %p137 = por %p135, %p136
    %p138 = scmp.ne.s32.totalorder %s126, %s127
    %p139 = scmp.eq.s32.totalorder %s33, 1
    %p140 = por %p138, %p139
    %p142 = scmp.ne.s32.totalorder %s127, %s141
    %p143 = scmp.eq.s32.totalorder %s33, 0
    %p144 = por %p142, %p143
    %s146 = sadd.s32 %s145, 1
    %p149 = scmp.eq.s32.totalorder %s27, 1
    %p150 = scmp.ne.s32.totalorder %s145, %s147
    %p151 = scmp.eq.s32.totalorder %s27, 0
    %p152 = por %p150, %p151
    %p153 = scmp.ne.s32.totalorder %s145, %s147
    %p154 = scmp.eq.s32.totalorder %s32, 1
    %p155 = por %p153, %p154
    %p156 = scmp.ne.s32.totalorder %s147, %s148
    %p157 = scmp.eq.s32.totalorder %s32, 0
    %p158 = por %p156, %p157
    %p159 = scmp.ne.s32.totalorder %s147, %s148
    %p160 = scmp.eq.s32.totalorder %s33, 1
    %p161 = por %p159, %p160
    %p163 = scmp.ne.s32.totalorder %s148, %s162
    %p164 = scmp.eq.s32.totalorder %s33, 0
    %p165 = por %p163, %p164
    %s167 = sadd.s32 %s166, 1
    %p170 = scmp.eq.s32.totalorder %s27, 1
    %p171 = scmp.ne.s32.totalorder %s166, %s168
    %p172 = scmp.eq.s32.totalorder %s27, 0
    %p173 = por %p171, %p172
    %p174 = scmp.ne.s32.totalorder %s166, %s168
    %p175 = scmp.eq.s32.totalorder %s32, 1
    %p176 = por %p174, %p175
    %p177 = scmp.ne.s32.totalorder %s168, %s169
    %p178 = scmp.eq.s32.totalorder %s32, 0
    %p179 = por %p177, %p178
    %p180 = scmp.ne.s32.totalorder %s168, %s169
    %p181 = scmp.eq.s32.totalorder %s33, 1
    %p182 = por %p180, %p181
    %p184 = scmp.ne.s32.totalorder %s169, %s183
    %p185 = scmp.eq.s32.totalorder %s33, 0
    %p186 = por %p184, %p185
    %s188 = sadd.s32 %s187, 1
    %p191 = scmp.eq.s32.totalorder %s27, 1
    %p192 = scmp.ne.s32.totalorder %s187, %s189
    %p193 = scmp.eq.s32.totalorder %s27, 0
    %p194 = por %p192, %p193
    %p195 = scmp.ne.s32.totalorder %s187, %s189
    %p196 = scmp.eq.s32.totalorder %s32, 1
    %p197 = por %p195, %p196
    %p198 = scmp.ne.s32.totalorder %s189, %s190
    %p199 = scmp.eq.s32.totalorder %s32, 0
    %p200 = por %p198, %p199
    %p201 = scmp.ne.s32.totalorder %s189, %s190
    %p202 = scmp.eq.s32.totalorder %s33, 1
    %p203 = por %p201, %p202
    %p205 = scmp.ne.s32.totalorder %s190, %s204
    %p206 = scmp.eq.s32.totalorder %s33, 0
    %p207 = por %p205, %p206
    %s209 = sadd.s32 %s208, 1
    %p212 = scmp.eq.s32.totalorder %s27, 1
    %p213 = scmp.ne.s32.totalorder %s208, %s210
    %p214 = scmp.eq.s32.totalorder %s27, 0
    %p215 = por %p213, %p214
    %p216 = scmp.ne.s32.totalorder %s208, %s210
    %p217 = scmp.eq.s32.totalorder %s32, 1
    %p218 = por %p216, %p217
    %p219 = scmp.ne.s32.totalorder %s210, %s211
    %p220 = scmp.eq.s32.totalorder %s32, 0
    %p221 = por %p219, %p220
    %p222 = scmp.ne.s32.totalorder %s210, %s211
    %p223 = scmp.eq.s32.totalorder %s33, 1
    %p224 = por %p222, %p223
    %p226 = scmp.ne.s32.totalorder %s211, %s225
    %p227 = scmp.eq.s32.totalorder %s33, 0
    %p228 = por %p226, %p227
    %s230 = sadd.s32 %s229, 1
    %p233 = scmp.eq.s32.totalorder %s27, 1
    %p234 = scmp.ne.s32.totalorder %s229, %s231
    %p235 = scmp.eq.s32.totalorder %s27, 0
    %p236 = por %p234, %p235
    %p237 = scmp.ne.s32.totalorder %s229, %s231
    %p238 = scmp.eq.s32.totalorder %s32, 1
    %p239 = por %p237, %p238
    %p240 = scmp.ne.s32.totalorder %s231, %s232
    %p241 = scmp.eq.s32.totalorder %s32, 0
    %p242 = por %p240, %p241
    %p243 = scmp.ne.s32.totalorder %s231, %s232
    %p244 = scmp.eq.s32.totalorder %s33, 1
    %p245 = por %p243, %p244
    %p247 = scmp.ne.s32.totalorder %s232, %s246
    %p248 = scmp.eq.s32.totalorder %s33, 0
    %p249 = por %p247, %p248
    %s251 = sadd.s32 %s250, 1
    %p254 = scmp.eq.s32.totalorder %s27, 1
    %p255 = scmp.ne.s32.totalorder %s250, %s252
    %p256 = scmp.eq.s32.totalorder %s27, 0
    %p257 = por %p255, %p256
    %p258 = scmp.ne.s32.totalorder %s250, %s252
    %p259 = scmp.eq.s32.totalorder %s32, 1
    %p260 = por %p258, %p259
    %p261 = scmp.ne.s32.totalorder %s252, %s253
    %p262 = scmp.eq.s32.totalorder %s32, 0
    %p263 = por %p261, %p262
    %p264 = scmp.ne.s32.totalorder %s252, %s253
    %p265 = scmp.eq.s32.totalorder %s33, 1
    %p266 = por %p264, %p265
    %p268 = scmp.ne.s32.totalorder %s253, %s267
    %p269 = scmp.eq.s32.totalorder %s33, 0
    %p270 = por %p268, %p269
    %s272 = sadd.s32 %s271, 1
    %p275 = scmp.eq.s32.totalorder %s27, 1
    %p276 = scmp.ne.s32.totalorder %s271, %s273
    %p277 = scmp.eq.s32.totalorder %s27, 0
    %p278 = por %p276, %p277
    %p279 = scmp.ne.s32.totalorder %s271, %s273
    %p280 = scmp.eq.s32.totalorder %s32, 1
    %p281 = por %p279, %p280
    %p282 = scmp.ne.s32.totalorder %s273, %s274
    %p283 = scmp.eq.s32.totalorder %s32, 0
    %p284 = por %p282, %p283
    %p285 = scmp.ne.s32.totalorder %s273, %s274
    %p286 = scmp.eq.s32.totalorder %s33, 1
    %p287 = por %p285, %p286
    %p289 = scmp.ne.s32.totalorder %s274, %s288
    %p290 = scmp.eq.s32.totalorder %s33, 0
    %p291 = por %p289, %p290
    %s293 = sadd.s32 %s292, 1
    %p296 = scmp.eq.s32.totalorder %s27, 1
    %p297 = scmp.ne.s32.totalorder %s292, %s294
    %p298 = scmp.eq.s32.totalorder %s27, 0
    %p299 = por %p297, %p298
    %p300 = scmp.ne.s32.totalorder %s292, %s294
    %p301 = scmp.eq.s32.totalorder %s32, 1
    %p302 = por %p300, %p301
    %p303 = scmp.ne.s32.totalorder %s294, %s295
    %p304 = scmp.eq.s32.totalorder %s32, 0
    %p305 = por %p303, %p304
    %p306 = scmp.ne.s32.totalorder %s294, %s295
    %p307 = scmp.eq.s32.totalorder %s33, 1
    %p308 = por %p306, %p307
    %p310 = scmp.ne.s32.totalorder %s295, %s309
    %p311 = scmp.eq.s32.totalorder %s33, 0
    %p312 = por %p310, %p311
    %s314 = sadd.s32 %s313, 1
    %p317 = scmp.eq.s32.totalorder %s27, 1
    %p318 = scmp.ne.s32.totalorder %s313, %s315
    %p319 = scmp.eq.s32.totalorder %s27, 0
    %p320 = por %p318, %p319
    %p321 = scmp.ne.s32.totalorder %s313, %s315
    %p322 = scmp.eq.s32.totalorder %s32, 1
    %p323 = por %p321, %p322
    %p324 = scmp.ne.s32.totalorder %s315, %s316
    %p325 = scmp.eq.s32.totalorder %s32, 0
    %p326 = por %p324, %p325
    %p327 = scmp.ne.s32.totalorder %s315, %s316
    %p328 = scmp.eq.s32.totalorder %s33, 1
    %p329 = por %p327, %p328
    %p331 = scmp.ne.s32.totalorder %s316, %s330
    %p332 = scmp.eq.s32.totalorder %s33, 0
    %p333 = por %p331, %p332
    %s335 = sadd.s32 %s334, 1
    %p338 = scmp.eq.s32.totalorder %s27, 1
    %p339 = scmp.ne.s32.totalorder %s334, %s336
    %p340 = scmp.eq.s32.totalorder %s27, 0
    %p341 = por %p339, %p340
    %p342 = scmp.ne.s32.totalorder %s334, %s336
    %p343 = scmp.eq.s32.totalorder %s32, 1
    %p344 = por %p342, %p343
    %p345 = scmp.ne.s32.totalorder %s336, %s337
    %p346 = scmp.eq.s32.totalorder %s32, 0
    %p347 = por %p345, %p346
    %p348 = scmp.ne.s32.totalorder %s336, %s337
    %p349 = scmp.eq.s32.totalorder %s33, 1
    %p350 = por %p348, %p349
    %p352 = scmp.ne.s32.totalorder %s337, %s351
    %p353 = scmp.eq.s32.totalorder %s33, 0
    %p354 = por %p352, %p353
    %s356 = sadd.s32 %s355, 1
    %p359 = scmp.eq.s32.totalorder %s27, 1
    %p360 = scmp.ne.s32.totalorder %s355, %s357
    %p361 = scmp.eq.s32.totalorder %s27, 0
    %p362 = por %p360, %p361
    %p363 = scmp.ne.s32.totalorder %s355, %s357
    %p364 = scmp.eq.s32.totalorder %s32, 1
    %p365 = por %p363, %p364
    %p366 = scmp.ne.s32.totalorder %s357, %s358
    %p367 = scmp.eq.s32.totalorder %s32, 0
    %p368 = por %p366, %p367
    %p369 = scmp.ne.s32.totalorder %s357, %s358
    %p370 = scmp.eq.s32.totalorder %s33, 1
    %p371 = por %p369, %p370
    %p373 = scmp.ne.s32.totalorder %s358, %s372
    %p374 = scmp.eq.s32.totalorder %s33, 0
    %p375 = por %p373, %p374
    %s377 = sadd.s32 %s376, 1
    %p380 = scmp.eq.s32.totalorder %s27, 1
    %p381 = scmp.ne.s32.totalorder %s376, %s378
    %p382 = scmp.eq.s32.totalorder %s27, 0
    %p383 = por %p381, %p382
    %p384 = scmp.ne.s32.totalorder %s376, %s378
    %p385 = scmp.eq.s32.totalorder %s32, 1
    %p386 = por %p384, %p385
    %p387 = scmp.ne.s32.totalorder %s378, %s379
    %p388 = scmp.eq.s32.totalorder %s32, 0
    %p389 = por %p387, %p388
    %p390 = scmp.ne.s32.totalorder %s378, %s379
    %p391 = scmp.eq.s32.totalorder %s33, 1
    %p392 = por %p390, %p391
    %p394 = scmp.ne.s32.totalorder %s379, %s393
    %p395 = scmp.eq.s32.totalorder %s33, 0
    %p396 = por %p394, %p395
    %s398 = sadd.s32 %s397, 1
    %p401 = scmp.eq.s32.totalorder %s27, 1
    %p402 = scmp.ne.s32.totalorder %s397, %s399
    %p403 = scmp.eq.s32.totalorder %s27, 0
    %p404 = por %p402, %p403
    %p405 = scmp.ne.s32.totalorder %s397, %s399
    %p406 = scmp.eq.s32.totalorder %s32, 1
    %p407 = por %p405, %p406
    %p408 = scmp.ne.s32.totalorder %s399, %s400
    %p409 = scmp.eq.s32.totalorder %s32, 0
    %p410 = por %p408, %p409
    %p411 = scmp.ne.s32.totalorder %s399, %s400
    %p412 = scmp.eq.s32.totalorder %s33, 1
    %p413 = por %p411, %p412
    %p415 = scmp.ne.s32.totalorder %s400, %s414
    %p416 = scmp.eq.s32.totalorder %s33, 0
    %p417 = por %p415, %p416
    %s419 = sadd.s32 %s418, 1
    %p422 = scmp.eq.s32.totalorder %s27, 1
    %p423 = scmp.ne.s32.totalorder %s418, %s420
    %p424 = scmp.eq.s32.totalorder %s27, 0
    %p425 = por %p423, %p424
    %p426 = scmp.ne.s32.totalorder %s418, %s420
    %p427 = scmp.eq.s32.totalorder %s32, 1
    %p428 = por %p426, %p427
    %p429 = scmp.ne.s32.totalorder %s420, %s421
    %p430 = scmp.eq.s32.totalorder %s32, 0
    %p431 = por %p429, %p430
    %p432 = scmp.ne.s32.totalorder %s420, %s421
    %p433 = scmp.eq.s32.totalorder %s33, 1
    %p434 = por %p432, %p433
    %p436 = scmp.ne.s32.totalorder %s421, %s435
    %p437 = scmp.eq.s32.totalorder %s33, 0
    %p438 = por %p436, %p437
    %s439 = ssub.s32 %s27, %s34
    %p440 = scmp.eq.s32.totalorder %s439, 0
    %s442 = sadd.s32 %s441, 1
    %s443 = scalar_select %p440, %s441, %s442
    %p446 = pneg %p440
    %p447 = scmp.eq.s32.totalorder %s27, 1
    %p448 = por %p446, %p447
    %p449 = scmp.ne.s32.totalorder %s441, %s444
    %p450 = scmp.eq.s32.totalorder %s27, 0
    %p451 = por %p449, %p450
    %p452 = scmp.ne.s32.totalorder %s441, %s444
    %p453 = scmp.eq.s32.totalorder %s32, 1
    %p454 = por %p452, %p453
    %p455 = scmp.ne.s32.totalorder %s444, %s445
    %p456 = scmp.eq.s32.totalorder %s32, 0
    %p457 = por %p455, %p456
    %p458 = scmp.ne.s32.totalorder %s444, %s445
    %p459 = scmp.eq.s32.totalorder %s33, 1
    %p460 = por %p458, %p459
    %p462 = scmp.ne.s32.totalorder %s445, %s461
    %p463 = scmp.eq.s32.totalorder %s33, 0
    %p464 = por %p462, %p463
    %s465 = ssub.s32 %s27, %s34
    %p466 = scmp.eq.s32.totalorder %s465, 0
    %s468 = sadd.s32 %s467, 1
    %s469 = scalar_select %p466, %s467, %s468
    %p472 = pneg %p466
    %p473 = scmp.eq.s32.totalorder %s27, 1
    %p474 = por %p472, %p473
    %p475 = scmp.ne.s32.totalorder %s467, %s470
    %p476 = scmp.eq.s32.totalorder %s27, 0
    %p477 = por %p475, %p476
    %p478 = scmp.ne.s32.totalorder %s467, %s470
    %p479 = scmp.eq.s32.totalorder %s32, 1
    %p480 = por %p478, %p479
    %p481 = scmp.ne.s32.totalorder %s470, %s471
    %p482 = scmp.eq.s32.totalorder %s32, 0
    %p483 = por %p481, %p482
    %p484 = scmp.ne.s32.totalorder %s470, %s471
    %p485 = scmp.eq.s32.totalorder %s33, 1
    %p486 = por %p484, %p485
    %p488 = scmp.ne.s32.totalorder %s471, %s487
    %p489 = scmp.eq.s32.totalorder %s33, 0
    %p490 = por %p488, %p489
    %p491 = scmp.le.s32.totalorder 1, %s27
    %p492 = scmp.lt.s32.totalorder %s27, 3
    %p493 = pnand %p491, %p492
    %p494 = pneg %p493
    // Predicated region
    $region9: #{autoencoder_forward.1} parent=5 // pred_check
      _
    $region10: #{autoencoder_forward.1} parent=5 // pred_check_branch
      %496 = sbr.rel (%p493) target = $region12
    $region11: #{autoencoder_forward.1} parent=5 // pred_region
      %s497 = ssub.s32 %s27, 1
      // Predicated region
      $region13: #{autoencoder_forward.1} parent=11 // pred_check
        %p498 = pneg %p74
      $region14: #{autoencoder_forward.1} parent=11 // pred_check_branch
        %500 = sbr.rel (%p498) target = $region16
      $region15: #{autoencoder_forward.1} parent=11 // pred_region
        _
      $region16: #{autoencoder_forward.1} parent=11 // pred_fallthru
        _
      // Predicated region
      $region17: #{autoencoder_forward.1} parent=11 // pred_check
        %p501 = pneg %p95
      $region18: #{autoencoder_forward.1} parent=11 // pred_check_branch
        %503 = sbr.rel (%p501) target = $region20
      $region19: #{autoencoder_forward.1} parent=11 // pred_region
        _
      $region20: #{autoencoder_forward.1} parent=11 // pred_fallthru
        _
      // Predicated region
      $region21: #{autoencoder_forward.1} parent=11 // pred_check
        %p504 = pneg %p116
      $region22: #{autoencoder_forward.1} parent=11 // pred_check_branch
        %506 = sbr.rel (%p504) target = $region24
      $region23: #{autoencoder_forward.1} parent=11 // pred_region
        _
      $region24: #{autoencoder_forward.1} parent=11 // pred_fallthru
        _
      // Predicated region
      $region25: #{autoencoder_forward.1} parent=11 // pred_check
        %p507 = pneg %p137
      $region26: #{autoencoder_forward.1} parent=11 // pred_check_branch
        %509 = sbr.rel (%p507) target = $region28
      $region27: #{autoencoder_forward.1} parent=11 // pred_region
        _
      $region28: #{autoencoder_forward.1} parent=11 // pred_fallthru
        _
      // Predicated region
      $region29: #{autoencoder_forward.1} parent=11 // pred_check
        %p510 = pneg %p158
      $region30: #{autoencoder_forward.1} parent=11 // pred_check_branch
        %512 = sbr.rel (%p510) target = $region32
      $region31: #{autoencoder_forward.1} parent=11 // pred_region
        _
      $region32: #{autoencoder_forward.1} parent=11 // pred_fallthru
        _
      // Predicated region
      $region33: #{autoencoder_forward.1} parent=11 // pred_check
        %p513 = pneg %p179
      $region34: #{autoencoder_forward.1} parent=11 // pred_check_branch
        %515 = sbr.rel (%p513) target = $region36
      $region35: #{autoencoder_forward.1} parent=11 // pred_region
        _
      $region36: #{autoencoder_forward.1} parent=11 // pred_fallthru
        _
      // Predicated region
      $region37: #{autoencoder_forward.1} parent=11 // pred_check
        %p516 = pneg %p200
      $region38: #{autoencoder_forward.1} parent=11 // pred_check_branch
        %518 = sbr.rel (%p516) target = $region40
      $region39: #{autoencoder_forward.1} parent=11 // pred_region
        _
      $region40: #{autoencoder_forward.1} parent=11 // pred_fallthru
        _
      // Predicated region
      $region41: #{autoencoder_forward.1} parent=11 // pred_check
        %p519 = pneg %p221
      $region42: #{autoencoder_forward.1} parent=11 // pred_check_branch
        %521 = sbr.rel (%p519) target = $region44
      $region43: #{autoencoder_forward.1} parent=11 // pred_region
        _
      $region44: #{autoencoder_forward.1} parent=11 // pred_fallthru
        _
      // Predicated region
      $region45: #{autoencoder_forward.1} parent=11 // pred_check
        %p522 = pneg %p242
      $region46: #{autoencoder_forward.1} parent=11 // pred_check_branch
        %524 = sbr.rel (%p522) target = $region48
      $region47: #{autoencoder_forward.1} parent=11 // pred_region
        _
      $region48: #{autoencoder_forward.1} parent=11 // pred_fallthru
        _
      // Predicated region
      $region49: #{autoencoder_forward.1} parent=11 // pred_check
        %p525 = pneg %p263
      $region50: #{autoencoder_forward.1} parent=11 // pred_check_branch
        %527 = sbr.rel (%p525) target = $region52
      $region51: #{autoencoder_forward.1} parent=11 // pred_region
        _
      $region52: #{autoencoder_forward.1} parent=11 // pred_fallthru
        _
      // Predicated region
      $region53: #{autoencoder_forward.1} parent=11 // pred_check
        %p528 = pneg %p284
      $region54: #{autoencoder_forward.1} parent=11 // pred_check_branch
        %530 = sbr.rel (%p528) target = $region56
      $region55: #{autoencoder_forward.1} parent=11 // pred_region
        _
      $region56: #{autoencoder_forward.1} parent=11 // pred_fallthru
        _
      // Predicated region
      $region57: #{autoencoder_forward.1} parent=11 // pred_check
        %p531 = pneg %p305
      $region58: #{autoencoder_forward.1} parent=11 // pred_check_branch
        %533 = sbr.rel (%p531) target = $region60
      $region59: #{autoencoder_forward.1} parent=11 // pred_region
        _
      $region60: #{autoencoder_forward.1} parent=11 // pred_fallthru
        _
      // Predicated region
      $region61: #{autoencoder_forward.1} parent=11 // pred_check
        %p534 = pneg %p326
      $region62: #{autoencoder_forward.1} parent=11 // pred_check_branch
        %536 = sbr.rel (%p534) target = $region64
      $region63: #{autoencoder_forward.1} parent=11 // pred_region
        _
      $region64: #{autoencoder_forward.1} parent=11 // pred_fallthru
        _
      // Predicated region
      $region65: #{autoencoder_forward.1} parent=11 // pred_check
        %p537 = pneg %p347
      $region66: #{autoencoder_forward.1} parent=11 // pred_check_branch
        %539 = sbr.rel (%p537) target = $region68
      $region67: #{autoencoder_forward.1} parent=11 // pred_region
        _
      $region68: #{autoencoder_forward.1} parent=11 // pred_fallthru
        _
      // Predicated region
      $region69: #{autoencoder_forward.1} parent=11 // pred_check
        %p540 = pneg %p368
      $region70: #{autoencoder_forward.1} parent=11 // pred_check_branch
        %542 = sbr.rel (%p540) target = $region72
      $region71: #{autoencoder_forward.1} parent=11 // pred_region
        _
      $region72: #{autoencoder_forward.1} parent=11 // pred_fallthru
        _
      // Predicated region
      $region73: #{autoencoder_forward.1} parent=11 // pred_check
        %p543 = pneg %p389
      $region74: #{autoencoder_forward.1} parent=11 // pred_check_branch
        %545 = sbr.rel (%p543) target = $region76
      $region75: #{autoencoder_forward.1} parent=11 // pred_region
        _
      $region76: #{autoencoder_forward.1} parent=11 // pred_fallthru
        _
      // Predicated region
      $region77: #{autoencoder_forward.1} parent=11 // pred_check
        %p546 = pneg %p410
      $region78: #{autoencoder_forward.1} parent=11 // pred_check_branch
        %548 = sbr.rel (%p546) target = $region80
      $region79: #{autoencoder_forward.1} parent=11 // pred_region
        _
      $region80: #{autoencoder_forward.1} parent=11 // pred_fallthru
        _
      // Predicated region
      $region81: #{autoencoder_forward.1} parent=11 // pred_check
        %p549 = pneg %p431
      $region82: #{autoencoder_forward.1} parent=11 // pred_check_branch
        %551 = sbr.rel (%p549) target = $region84
      $region83: #{autoencoder_forward.1} parent=11 // pred_region
        _
      $region84: #{autoencoder_forward.1} parent=11 // pred_fallthru
        _
    $region12: #{autoencoder_forward.1} parent=5 // pred_fallthru
      _
    %p552 = scmp.lt.s32.totalorder %s27, 2
    // Predicated region
    $region85: #{autoencoder_forward.1} parent=5 // pred_check
      %p553 = pneg %p552
    $region86: #{autoencoder_forward.1} parent=5 // pred_check_branch
      %555 = sbr.rel (%p553) target = $region88
    $region87: #{autoencoder_forward.1} parent=5 // pred_region
      // Predicated region
      $region89: #{autoencoder_forward.1} parent=87 // pred_check
        %p556 = pneg %p47
      $region90: #{autoencoder_forward.1} parent=87 // pred_check_branch
        %558 = sbr.rel (%p556) target = $region92
      $region91: #{autoencoder_forward.1} parent=87 // pred_region
        %p559 = scmp.lt.s32.totalorder %s27, 1
        %s560 = scalar_select %p559, %s27, 1
        %s561 = smul.addr %s560, 4
        %s562 = smul.addr %s561, 4
        %s563 = scalar_lea.vmem %s0, %s562
      $region92: #{autoencoder_forward.1} parent=87 // pred_fallthru
        _
    $region88: #{autoencoder_forward.1} parent=5 // pred_fallthru
      _
    %p564 = scmp.le.s32.totalorder 1, %s27
    %p565 = scmp.lt.s32.totalorder %s27, 3
    %p566 = pnand %p564, %p565
    %p567 = pneg %p566
    // Predicated region
    $region93: #{autoencoder_forward.1} parent=5 // pred_check
      _
    $region94: #{autoencoder_forward.1} parent=5 // pred_check_branch
      %569 = sbr.rel (%p566) target = $region96
    $region95: #{autoencoder_forward.1} parent=5 // pred_region
      %s570 = ssub.s32 %s27, 1
      %p571 = scmp.lt.s32.totalorder %s32, 1
      %s572 = scalar_select %p571, %s32, 1
      %s573 = smul.addr %s572, 4
      %s574 = smul.addr %s573, 4
      %s575 = scalar_lea.vmem %s0, %s574
      %p576 = pneg %p53
      %p577 = pneg %p50
      %p578 = pneg %p74
      %p579 = pneg %p71
      %p580 = pneg %p95
      %p581 = pneg %p92
      %p582 = pneg %p116
      %p583 = pneg %p113
      %p584 = pneg %p137
      %p585 = pneg %p134
      %p586 = pneg %p158
      %p587 = pneg %p155
      %p588 = pneg %p179
      %p589 = pneg %p176
      %p590 = pneg %p200
      %p591 = pneg %p197
      %p592 = pneg %p221
      %p593 = pneg %p218
      %p594 = pneg %p242
      %p595 = pneg %p239
      %p596 = pneg %p263
      %p597 = pneg %p260
      %p598 = pneg %p284
      %p599 = pneg %p281
      %p600 = pneg %p305
      %p601 = pneg %p302
      %p602 = pneg %p326
      %p603 = pneg %p323
      %p604 = pneg %p347
      %p605 = pneg %p344
      %p606 = pneg %p368
      %p607 = pneg %p365
      %p608 = pneg %p389
      %p609 = pneg %p386
      %p610 = pneg %p410
      %p611 = pneg %p407
      %p612 = pneg %p431
      %p613 = pneg %p428
      %p614 = pneg %p457
      %p615 = pneg %p454
      %p616 = scmp.lt.s32.totalorder %s32, 1
      %s617 = scalar_select %p616, %s32, 1
      %s618 = smul.addr %s617, 2
      %s619 = smul.addr %s618, 4
      %s620 = scalar_lea.vmem %s19, %s619
      %p621 = pneg %p483
      %p622 = pneg %p480
      %p623 = scmp.lt.s32.totalorder %s32, 1
      %s624 = scalar_select %p623, %s32, 1
      %s625 = smul.addr %s624, 4
      %s626 = smul.addr %s625, 8
      %s627 = scalar_lea.vmem %s20, %s626
      %p628 = scmp.lt.s32.totalorder %s32, 1
      %s629 = scalar_select %p628, %s32, 1
      %s630 = smul.addr %s629, 4
      %s631 = smul.addr %s630, 4
      %s632 = scalar_lea.vmem %s0, %s631
      %p633 = scmp.lt.s32.totalorder %s32, 1
      %s634 = scalar_select %p633, %s32, 1
      %s635 = smul.addr %s634, 2
      %s636 = smul.addr %s635, 4
      %s637 = scalar_lea.vmem %s19, %s636
      %p638 = scmp.lt.s32.totalorder %s32, 1
      %s639 = scalar_select %p638, %s32, 1
      %s640 = smul.addr %s639, 4
      %s641 = smul.addr %s640, 8
      %s642 = scalar_lea.vmem %s20, %s641
      %v644 = vld [vmem:[%s632] sm:$0xf]
      %v645 = vld [vmem:[%s632 + $0x4] sm:$0xf]
      %v646 = vld [vmem:[%s632 + $0x8] sm:$0xf]
      %v647 = vld [vmem:[%s632 + $0xc] sm:$0xf]
      %v648 = vld [vmem:[%s1] sm:$0xf]
      %v649 = vld [vmem:[%s1 + $0x4] sm:$0xf]
      %v650 = vld [vmem:[%s2] sm:$0xff]
      %v651 = vld [vmem:[%s2 + $0x8] sm:$0xff]
      %v652 = vld [vmem:[%s2 + $0x10] sm:$0xff]
      %v653 = vld [vmem:[%s2 + $0x18] sm:$0xff]
      %v654 = vld [vmem:[%s2 + $0x20] sm:$0xff]
      %v655 = vld [vmem:[%s2 + $0x28] sm:$0xff]
      %v656 = vld [vmem:[%s2 + $0x30] sm:$0xff]
      %v657 = vld [vmem:[%s2 + $0x38] sm:$0xff]
      %v658 = vld [vmem:[%s2 + $0x40] sm:$0xff]
      %v659 = vld [vmem:[%s2 + $0x48] sm:$0xff]
      %v660 = vld [vmem:[%s2 + $0x50] sm:$0xff]
      %v661 = vld [vmem:[%s2 + $0x58] sm:$0xff]
      %v664 = vunpack.c.l.b16 %v648
      %v665 = vunpack.c.l.b16 %v649
      %v666 = vpack.c.b16 %v665, %v664
      %v671 = vunpack.c.l.b16 %v644
      %v672 = vunpack.c.l.b16 %v645
      %v673 = vunpack.c.l.b16 %v646
      %v674 = vunpack.c.l.b16 %v647
      %v675 = vpack.c.b16 %v672, %v671
      %v676 = vpack.c.b16 %v674, %v673
      %vm679 = vcmask 261120
      %v681 = vsel %vm679, %v666, 0
      %683 = vmatpush.bf16.msra.mxu0 0
      %684 = vmatpush.bf16.msra.mxu0 0
      %685 = vmatpush.bf16.msra.mxu0 0
      %686 = vmatpush.bf16.msra.mxu0 0
      %687 = vmatpush.bf16.msra.mxu0 0
      %688 = vmatpush.bf16.msra.mxu0 0
      %689 = vmatpush.bf16.msra.mxu0 %v676
      %690 = vmatpush.bf16.msra.mxu0 %v675
      %691 = vmatmul.bf16.gmra.mxu0 %v681
      %v692 = vpop.f32.mrf.mxu0
      %v693 = vadd.f32 0.0, %v692
      %v694 = vpop.f32.mrf.mxu0
      %v695 = vadd.f32 0.0, %v694
      %696 = vdwg.mxu0
      %v697 = vpack.c.bf16 %v695, %v693
      %s698 = scalar_lea.vmem %s1, 8
      %v699 = vld [vmem:[%s698] sm:$0xf]
      %v700 = vld [vmem:[%s698 + $0x4] sm:$0xf]
      %s701 = scalar_lea.vmem %s2, 96
      %v702 = vld [vmem:[%s701] sm:$0xff]
      %v703 = vld [vmem:[%s701 + $0x8] sm:$0xff]
      %v704 = vld [vmem:[%s701 + $0x10] sm:$0xff]
      %v705 = vld [vmem:[%s701 + $0x18] sm:$0xff]
      %v706 = vld [vmem:[%s701 + $0x20] sm:$0xff]
      %v707 = vld [vmem:[%s701 + $0x28] sm:$0xff]
      %v708 = vld [vmem:[%s701 + $0x30] sm:$0xff]
      %v709 = vld [vmem:[%s701 + $0x38] sm:$0xff]
      %v710 = vld [vmem:[%s701 + $0x40] sm:$0xff]
      %v711 = vld [vmem:[%s701 + $0x48] sm:$0xff]
      %v712 = vld [vmem:[%s701 + $0x50] sm:$0xff]
      %v713 = vld [vmem:[%s701 + $0x58] sm:$0xff]
      %v716 = vunpack.c.l.b16 %v699
      %v717 = vunpack.c.l.b16 %v700
      %v718 = vpack.c.b16 %v717, %v716
      %v720 = vsel %vm679, %v718, 0
      %722 = vmatpush.bf16.msra.mxu0 0
      %723 = vmatpush.bf16.msra.mxu0 0
      %724 = vmatpush.bf16.msra.mxu0 0
      %725 = vmatpush.bf16.msra.mxu0 0
      %726 = vmatpush.bf16.msra.mxu0 0
      %727 = vmatpush.bf16.msra.mxu0 0
      %728 = vmatpush.bf16.msra.mxu0 %v676
      %729 = vmatpush.bf16.msra.mxu0 %v675
      %730 = vmatmul.bf16.gmra.mxu0 %v720
      %v731 = vpop.f32.mrf.mxu0
      %v732 = vadd.f32 0.0, %v731
      %v733 = vpop.f32.mrf.mxu0
      %v734 = vadd.f32 0.0, %v733
      %735 = vdwg.mxu0
      %v736 = vpack.c.bf16 %v734, %v732
      %v749 = vunpack.c.l.b16 %v702
      %v750 = vunpack.c.h.b16 %v702
      %v751 = vunpack.c.l.b16 %v703
      %v752 = vunpack.c.h.b16 %v703
      %v753 = vunpack.c.l.b16 %v704
      %v754 = vunpack.c.h.b16 %v704
      %v755 = vunpack.c.l.b16 %v705
      %v756 = vunpack.c.h.b16 %v705
      %v757 = vunpack.c.l.b16 %v706
      %v758 = vunpack.c.h.b16 %v706
      %v759 = vunpack.c.l.b16 %v707
      %v760 = vunpack.c.h.b16 %v707
      %v761 = vunpack.c.l.b16 %v708
      %v762 = vunpack.c.h.b16 %v708
      %v763 = vunpack.c.l.b16 %v709
      %v764 = vunpack.c.h.b16 %v709
      %v765 = vunpack.c.l.b16 %v710
      %v766 = vunpack.c.h.b16 %v710
      %v767 = vunpack.c.l.b16 %v711
      %v768 = vunpack.c.h.b16 %v711
      %v769 = vunpack.c.l.b16 %v712
      %v770 = vunpack.c.h.b16 %v712
      %v771 = vunpack.c.l.b16 %v713
      %v772 = vunpack.c.h.b16 %v713
      %v773 = vpack.c.b16 %v751, %v749
      %v774 = vpack.c.b16 %v752, %v750
      %v775 = vpack.c.b16 %v755, %v753
      %v776 = vpack.c.b16 %v756, %v754
      %v777 = vpack.c.b16 %v759, %v757
      %v778 = vpack.c.b16 %v760, %v758
      %v779 = vpack.c.b16 %v763, %v761
      %v780 = vpack.c.b16 %v764, %v762
      %v781 = vpack.c.b16 %v767, %v765
      %v782 = vpack.c.b16 %v768, %v766
      %v783 = vpack.c.b16 %v771, %v769
      %v784 = vpack.c.b16 %v772, %v770
      %vm797 = vcmask 785408
      %v799 = vsel %vm797, %v736, 0
      %801 = vmatpush.bf16.msra.mxu0 0
      %802 = vmatpush.bf16.msra.mxu0 0
      %803 = vmatpush.bf16.msra.mxu0 %v783
      %804 = vmatpush.bf16.msra.mxu0 %v781
      %805 = vmatpush.bf16.msra.mxu0 %v779
      %806 = vmatpush.bf16.msra.mxu0 %v777
      %807 = vmatpush.bf16.msra.mxu0 %v775
      %808 = vmatpush.bf16.msra.mxu0 %v773
      %809 = vmatmul.bf16.gmra.mxu0 %v799
      %v810 = vpop.f32.mrf.mxu0
      %v811 = vadd.f32 0.0, %v810
      %v812 = vpop.f32.mrf.mxu0
      %v813 = vadd.f32 0.0, %v812
      %814 = vdwg.mxu0
      %815 = vmatpush.bf16.msra.mxu0 0
      %816 = vmatpush.bf16.msra.mxu0 0
      %817 = vmatpush.bf16.msra.mxu0 %v784
      %818 = vmatpush.bf16.msra.mxu0 %v782
      %819 = vmatpush.bf16.msra.mxu0 %v780
      %820 = vmatpush.bf16.msra.mxu0 %v778
      %821 = vmatpush.bf16.msra.mxu0 %v776
      %822 = vmatpush.bf16.msra.mxu0 %v774
      %823 = vmatmul.bf16.gmra.mxu0 %v799
      %v824 = vpop.f32.mrf.mxu0
      %v825 = vadd.f32 0.0, %v824
      %v826 = vpop.f32.mrf.mxu0
      %v827 = vadd.f32 0.0, %v826
      %828 = vdwg.mxu0
      %v841 = vunpack.c.l.b16 %v650
      %v842 = vunpack.c.h.b16 %v650
      %v843 = vunpack.c.l.b16 %v651
      %v844 = vunpack.c.h.b16 %v651
      %v845 = vunpack.c.l.b16 %v652
      %v846 = vunpack.c.h.b16 %v652
      %v847 = vunpack.c.l.b16 %v653
      %v848 = vunpack.c.h.b16 %v653
      %v849 = vunpack.c.l.b16 %v654
      %v850 = vunpack.c.h.b16 %v654
      %v851 = vunpack.c.l.b16 %v655
      %v852 = vunpack.c.h.b16 %v655
      %v853 = vunpack.c.l.b16 %v656
      %v854 = vunpack.c.h.b16 %v656
      %v855 = vunpack.c.l.b16 %v657
      %v856 = vunpack.c.h.b16 %v657
      %v857 = vunpack.c.l.b16 %v658
      %v858 = vunpack.c.h.b16 %v658
      %v859 = vunpack.c.l.b16 %v659
      %v860 = vunpack.c.h.b16 %v659
      %v861 = vunpack.c.l.b16 %v660
      %v862 = vunpack.c.h.b16 %v660
      %v863 = vunpack.c.l.b16 %v661
      %v864 = vunpack.c.h.b16 %v661
      %v865 = vpack.c.b16 %v843, %v841
      %v866 = vpack.c.b16 %v844, %v842
      %v867 = vpack.c.b16 %v847, %v845
      %v868 = vpack.c.b16 %v848, %v846
      %v869 = vpack.c.b16 %v851, %v849
      %v870 = vpack.c.b16 %v852, %v850
      %v871 = vpack.c.b16 %v855, %v853
      %v872 = vpack.c.b16 %v856, %v854
      %v873 = vpack.c.b16 %v859, %v857
      %v874 = vpack.c.b16 %v860, %v858
      %v875 = vpack.c.b16 %v863, %v861
      %v876 = vpack.c.b16 %v864, %v862
      %v890 = vsel %vm797, %v697, 0
      %892 = vmatpush.bf16.msra.mxu0 0
      %893 = vmatpush.bf16.msra.mxu0 0
      %894 = vmatpush.bf16.msra.mxu0 %v875
      %895 = vmatpush.bf16.msra.mxu0 %v873
      %896 = vmatpush.bf16.msra.mxu0 %v871
      %897 = vmatpush.bf16.msra.mxu0 %v869
      %898 = vmatpush.bf16.msra.mxu0 %v867
      %899 = vmatpush.bf16.msra.mxu0 %v865
      %900 = vmatmul.bf16.gmra.mxu0 %v890
      %v901 = vpop.f32.mrf.mxu0
      %v902 = vadd.f32 %v811, %v901
      %v903 = vpop.f32.mrf.mxu0
      %v904 = vadd.f32 %v813, %v903
      %905 = vdwg.mxu0
      %906 = vmatpush.bf16.msra.mxu0 0
      %907 = vmatpush.bf16.msra.mxu0 0
      %908 = vmatpush.bf16.msra.mxu0 %v876
      %909 = vmatpush.bf16.msra.mxu0 %v874
      %910 = vmatpush.bf16.msra.mxu0 %v872
      %911 = vmatpush.bf16.msra.mxu0 %v870
      %912 = vmatpush.bf16.msra.mxu0 %v868
      %913 = vmatpush.bf16.msra.mxu0 %v866
      %914 = vmatmul.bf16.gmra.mxu0 %v890
      %v915 = vpop.f32.mrf.mxu0
      %v916 = vadd.f32 %v825, %v915
      %v917 = vpop.f32.mrf.mxu0
      %v918 = vadd.f32 %v827, %v917
      %919 = vdwg.mxu0
      %s920 = scalar_lea.vmem %s1, 16
      %v921 = vld [vmem:[%s920] sm:$0xf]
      %v922 = vld [vmem:[%s920 + $0x4] sm:$0xf]
      %s923 = scalar_lea.vmem %s2, 192
      %v924 = vld [vmem:[%s923] sm:$0xff]
      %v925 = vld [vmem:[%s923 + $0x8] sm:$0xff]
      %v926 = vld [vmem:[%s923 + $0x10] sm:$0xff]
      %v927 = vld [vmem:[%s923 + $0x18] sm:$0xff]
      %v928 = vld [vmem:[%s923 + $0x20] sm:$0xff]
      %v929 = vld [vmem:[%s923 + $0x28] sm:$0xff]
      %v930 = vld [vmem:[%s923 + $0x30] sm:$0xff]
      %v931 = vld [vmem:[%s923 + $0x38] sm:$0xff]
      %v932 = vld [vmem:[%s923 + $0x40] sm:$0xff]
      %v933 = vld [vmem:[%s923 + $0x48] sm:$0xff]
      %v934 = vld [vmem:[%s923 + $0x50] sm:$0xff]
      %v935 = vld [vmem:[%s923 + $0x58] sm:$0xff]
      %v938 = vunpack.c.l.b16 %v921
      %v939 = vunpack.c.l.b16 %v922
      %v940 = vpack.c.b16 %v939, %v938
      %v942 = vsel %vm679, %v940, 0
      %944 = vmatpush.bf16.msra.mxu0 0
      %945 = vmatpush.bf16.msra.mxu0 0
      %946 = vmatpush.bf16.msra.mxu0 0
      %947 = vmatpush.bf16.msra.mxu0 0
      %948 = vmatpush.bf16.msra.mxu0 0
      %949 = vmatpush.bf16.msra.mxu0 0
      %950 = vmatpush.bf16.msra.mxu0 %v676
      %951 = vmatpush.bf16.msra.mxu0 %v675
      %952 = vmatmul.bf16.gmra.mxu0 %v942
      %v953 = vpop.f32.mrf.mxu0
      %v954 = vadd.f32 0.0, %v953
      %v955 = vpop.f32.mrf.mxu0
      %v956 = vadd.f32 0.0, %v955
      %957 = vdwg.mxu0
      %v958 = vpack.c.bf16 %v956, %v954
      %v971 = vunpack.c.l.b16 %v924
      %v972 = vunpack.c.h.b16 %v924
      %v973 = vunpack.c.l.b16 %v925
      %v974 = vunpack.c.h.b16 %v925
      %v975 = vunpack.c.l.b16 %v926
      %v976 = vunpack.c.h.b16 %v926
      %v977 = vunpack.c.l.b16 %v927
      %v978 = vunpack.c.h.b16 %v927
      %v979 = vunpack.c.l.b16 %v928
      %v980 = vunpack.c.h.b16 %v928
      %v981 = vunpack.c.l.b16 %v929
      %v982 = vunpack.c.h.b16 %v929
      %v983 = vunpack.c.l.b16 %v930
      %v984 = vunpack.c.h.b16 %v930
      %v985 = vunpack.c.l.b16 %v931
      %v986 = vunpack.c.h.b16 %v931
      %v987 = vunpack.c.l.b16 %v932
      %v988 = vunpack.c.h.b16 %v932
      %v989 = vunpack.c.l.b16 %v933
      %v990 = vunpack.c.h.b16 %v933
      %v991 = vunpack.c.l.b16 %v934
      %v992 = vunpack.c.h.b16 %v934
      %v993 = vunpack.c.l.b16 %v935
      %v994 = vunpack.c.h.b16 %v935
      %v995 = vpack.c.b16 %v973, %v971
      %v996 = vpack.c.b16 %v974, %v972
      %v997 = vpack.c.b16 %v977, %v975
      %v998 = vpack.c.b16 %v978, %v976
      %v999 = vpack.c.b16 %v981, %v979
      %v1000 = vpack.c.b16 %v982, %v980
      %v1001 = vpack.c.b16 %v985, %v983
      %v1002 = vpack.c.b16 %v986, %v984
      %v1003 = vpack.c.b16 %v989, %v987
      %v1004 = vpack.c.b16 %v990, %v988
      %v1005 = vpack.c.b16 %v993, %v991
      %v1006 = vpack.c.b16 %v994, %v992
      %v1020 = vsel %vm797, %v958, 0
      %1022 = vmatpush.bf16.msra.mxu0 0
      %1023 = vmatpush.bf16.msra.mxu0 0
      %1024 = vmatpush.bf16.msra.mxu0 %v1005
      %1025 = vmatpush.bf16.msra.mxu0 %v1003
      %1026 = vmatpush.bf16.msra.mxu0 %v1001
      %1027 = vmatpush.bf16.msra.mxu0 %v999
      %1028 = vmatpush.bf16.msra.mxu0 %v997
      %1029 = vmatpush.bf16.msra.mxu0 %v995
      %1030 = vmatmul.bf16.gmra.mxu0 %v1020
      %v1031 = vpop.f32.mrf.mxu0
      %v1032 = vadd.f32 0.0, %v1031
      %v1033 = vpop.f32.mrf.mxu0
      %v1034 = vadd.f32 0.0, %v1033
      %1035 = vdwg.mxu0
      %1036 = vmatpush.bf16.msra.mxu0 0
      %1037 = vmatpush.bf16.msra.mxu0 0
      %1038 = vmatpush.bf16.msra.mxu0 %v1006
      %1039 = vmatpush.bf16.msra.mxu0 %v1004
      %1040 = vmatpush.bf16.msra.mxu0 %v1002
      %1041 = vmatpush.bf16.msra.mxu0 %v1000
      %1042 = vmatpush.bf16.msra.mxu0 %v998
      %1043 = vmatpush.bf16.msra.mxu0 %v996
      %1044 = vmatmul.bf16.gmra.mxu0 %v1020
      %v1045 = vpop.f32.mrf.mxu0
      %v1046 = vadd.f32 0.0, %v1045
      %v1047 = vpop.f32.mrf.mxu0
      %v1048 = vadd.f32 0.0, %v1047
      %1049 = vdwg.mxu0
      %v1050 = vadd.f32 %v902, %v1032
      %v1051 = vadd.f32 %v916, %v1046
      %v1052 = vadd.f32 %v904, %v1034
      %v1053 = vadd.f32 %v918, %v1048
      %s1054 = scalar_lea.vmem %s1, 24
      %v1055 = vld [vmem:[%s1054] sm:$0xf]
      %v1056 = vld [vmem:[%s1054 + $0x4] sm:$0xf]
      %s1057 = scalar_lea.vmem %s2, 288
      %v1058 = vld [vmem:[%s1057] sm:$0xff]
      %v1059 = vld [vmem:[%s1057 + $0x8] sm:$0xff]
      %v1060 = vld [vmem:[%s1057 + $0x10] sm:$0xff]
      %v1061 = vld [vmem:[%s1057 + $0x18] sm:$0xff]
      %v1062 = vld [vmem:[%s1057 + $0x20] sm:$0xff]
      %v1063 = vld [vmem:[%s1057 + $0x28] sm:$0xff]
      %v1064 = vld [vmem:[%s1057 + $0x30] sm:$0xff]
      %v1065 = vld [vmem:[%s1057 + $0x38] sm:$0xff]
      %v1066 = vld [vmem:[%s1057 + $0x40] sm:$0xff]
      %v1067 = vld [vmem:[%s1057 + $0x48] sm:$0xff]
      %v1068 = vld [vmem:[%s1057 + $0x50] sm:$0xff]
      %v1069 = vld [vmem:[%s1057 + $0x58] sm:$0xff]
      %v1072 = vunpack.c.l.b16 %v1055
      %v1073 = vunpack.c.l.b16 %v1056
      %v1074 = vpack.c.b16 %v1073, %v1072
      %v1076 = vsel %vm679, %v1074, 0
      %1078 = vmatpush.bf16.msra.mxu0 0
      %1079 = vmatpush.bf16.msra.mxu0 0
      %1080 = vmatpush.bf16.msra.mxu0 0
      %1081 = vmatpush.bf16.msra.mxu0 0
      %1082 = vmatpush.bf16.msra.mxu0 0
      %1083 = vmatpush.bf16.msra.mxu0 0
      %1084 = vmatpush.bf16.msra.mxu0 %v676
      %1085 = vmatpush.bf16.msra.mxu0 %v675
      %1086 = vmatmul.bf16.gmra.mxu0 %v1076
      %v1087 = vpop.f32.mrf.mxu0
      %v1088 = vadd.f32 0.0, %v1087
      %v1089 = vpop.f32.mrf.mxu0
      %v1090 = vadd.f32 0.0, %v1089
      %1091 = vdwg.mxu0
      %v1092 = vpack.c.bf16 %v1090, %v1088
      %v1105 = vunpack.c.l.b16 %v1058
      %v1106 = vunpack.c.h.b16 %v1058
      %v1107 = vunpack.c.l.b16 %v1059
      %v1108 = vunpack.c.h.b16 %v1059
      %v1109 = vunpack.c.l.b16 %v1060
      %v1110 = vunpack.c.h.b16 %v1060
      %v1111 = vunpack.c.l.b16 %v1061
      %v1112 = vunpack.c.h.b16 %v1061
      %v1113 = vunpack.c.l.b16 %v1062
      %v1114 = vunpack.c.h.b16 %v1062
      %v1115 = vunpack.c.l.b16 %v1063
      %v1116 = vunpack.c.h.b16 %v1063
      %v1117 = vunpack.c.l.b16 %v1064
      %v1118 = vunpack.c.h.b16 %v1064
      %v1119 = vunpack.c.l.b16 %v1065
      %v1120 = vunpack.c.h.b16 %v1065
      %v1121 = vunpack.c.l.b16 %v1066
      %v1122 = vunpack.c.h.b16 %v1066
      %v1123 = vunpack.c.l.b16 %v1067
      %v1124 = vunpack.c.h.b16 %v1067
      %v1125 = vunpack.c.l.b16 %v1068
      %v1126 = vunpack.c.h.b16 %v1068
      %v1127 = vunpack.c.l.b16 %v1069
      %v1128 = vunpack.c.h.b16 %v1069
      %v1129 = vpack.c.b16 %v1107, %v1105
      %v1130 = vpack.c.b16 %v1108, %v1106
      %v1131 = vpack.c.b16 %v1111, %v1109
      %v1132 = vpack.c.b16 %v1112, %v1110
      %v1133 = vpack.c.b16 %v1115, %v1113
      %v1134 = vpack.c.b16 %v1116, %v1114
      %v1135 = vpack.c.b16 %v1119, %v1117
      %v1136 = vpack.c.b16 %v1120, %v1118
      %v1137 = vpack.c.b16 %v1123, %v1121
      %v1138 = vpack.c.b16 %v1124, %v1122
      %v1139 = vpack.c.b16 %v1127, %v1125
      %v1140 = vpack.c.b16 %v1128, %v1126
      %v1154 = vsel %vm797, %v1092, 0
      %1156 = vmatpush.bf16.msra.mxu0 0
      %1157 = vmatpush.bf16.msra.mxu0 0
      %1158 = vmatpush.bf16.msra.mxu0 %v1139
      %1159 = vmatpush.bf16.msra.mxu0 %v1137
      %1160 = vmatpush.bf16.msra.mxu0 %v1135
      %1161 = vmatpush.bf16.msra.mxu0 %v1133
      %1162 = vmatpush.bf16.msra.mxu0 %v1131
      %1163 = vmatpush.bf16.msra.mxu0 %v1129
      %1164 = vmatmul.bf16.gmra.mxu0 %v1154
      %v1165 = vpop.f32.mrf.mxu0
      %v1166 = vadd.f32 0.0, %v1165
      %v1167 = vpop.f32.mrf.mxu0
      %v1168 = vadd.f32 0.0, %v1167
      %1169 = vdwg.mxu0
      %1170 = vmatpush.bf16.msra.mxu0 0
      %1171 = vmatpush.bf16.msra.mxu0 0
      %1172 = vmatpush.bf16.msra.mxu0 %v1140
      %1173 = vmatpush.bf16.msra.mxu0 %v1138
      %1174 = vmatpush.bf16.msra.mxu0 %v1136
      %1175 = vmatpush.bf16.msra.mxu0 %v1134
      %1176 = vmatpush.bf16.msra.mxu0 %v1132
      %1177 = vmatpush.bf16.msra.mxu0 %v1130
      %1178 = vmatmul.bf16.gmra.mxu0 %v1154
      %v1179 = vpop.f32.mrf.mxu0
      %v1180 = vadd.f32 0.0, %v1179
      %v1181 = vpop.f32.mrf.mxu0
      %v1182 = vadd.f32 0.0, %v1181
      %1183 = vdwg.mxu0
      %v1184 = vadd.f32 %v1050, %v1166
      %v1185 = vadd.f32 %v1051, %v1180
      %v1186 = vadd.f32 %v1052, %v1168
      %v1187 = vadd.f32 %v1053, %v1182
      %v1188 = vld [vmem:[%s3] sm:$0x3]
      %v1190 = vperm.slane %v1188, 0
      %v1191 = vperm.slane %v1188, 1
      %v1194 = vadd.f32 %v1184, %v1190
      %v1195 = vadd.f32 %v1185, %v1191
      %v1196 = vadd.f32 %v1186, %v1190
      %v1197 = vadd.f32 %v1187, %v1191
      %v1198 = vmin.f32 %v1194, 20.0
      %v1199 = vmin.f32 %v1195, 20.0
      %v1200 = vmin.f32 %v1196, 20.0
      %v1201 = vmin.f32 %v1197, 20.0
      %v1202 = vmul.f32 %v1198, 1.442695
      %v1203 = vpow.pop %v1202
      %v1204 = vmul.f32 %v1199, 1.442695
      %v1205 = vpow.pop %v1204
      %v1206 = vmul.f32 %v1200, 1.442695
      %v1207 = vpow.pop %v1206
      %v1208 = vmul.f32 %v1201, 1.442695
      %v1209 = vpow.pop %v1208
      %v1210 = vadd.f32 %v1203, 1.0
      %v1211 = vadd.f32 %v1205, 1.0
      %v1212 = vadd.f32 %v1207, 1.0
      %v1213 = vadd.f32 %v1209, 1.0
      %v1214 = vmul.f32 %v1210, %v1210
      %v1215 = vmul.f32 %v1211, %v1211
      %v1216 = vmul.f32 %v1212, %v1212
      %v1217 = vmul.f32 %v1213, %v1213
      %v1218 = vsub.f32 %v1214, 1.0
      %v1219 = vsub.f32 %v1215, 1.0
      %v1220 = vsub.f32 %v1216, 1.0
      %v1221 = vsub.f32 %v1217, 1.0
      %v1222 = vadd.f32 %v1214, 1.0
      %v1223 = vadd.f32 %v1215, 1.0
      %v1224 = vadd.f32 %v1216, 1.0
      %v1225 = vadd.f32 %v1217, 1.0
      %v1226 = vrcp.pop %v1222
      %v1227 = vmul.f32 %v1222, %v1226
      %v1228 = vsub.f32 1.0, %v1227
      %v1229 = vmul.f32 %v1226, %v1228
      %v1230 = vadd.f32 %v1226, %v1229
      %vm1231 = vweird.f32 %v1222
      %vm1232 = vweird.f32 %v1226
      %vm1233 = vmor %vm1231, %vm1232
      %v1234 = vsel %vm1233, %v1226, %v1230
      %v1235 = vand.u32 2147483647, %v1222
      %vm1236 = vcmp.eq.f32.partialorder %v1235, 8.507059e+37
      %v1237 = vand.u32 %v1222, 2147483648
      %v1238 = vor.u32 1.1754944e-38, %v1237
      %v1239 = vsel %vm1236, %v1238, %v1234
      %v1240 = vmul.f32 %v1218, %v1239
      %v1241 = vrcp.pop %v1223
      %v1242 = vmul.f32 %v1223, %v1241
      %v1243 = vsub.f32 1.0, %v1242
      %v1244 = vmul.f32 %v1241, %v1243
      %v1245 = vadd.f32 %v1241, %v1244
      %vm1246 = vweird.f32 %v1223
      %vm1247 = vweird.f32 %v1241
      %vm1248 = vmor %vm1246, %vm1247
      %v1249 = vsel %vm1248, %v1241, %v1245
      %v1250 = vand.u32 2147483647, %v1223
      %vm1251 = vcmp.eq.f32.partialorder %v1250, 8.507059e+37
      %v1252 = vand.u32 %v1223, 2147483648
      %v1253 = vor.u32 1.1754944e-38, %v1252
      %v1254 = vsel %vm1251, %v1253, %v1249
      %v1255 = vmul.f32 %v1219, %v1254
      %v1256 = vrcp.pop %v1224
      %v1257 = vmul.f32 %v1224, %v1256
      %v1258 = vsub.f32 1.0, %v1257
      %v1259 = vmul.f32 %v1256, %v1258
      %v1260 = vadd.f32 %v1256, %v1259
      %vm1261 = vweird.f32 %v1224
      %vm1262 = vweird.f32 %v1256
      %vm1263 = vmor %vm1261, %vm1262
      %v1264 = vsel %vm1263, %v1256, %v1260
      %v1265 = vand.u32 2147483647, %v1224
      %vm1266 = vcmp.eq.f32.partialorder %v1265, 8.507059e+37
      %v1267 = vand.u32 %v1224, 2147483648
      %v1268 = vor.u32 1.1754944e-38, %v1267
      %v1269 = vsel %vm1266, %v1268, %v1264
      %v1270 = vmul.f32 %v1220, %v1269
      %v1271 = vrcp.pop %v1225
      %v1272 = vmul.f32 %v1225, %v1271
      %v1273 = vsub.f32 1.0, %v1272
      %v1274 = vmul.f32 %v1271, %v1273
      %v1275 = vadd.f32 %v1271, %v1274
      %vm1276 = vweird.f32 %v1225
      %vm1277 = vweird.f32 %v1271
      %vm1278 = vmor %vm1276, %vm1277
      %v1279 = vsel %vm1278, %v1271, %v1275
      %v1280 = vand.u32 2147483647, %v1225
      %vm1281 = vcmp.eq.f32.partialorder %v1280, 8.507059e+37
      %v1282 = vand.u32 %v1225, 2147483648
      %v1283 = vor.u32 1.1754944e-38, %v1282
      %v1284 = vsel %vm1281, %v1283, %v1279
      %v1285 = vmul.f32 %v1221, %v1284
      %vm1286 = vcmp.gt.f32.partialorder %v1194, 20.0
      %vm1287 = vcmp.gt.f32.partialorder %v1195, 20.0
      %vm1288 = vcmp.gt.f32.partialorder %v1196, 20.0
      %vm1289 = vcmp.gt.f32.partialorder %v1197, 20.0
      %v1290 = vsel %vm1286, 1.0, %v1240
      %v1291 = vsel %vm1287, 1.0, %v1255
      %v1292 = vsel %vm1288, 1.0, %v1270
      %v1293 = vsel %vm1289, 1.0, %v1285
      %v1294 = vmul.f32 %v1194, %v1290
      %v1295 = vmul.f32 %v1195, %v1291
      %v1296 = vmul.f32 %v1196, %v1292
      %v1297 = vmul.f32 %v1197, %v1293
      %v1298 = vpack.c.bf16 %v1296, %v1294
      %v1299 = vpack.c.bf16 %v1297, %v1295
      %v1300 = vld [vmem:[%s4] sm:$0xf]
      %v1301 = vld [vmem:[%s5] sm:$0xff]
      %v1302 = vld [vmem:[%s5 + $0x8] sm:$0xff]
      %v1303 = vld [vmem:[%s5 + $0x10] sm:$0xff]
      %v1304 = vld [vmem:[%s5 + $0x18] sm:$0xff]
      %v1305 = vld [vmem:[%s5 + $0x20] sm:$0xff]
      %v1306 = vld [vmem:[%s5 + $0x28] sm:$0xff]
      %v1307 = vld [vmem:[%s5 + $0x30] sm:$0xff]
      %v1308 = vld [vmem:[%s5 + $0x38] sm:$0xff]
      %v1309 = vld [vmem:[%s5 + $0x40] sm:$0xff]
      %v1310 = vld [vmem:[%s5 + $0x48] sm:$0xff]
      %v1311 = vld [vmem:[%s5 + $0x50] sm:$0xff]
      %v1312 = vld [vmem:[%s5 + $0x58] sm:$0xff]
      %v1313 = vld [vmem:[%s5 + $0x60] sm:$0xff]
      %v1314 = vld [vmem:[%s5 + $0x68] sm:$0xff]
      %v1315 = vld [vmem:[%s5 + $0x70] sm:$0xff]
      %v1316 = vld [vmem:[%s5 + $0x78] sm:$0xff]
      %v1317 = vld [vmem:[%s5 + $0x80] sm:$0xff]
      %v1318 = vld [vmem:[%s5 + $0x88] sm:$0xff]
      %v1319 = vld [vmem:[%s5 + $0x90] sm:$0xff]
      %v1320 = vld [vmem:[%s5 + $0x98] sm:$0xff]
      %v1321 = vld [vmem:[%s5 + $0xa0] sm:$0xff]
      %v1322 = vld [vmem:[%s5 + $0xa8] sm:$0xff]
      %v1323 = vld [vmem:[%s5 + $0xb0] sm:$0xff]
      %v1324 = vld [vmem:[%s5 + $0xb8] sm:$0xff]
      %vm1325 = vcmask 130048
      %v1327 = vsel %vm1325, %v1300, 0
      %1329 = vmatpush.bf16.msra.mxu0 0
      %1330 = vmatpush.bf16.msra.mxu0 0
      %1331 = vmatpush.bf16.msra.mxu0 0
      %1332 = vmatpush.bf16.msra.mxu0 0
      %1333 = vmatpush.bf16.msra.mxu0 0
      %1334 = vmatpush.bf16.msra.mxu0 0
      %1335 = vmatpush.bf16.msra.mxu0 0
      %1336 = vmatpush.bf16.msra.mxu0 %v1298
      %1337 = vmatmul.bf16.gmra.mxu0 %v1327
      %v1338 = vpop.f32.mrf.mxu0
      %v1339 = vadd.f32 0.0, %v1338
      %v1340 = vpop.f32.mrf.mxu0
      %1341 = vdwg.mxu0
      %1342 = vmatpush.bf16.msra.mxu0 0
      %1343 = vmatpush.bf16.msra.mxu0 0
      %1344 = vmatpush.bf16.msra.mxu0 0
      %1345 = vmatpush.bf16.msra.mxu0 0
      %1346 = vmatpush.bf16.msra.mxu0 0
      %1347 = vmatpush.bf16.msra.mxu0 0
      %1348 = vmatpush.bf16.msra.mxu0 0
      %1349 = vmatpush.bf16.msra.mxu0 %v1299
      %1350 = vmatmul.bf16.gmra.mxu0 %v1327
      %v1351 = vpop.f32.mrf.mxu0
      %v1352 = vadd.f32 0.0, %v1351
      %v1353 = vpop.f32.mrf.mxu0
      %1354 = vdwg.mxu0
      %v1355 = vpack.c.bf16 %v1339, %v1339
      %v1356 = vpack.c.bf16 %v1352, %v1352
      %s1357 = scalar_lea.vmem %s4, 4
      %v1358 = vld [vmem:[%s1357] sm:$0xf]
      %s1359 = scalar_lea.vmem %s5, 192
      %v1360 = vld [vmem:[%s1359] sm:$0xff]
      %v1361 = vld [vmem:[%s1359 + $0x8] sm:$0xff]
      %v1362 = vld [vmem:[%s1359 + $0x10] sm:$0xff]
      %v1363 = vld [vmem:[%s1359 + $0x18] sm:$0xff]
      %v1364 = vld [vmem:[%s1359 + $0x20] sm:$0xff]
      %v1365 = vld [vmem:[%s1359 + $0x28] sm:$0xff]
      %v1366 = vld [vmem:[%s1359 + $0x30] sm:$0xff]
      %v1367 = vld [vmem:[%s1359 + $0x38] sm:$0xff]
      %v1368 = vld [vmem:[%s1359 + $0x40] sm:$0xff]
      %v1369 = vld [vmem:[%s1359 + $0x48] sm:$0xff]
      %v1370 = vld [vmem:[%s1359 + $0x50] sm:$0xff]
      %v1371 = vld [vmem:[%s1359 + $0x58] sm:$0xff]
      %v1372 = vld [vmem:[%s1359 + $0x60] sm:$0xff]
      %v1373 = vld [vmem:[%s1359 + $0x68] sm:$0xff]
      %v1374 = vld [vmem:[%s1359 + $0x70] sm:$0xff]
      %v1375 = vld [vmem:[%s1359 + $0x78] sm:$0xff]
      %v1376 = vld [vmem:[%s1359 + $0x80] sm:$0xff]
      %v1377 = vld [vmem:[%s1359 + $0x88] sm:$0xff]
      %v1378 = vld [vmem:[%s1359 + $0x90] sm:$0xff]
      %v1379 = vld [vmem:[%s1359 + $0x98] sm:$0xff]
      %v1380 = vld [vmem:[%s1359 + $0xa0] sm:$0xff]
      %v1381 = vld [vmem:[%s1359 + $0xa8] sm:$0xff]
      %v1382 = vld [vmem:[%s1359 + $0xb0] sm:$0xff]
      %v1383 = vld [vmem:[%s1359 + $0xb8] sm:$0xff]
      %v1385 = vsel %vm1325, %v1358, 0
      %1387 = vmatpush.bf16.msra.mxu0 0
      %1388 = vmatpush.bf16.msra.mxu0 0
      %1389 = vmatpush.bf16.msra.mxu0 0
      %1390 = vmatpush.bf16.msra.mxu0 0
      %1391 = vmatpush.bf16.msra.mxu0 0
      %1392 = vmatpush.bf16.msra.mxu0 0
      %1393 = vmatpush.bf16.msra.mxu0 0
      %1394 = vmatpush.bf16.msra.mxu0 %v1298
      %1395 = vmatmul.bf16.gmra.mxu0 %v1385
      %v1396 = vpop.f32.mrf.mxu0
      %v1397 = vadd.f32 0.0, %v1396
      %v1398 = vpop.f32.mrf.mxu0
      %1399 = vdwg.mxu0
      %1400 = vmatpush.bf16.msra.mxu0 0
      %1401 = vmatpush.bf16.msra.mxu0 0
      %1402 = vmatpush.bf16.msra.mxu0 0
      %1403 = vmatpush.bf16.msra.mxu0 0
      %1404 = vmatpush.bf16.msra.mxu0 0
      %1405 = vmatpush.bf16.msra.mxu0 0
      %1406 = vmatpush.bf16.msra.mxu0 0
      %1407 = vmatpush.bf16.msra.mxu0 %v1299
      %1408 = vmatmul.bf16.gmra.mxu0 %v1385
      %v1409 = vpop.f32.mrf.mxu0
      %v1410 = vadd.f32 0.0, %v1409
      %v1411 = vpop.f32.mrf.mxu0
      %1412 = vdwg.mxu0
      %v1413 = vpack.c.bf16 %v1397, %v1397
      %v1414 = vpack.c.bf16 %v1410, %v1410
      %v1439 = vunpack.c.l.b16 %v1360
      %v1440 = vunpack.c.h.b16 %v1360
      %v1441 = vunpack.c.l.b16 %v1361
      %v1442 = vunpack.c.h.b16 %v1361
      %v1443 = vunpack.c.l.b16 %v1362
      %v1444 = vunpack.c.h.b16 %v1362
      %v1445 = vunpack.c.l.b16 %v1363
      %v1446 = vunpack.c.h.b16 %v1363
      %v1447 = vunpack.c.l.b16 %v1364
      %v1448 = vunpack.c.h.b16 %v1364
      %v1449 = vunpack.c.l.b16 %v1365
      %v1450 = vunpack.c.h.b16 %v1365
      %v1451 = vunpack.c.l.b16 %v1366
      %v1452 = vunpack.c.h.b16 %v1366
      %v1453 = vunpack.c.l.b16 %v1367
      %v1454 = vunpack.c.h.b16 %v1367
      %v1455 = vunpack.c.l.b16 %v1368
      %v1456 = vunpack.c.h.b16 %v1368
      %v1457 = vunpack.c.l.b16 %v1369
      %v1458 = vunpack.c.h.b16 %v1369
      %v1459 = vunpack.c.l.b16 %v1370
      %v1460 = vunpack.c.h.b16 %v1370
      %v1461 = vunpack.c.l.b16 %v1371
      %v1462 = vunpack.c.h.b16 %v1371
      %v1463 = vunpack.c.l.b16 %v1372
      %v1464 = vunpack.c.h.b16 %v1372
      %v1465 = vunpack.c.l.b16 %v1373
      %v1466 = vunpack.c.h.b16 %v1373
      %v1467 = vunpack.c.l.b16 %v1374
      %v1468 = vunpack.c.h.b16 %v1374
      %v1469 = vunpack.c.l.b16 %v1375
      %v1470 = vunpack.c.h.b16 %v1375
      %v1471 = vunpack.c.l.b16 %v1376
      %v1472 = vunpack.c.h.b16 %v1376
      %v1473 = vunpack.c.l.b16 %v1377
      %v1474 = vunpack.c.h.b16 %v1377
      %v1475 = vunpack.c.l.b16 %v1378
      %v1476 = vunpack.c.h.b16 %v1378
      %v1477 = vunpack.c.l.b16 %v1379
      %v1478 = vunpack.c.h.b16 %v1379
      %v1479 = vunpack.c.l.b16 %v1380
      %v1480 = vunpack.c.h.b16 %v1380
      %v1481 = vunpack.c.l.b16 %v1381
      %v1482 = vunpack.c.h.b16 %v1381
      %v1483 = vunpack.c.l.b16 %v1382
      %v1484 = vunpack.c.h.b16 %v1382
      %v1485 = vunpack.c.l.b16 %v1383
      %v1486 = vunpack.c.h.b16 %v1383
      %v1487 = vpack.c.b16 %v1441, %v1439
      %v1488 = vpack.c.b16 %v1442, %v1440
      %v1489 = vpack.c.b16 %v1445, %v1443
      %v1490 = vpack.c.b16 %v1446, %v1444
      %v1491 = vpack.c.b16 %v1449, %v1447
      %v1492 = vpack.c.b16 %v1450, %v1448
      %v1493 = vpack.c.b16 %v1453, %v1451
      %v1494 = vpack.c.b16 %v1454, %v1452
      %v1495 = vpack.c.b16 %v1457, %v1455
      %v1496 = vpack.c.b16 %v1458, %v1456
      %v1497 = vpack.c.b16 %v1461, %v1459
      %v1498 = vpack.c.b16 %v1462, %v1460
      %v1499 = vpack.c.b16 %v1465, %v1463
      %v1500 = vpack.c.b16 %v1466, %v1464
      %v1501 = vpack.c.b16 %v1469, %v1467
      %v1502 = vpack.c.b16 %v1470, %v1468
      %v1503 = vpack.c.b16 %v1473, %v1471
      %v1504 = vpack.c.b16 %v1474, %v1472
      %v1505 = vpack.c.b16 %v1477, %v1475
      %v1506 = vpack.c.b16 %v1478, %v1476
      %v1507 = vpack.c.b16 %v1481, %v1479
      %v1508 = vpack.c.b16 %v1482, %v1480
      %v1509 = vpack.c.b16 %v1485, %v1483
      %v1510 = vpack.c.b16 %v1486, %v1484
      %vm1535 = vcmask 523264
      %v1537 = vsel %vm1535, %v1414, 0
      %1539 = vmatpush.bf16.msra.mxu0 %v1501
      %1540 = vmatpush.bf16.msra.mxu0 %v1499
      %1541 = vmatpush.bf16.msra.mxu0 %v1497
      %1542 = vmatpush.bf16.msra.mxu0 %v1495
      %1543 = vmatpush.bf16.msra.mxu0 %v1493
      %1544 = vmatpush.bf16.msra.mxu0 %v1491
      %1545 = vmatpush.bf16.msra.mxu0 %v1489
      %1546 = vmatpush.bf16.msra.mxu0 %v1487
      %1547 = vmatmul.bf16.gmra.mxu0 %v1413
      %v1548 = vpop.f32.mrf.mxu0
      %v1549 = vadd.f32 0.0, %v1548
      %v1550 = vpop.f32.mrf.mxu0
      %1551 = vdwg.mxu0
      %1552 = vmatpush.bf16.msra.mxu0 0
      %1553 = vmatpush.bf16.msra.mxu0 0
      %1554 = vmatpush.bf16.msra.mxu0 0
      %1555 = vmatpush.bf16.msra.mxu0 0
      %1556 = vmatpush.bf16.msra.mxu0 %v1509
      %1557 = vmatpush.bf16.msra.mxu0 %v1507
      %1558 = vmatpush.bf16.msra.mxu0 %v1505
      %1559 = vmatpush.bf16.msra.mxu0 %v1503
      %1560 = vmatmul.bf16.gmra.mxu0 %v1537
      %v1561 = vpop.f32.mrf.mxu0
      %v1562 = vadd.f32 %v1549, %v1561
      %v1563 = vpop.f32.mrf.mxu0
      %1564 = vdwg.mxu0
      %1565 = vmatpush.bf16.msra.mxu0 %v1502
      %1566 = vmatpush.bf16.msra.mxu0 %v1500
      %1567 = vmatpush.bf16.msra.mxu0 %v1498
      %1568 = vmatpush.bf16.msra.mxu0 %v1496
      %1569 = vmatpush.bf16.msra.mxu0 %v1494
      %1570 = vmatpush.bf16.msra.mxu0 %v1492
      %1571 = vmatpush.bf16.msra.mxu0 %v1490
      %1572 = vmatpush.bf16.msra.mxu0 %v1488
      %1573 = vmatmul.bf16.gmra.mxu0 %v1413
      %v1574 = vpop.f32.mrf.mxu0
      %v1575 = vadd.f32 0.0, %v1574
      %v1576 = vpop.f32.mrf.mxu0
      %1577 = vdwg.mxu0
      %1578 = vmatpush.bf16.msra.mxu0 0
      %1579 = vmatpush.bf16.msra.mxu0 0
      %1580 = vmatpush.bf16.msra.mxu0 0
      %1581 = vmatpush.bf16.msra.mxu0 0
      %1582 = vmatpush.bf16.msra.mxu0 %v1510
      %1583 = vmatpush.bf16.msra.mxu0 %v1508
      %1584 = vmatpush.bf16.msra.mxu0 %v1506
      %1585 = vmatpush.bf16.msra.mxu0 %v1504
      %1586 = vmatmul.bf16.gmra.mxu0 %v1537
      %v1587 = vpop.f32.mrf.mxu0
      %v1588 = vadd.f32 %v1575, %v1587
      %v1589 = vpop.f32.mrf.mxu0
      %1590 = vdwg.mxu0
      %v1615 = vunpack.c.l.b16 %v1301
      %v1616 = vunpack.c.h.b16 %v1301
      %v1617 = vunpack.c.l.b16 %v1302
      %v1618 = vunpack.c.h.b16 %v1302
      %v1619 = vunpack.c.l.b16 %v1303
      %v1620 = vunpack.c.h.b16 %v1303
      %v1621 = vunpack.c.l.b16 %v1304
      %v1622 = vunpack.c.h.b16 %v1304
      %v1623 = vunpack.c.l.b16 %v1305
      %v1624 = vunpack.c.h.b16 %v1305
      %v1625 = vunpack.c.l.b16 %v1306
      %v1626 = vunpack.c.h.b16 %v1306
      %v1627 = vunpack.c.l.b16 %v1307
      %v1628 = vunpack.c.h.b16 %v1307
      %v1629 = vunpack.c.l.b16 %v1308
      %v1630 = vunpack.c.h.b16 %v1308
      %v1631 = vunpack.c.l.b16 %v1309
      %v1632 = vunpack.c.h.b16 %v1309
      %v1633 = vunpack.c.l.b16 %v1310
      %v1634 = vunpack.c.h.b16 %v1310
      %v1635 = vunpack.c.l.b16 %v1311
      %v1636 = vunpack.c.h.b16 %v1311
      %v1637 = vunpack.c.l.b16 %v1312
      %v1638 = vunpack.c.h.b16 %v1312
      %v1639 = vunpack.c.l.b16 %v1313
      %v1640 = vunpack.c.h.b16 %v1313
      %v1641 = vunpack.c.l.b16 %v1314
      %v1642 = vunpack.c.h.b16 %v1314
      %v1643 = vunpack.c.l.b16 %v1315
      %v1644 = vunpack.c.h.b16 %v1315
      %v1645 = vunpack.c.l.b16 %v1316
      %v1646 = vunpack.c.h.b16 %v1316
      %v1647 = vunpack.c.l.b16 %v1317
      %v1648 = vunpack.c.h.b16 %v1317
      %v1649 = vunpack.c.l.b16 %v1318
      %v1650 = vunpack.c.h.b16 %v1318
      %v1651 = vunpack.c.l.b16 %v1319
      %v1652 = vunpack.c.h.b16 %v1319
      %v1653 = vunpack.c.l.b16 %v1320
      %v1654 = vunpack.c.h.b16 %v1320
      %v1655 = vunpack.c.l.b16 %v1321
      %v1656 = vunpack.c.h.b16 %v1321
      %v1657 = vunpack.c.l.b16 %v1322
      %v1658 = vunpack.c.h.b16 %v1322
      %v1659 = vunpack.c.l.b16 %v1323
      %v1660 = vunpack.c.h.b16 %v1323
      %v1661 = vunpack.c.l.b16 %v1324
      %v1662 = vunpack.c.h.b16 %v1324
      %v1663 = vpack.c.b16 %v1617, %v1615
      %v1664 = vpack.c.b16 %v1618, %v1616
      %v1665 = vpack.c.b16 %v1621, %v1619
      %v1666 = vpack.c.b16 %v1622, %v1620
      %v1667 = vpack.c.b16 %v1625, %v1623
      %v1668 = vpack.c.b16 %v1626, %v1624
      %v1669 = vpack.c.b16 %v1629, %v1627
      %v1670 = vpack.c.b16 %v1630, %v1628
      %v1671 = vpack.c.b16 %v1633, %v1631
      %v1672 = vpack.c.b16 %v1634, %v1632
      %v1673 = vpack.c.b16 %v1637, %v1635
      %v1674 = vpack.c.b16 %v1638, %v1636
      %v1675 = vpack.c.b16 %v1641, %v1639
      %v1676 = vpack.c.b16 %v1642, %v1640
      %v1677 = vpack.c.b16 %v1645, %v1643
      %v1678 = vpack.c.b16 %v1646, %v1644
      %v1679 = vpack.c.b16 %v1649, %v1647
      %v1680 = vpack.c.b16 %v1650, %v1648
      %v1681 = vpack.c.b16 %v1653, %v1651
      %v1682 = vpack.c.b16 %v1654, %v1652
      %v1683 = vpack.c.b16 %v1657, %v1655
      %v1684 = vpack.c.b16 %v1658, %v1656
      %v1685 = vpack.c.b16 %v1661, %v1659
      %v1686 = vpack.c.b16 %v1662, %v1660
      %v1712 = vsel %vm1535, %v1356, 0
      %1714 = vmatpush.bf16.msra.mxu0 %v1677
      %1715 = vmatpush.bf16.msra.mxu0 %v1675
      %1716 = vmatpush.bf16.msra.mxu0 %v1673
      %1717 = vmatpush.bf16.msra.mxu0 %v1671
      %1718 = vmatpush.bf16.msra.mxu0 %v1669
      %1719 = vmatpush.bf16.msra.mxu0 %v1667
      %1720 = vmatpush.bf16.msra.mxu0 %v1665
      %1721 = vmatpush.bf16.msra.mxu0 %v1663
      %1722 = vmatmul.bf16.gmra.mxu0 %v1355
      %v1723 = vpop.f32.mrf.mxu0
      %v1724 = vadd.f32 %v1562, %v1723
      %v1725 = vpop.f32.mrf.mxu0
      %1726 = vdwg.mxu0
      %1727 = vmatpush.bf16.msra.mxu0 0
      %1728 = vmatpush.bf16.msra.mxu0 0
      %1729 = vmatpush.bf16.msra.mxu0 0
      %1730 = vmatpush.bf16.msra.mxu0 0
      %1731 = vmatpush.bf16.msra.mxu0 %v1685
      %1732 = vmatpush.bf16.msra.mxu0 %v1683
      %1733 = vmatpush.bf16.msra.mxu0 %v1681
      %1734 = vmatpush.bf16.msra.mxu0 %v1679
      %1735 = vmatmul.bf16.gmra.mxu0 %v1712
      %v1736 = vpop.f32.mrf.mxu0
      %v1737 = vadd.f32 %v1724, %v1736
      %v1738 = vpop.f32.mrf.mxu0
      %1739 = vdwg.mxu0
      %1740 = vmatpush.bf16.msra.mxu0 %v1678
      %1741 = vmatpush.bf16.msra.mxu0 %v1676
      %1742 = vmatpush.bf16.msra.mxu0 %v1674
      %1743 = vmatpush.bf16.msra.mxu0 %v1672
      %1744 = vmatpush.bf16.msra.mxu0 %v1670
      %1745 = vmatpush.bf16.msra.mxu0 %v1668
      %1746 = vmatpush.bf16.msra.mxu0 %v1666
      %1747 = vmatpush.bf16.msra.mxu0 %v1664
      %1748 = vmatmul.bf16.gmra.mxu0 %v1355
      %v1749 = vpop.f32.mrf.mxu0
      %v1750 = vadd.f32 %v1588, %v1749
      %v1751 = vpop.f32.mrf.mxu0
      %1752 = vdwg.mxu0
      %1753 = vmatpush.bf16.msra.mxu0 0
      %1754 = vmatpush.bf16.msra.mxu0 0
      %1755 = vmatpush.bf16.msra.mxu0 0
      %1756 = vmatpush.bf16.msra.mxu0 0
      %1757 = vmatpush.bf16.msra.mxu0 %v1686
      %1758 = vmatpush.bf16.msra.mxu0 %v1684
      %1759 = vmatpush.bf16.msra.mxu0 %v1682
      %1760 = vmatpush.bf16.msra.mxu0 %v1680
      %1761 = vmatmul.bf16.gmra.mxu0 %v1712
      %v1762 = vpop.f32.mrf.mxu0
      %v1763 = vadd.f32 %v1750, %v1762
      %v1764 = vpop.f32.mrf.mxu0
      %1765 = vdwg.mxu0
      %s1766 = scalar_lea.vmem %s4, 8
      %v1767 = vld [vmem:[%s1766] sm:$0xf]
      %s1768 = scalar_lea.vmem %s5, 384
      %v1769 = vld [vmem:[%s1768] sm:$0xff]
      %v1770 = vld [vmem:[%s1768 + $0x8] sm:$0xff]
      %v1771 = vld [vmem:[%s1768 + $0x10] sm:$0xff]
      %v1772 = vld [vmem:[%s1768 + $0x18] sm:$0xff]
      %v1773 = vld [vmem:[%s1768 + $0x20] sm:$0xff]
      %v1774 = vld [vmem:[%s1768 + $0x28] sm:$0xff]
      %v1775 = vld [vmem:[%s1768 + $0x30] sm:$0xff]
      %v1776 = vld [vmem:[%s1768 + $0x38] sm:$0xff]
      %v1777 = vld [vmem:[%s1768 + $0x40] sm:$0xff]
      %v1778 = vld [vmem:[%s1768 + $0x48] sm:$0xff]
      %v1779 = vld [vmem:[%s1768 + $0x50] sm:$0xff]
      %v1780 = vld [vmem:[%s1768 + $0x58] sm:$0xff]
      %v1781 = vld [vmem:[%s1768 + $0x60] sm:$0xff]
      %v1782 = vld [vmem:[%s1768 + $0x68] sm:$0xff]
      %v1783 = vld [vmem:[%s1768 + $0x70] sm:$0xff]
      %v1784 = vld [vmem:[%s1768 + $0x78] sm:$0xff]
      %v1785 = vld [vmem:[%s1768 + $0x80] sm:$0xff]
      %v1786 = vld [vmem:[%s1768 + $0x88] sm:$0xff]
      %v1787 = vld [vmem:[%s1768 + $0x90] sm:$0xff]
      %v1788 = vld [vmem:[%s1768 + $0x98] sm:$0xff]
      %v1789 = vld [vmem:[%s1768 + $0xa0] sm:$0xff]
      %v1790 = vld [vmem:[%s1768 + $0xa8] sm:$0xff]
      %v1791 = vld [vmem:[%s1768 + $0xb0] sm:$0xff]
      %v1792 = vld [vmem:[%s1768 + $0xb8] sm:$0xff]
      %v1794 = vsel %vm1325, %v1767, 0
      %1796 = vmatpush.bf16.msra.mxu0 0
      %1797 = vmatpush.bf16.msra.mxu0 0
      %1798 = vmatpush.bf16.msra.mxu0 0
      %1799 = vmatpush.bf16.msra.mxu0 0
      %1800 = vmatpush.bf16.msra.mxu0 0
      %1801 = vmatpush.bf16.msra.mxu0 0
      %1802 = vmatpush.bf16.msra.mxu0 0
      %1803 = vmatpush.bf16.msra.mxu0 %v1298
      %1804 = vmatmul.bf16.gmra.mxu0 %v1794
      %v1805 = vpop.f32.mrf.mxu0
      %v1806 = vadd.f32 0.0, %v1805
      %v1807 = vpop.f32.mrf.mxu0
      %1808 = vdwg.mxu0
      %1809 = vmatpush.bf16.msra.mxu0 0
      %1810 = vmatpush.bf16.msra.mxu0 0
      %1811 = vmatpush.bf16.msra.mxu0 0
      %1812 = vmatpush.bf16.msra.mxu0 0
      %1813 = vmatpush.bf16.msra.mxu0 0
      %1814 = vmatpush.bf16.msra.mxu0 0
      %1815 = vmatpush.bf16.msra.mxu0 0
      %1816 = vmatpush.bf16.msra.mxu0 %v1299
      %1817 = vmatmul.bf16.gmra.mxu0 %v1794
      %v1818 = vpop.f32.mrf.mxu0
      %v1819 = vadd.f32 0.0, %v1818
      %v1820 = vpop.f32.mrf.mxu0
      %1821 = vdwg.mxu0
      %v1822 = vpack.c.bf16 %v1806, %v1806
      %v1823 = vpack.c.bf16 %v1819, %v1819
      %v1848 = vunpack.c.l.b16 %v1769
      %v1849 = vunpack.c.h.b16 %v1769
      %v1850 = vunpack.c.l.b16 %v1770
      %v1851 = vunpack.c.h.b16 %v1770
      %v1852 = vunpack.c.l.b16 %v1771
      %v1853 = vunpack.c.h.b16 %v1771
      %v1854 = vunpack.c.l.b16 %v1772
      %v1855 = vunpack.c.h.b16 %v1772
      %v1856 = vunpack.c.l.b16 %v1773
      %v1857 = vunpack.c.h.b16 %v1773
      %v1858 = vunpack.c.l.b16 %v1774
      %v1859 = vunpack.c.h.b16 %v1774
      %v1860 = vunpack.c.l.b16 %v1775
      %v1861 = vunpack.c.h.b16 %v1775
      %v1862 = vunpack.c.l.b16 %v1776
      %v1863 = vunpack.c.h.b16 %v1776
      %v1864 = vunpack.c.l.b16 %v1777
      %v1865 = vunpack.c.h.b16 %v1777
      %v1866 = vunpack.c.l.b16 %v1778
      %v1867 = vunpack.c.h.b16 %v1778
      %v1868 = vunpack.c.l.b16 %v1779
      %v1869 = vunpack.c.h.b16 %v1779
      %v1870 = vunpack.c.l.b16 %v1780
      %v1871 = vunpack.c.h.b16 %v1780
      %v1872 = vunpack.c.l.b16 %v1781
      %v1873 = vunpack.c.h.b16 %v1781
      %v1874 = vunpack.c.l.b16 %v1782
      %v1875 = vunpack.c.h.b16 %v1782
      %v1876 = vunpack.c.l.b16 %v1783
      %v1877 = vunpack.c.h.b16 %v1783
      %v1878 = vunpack.c.l.b16 %v1784
      %v1879 = vunpack.c.h.b16 %v1784
      %v1880 = vunpack.c.l.b16 %v1785
      %v1881 = vunpack.c.h.b16 %v1785
      %v1882 = vunpack.c.l.b16 %v1786
      %v1883 = vunpack.c.h.b16 %v1786
      %v1884 = vunpack.c.l.b16 %v1787
      %v1885 = vunpack.c.h.b16 %v1787
      %v1886 = vunpack.c.l.b16 %v1788
      %v1887 = vunpack.c.h.b16 %v1788
      %v1888 = vunpack.c.l.b16 %v1789
      %v1889 = vunpack.c.h.b16 %v1789
      %v1890 = vunpack.c.l.b16 %v1790
      %v1891 = vunpack.c.h.b16 %v1790
      %v1892 = vunpack.c.l.b16 %v1791
      %v1893 = vunpack.c.h.b16 %v1791
      %v1894 = vunpack.c.l.b16 %v1792
      %v1895 = vunpack.c.h.b16 %v1792
      %v1896 = vpack.c.b16 %v1850, %v1848
      %v1897 = vpack.c.b16 %v1851, %v1849
      %v1898 = vpack.c.b16 %v1854, %v1852
      %v1899 = vpack.c.b16 %v1855, %v1853
      %v1900 = vpack.c.b16 %v1858, %v1856
      %v1901 = vpack.c.b16 %v1859, %v1857
      %v1902 = vpack.c.b16 %v1862, %v1860
      %v1903 = vpack.c.b16 %v1863, %v1861
      %v1904 = vpack.c.b16 %v1866, %v1864
      %v1905 = vpack.c.b16 %v1867, %v1865
      %v1906 = vpack.c.b16 %v1870, %v1868
      %v1907 = vpack.c.b16 %v1871, %v1869
      %v1908 = vpack.c.b16 %v1874, %v1872
      %v1909 = vpack.c.b16 %v1875, %v1873
      %v1910 = vpack.c.b16 %v1878, %v1876
      %v1911 = vpack.c.b16 %v1879, %v1877
      %v1912 = vpack.c.b16 %v1882, %v1880
      %v1913 = vpack.c.b16 %v1883, %v1881
      %v1914 = vpack.c.b16 %v1886, %v1884
      %v1915 = vpack.c.b16 %v1887, %v1885
      %v1916 = vpack.c.b16 %v1890, %v1888
      %v1917 = vpack.c.b16 %v1891, %v1889
      %v1918 = vpack.c.b16 %v1894, %v1892
      %v1919 = vpack.c.b16 %v1895, %v1893
      %v1945 = vsel %vm1535, %v1823, 0
      %1947 = vmatpush.bf16.msra.mxu0 %v1910
      %1948 = vmatpush.bf16.msra.mxu0 %v1908
      %1949 = vmatpush.bf16.msra.mxu0 %v1906
      %1950 = vmatpush.bf16.msra.mxu0 %v1904
      %1951 = vmatpush.bf16.msra.mxu0 %v1902
      %1952 = vmatpush.bf16.msra.mxu0 %v1900
      %1953 = vmatpush.bf16.msra.mxu0 %v1898
      %1954 = vmatpush.bf16.msra.mxu0 %v1896
      %1955 = vmatmul.bf16.gmra.mxu0 %v1822
      %v1956 = vpop.f32.mrf.mxu0
      %v1957 = vadd.f32 0.0, %v1956
      %v1958 = vpop.f32.mrf.mxu0
      %1959 = vdwg.mxu0
      %1960 = vmatpush.bf16.msra.mxu0 0
      %1961 = vmatpush.bf16.msra.mxu0 0
      %1962 = vmatpush.bf16.msra.mxu0 0
      %1963 = vmatpush.bf16.msra.mxu0 0
      %1964 = vmatpush.bf16.msra.mxu0 %v1918
      %1965 = vmatpush.bf16.msra.mxu0 %v1916
      %1966 = vmatpush.bf16.msra.mxu0 %v1914
      %1967 = vmatpush.bf16.msra.mxu0 %v1912
      %1968 = vmatmul.bf16.gmra.mxu0 %v1945
      %v1969 = vpop.f32.mrf.mxu0
      %v1970 = vadd.f32 %v1957, %v1969
      %v1971 = vpop.f32.mrf.mxu0
      %1972 = vdwg.mxu0
      %1973 = vmatpush.bf16.msra.mxu0 %v1911
      %1974 = vmatpush.bf16.msra.mxu0 %v1909
      %1975 = vmatpush.bf16.msra.mxu0 %v1907
      %1976 = vmatpush.bf16.msra.mxu0 %v1905
      %1977 = vmatpush.bf16.msra.mxu0 %v1903
      %1978 = vmatpush.bf16.msra.mxu0 %v1901
      %1979 = vmatpush.bf16.msra.mxu0 %v1899
      %1980 = vmatpush.bf16.msra.mxu0 %v1897
      %1981 = vmatmul.bf16.gmra.mxu0 %v1822
      %v1982 = vpop.f32.mrf.mxu0
      %v1983 = vadd.f32 0.0, %v1982
      %v1984 = vpop.f32.mrf.mxu0
      %1985 = vdwg.mxu0
      %1986 = vmatpush.bf16.msra.mxu0 0
      %1987 = vmatpush.bf16.msra.mxu0 0
      %1988 = vmatpush.bf16.msra.mxu0 0
      %1989 = vmatpush.bf16.msra.mxu0 0
      %1990 = vmatpush.bf16.msra.mxu0 %v1919
      %1991 = vmatpush.bf16.msra.mxu0 %v1917
      %1992 = vmatpush.bf16.msra.mxu0 %v1915
      %1993 = vmatpush.bf16.msra.mxu0 %v1913
      %1994 = vmatmul.bf16.gmra.mxu0 %v1945
      %v1995 = vpop.f32.mrf.mxu0
      %v1996 = vadd.f32 %v1983, %v1995
      %v1997 = vpop.f32.mrf.mxu0
      %1998 = vdwg.mxu0
      %v1999 = vadd.f32 %v1737, %v1970
      %v2000 = vadd.f32 %v1763, %v1996
      %s2001 = scalar_lea.vmem %s4, 12
      %v2002 = vld [vmem:[%s2001] sm:$0xf]
      %s2003 = scalar_lea.vmem %s5, 576
      %v2004 = vld [vmem:[%s2003] sm:$0xff]
      %v2005 = vld [vmem:[%s2003 + $0x8] sm:$0xff]
      %v2006 = vld [vmem:[%s2003 + $0x10] sm:$0xff]
      %v2007 = vld [vmem:[%s2003 + $0x18] sm:$0xff]
      %v2008 = vld [vmem:[%s2003 + $0x20] sm:$0xff]
      %v2009 = vld [vmem:[%s2003 + $0x28] sm:$0xff]
      %v2010 = vld [vmem:[%s2003 + $0x30] sm:$0xff]
      %v2011 = vld [vmem:[%s2003 + $0x38] sm:$0xff]
      %v2012 = vld [vmem:[%s2003 + $0x40] sm:$0xff]
      %v2013 = vld [vmem:[%s2003 + $0x48] sm:$0xff]
      %v2014 = vld [vmem:[%s2003 + $0x50] sm:$0xff]
      %v2015 = vld [vmem:[%s2003 + $0x58] sm:$0xff]
      %v2016 = vld [vmem:[%s2003 + $0x60] sm:$0xff]
      %v2017 = vld [vmem:[%s2003 + $0x68] sm:$0xff]
      %v2018 = vld [vmem:[%s2003 + $0x70] sm:$0xff]
      %v2019 = vld [vmem:[%s2003 + $0x78] sm:$0xff]
      %v2020 = vld [vmem:[%s2003 + $0x80] sm:$0xff]
      %v2021 = vld [vmem:[%s2003 + $0x88] sm:$0xff]
      %v2022 = vld [vmem:[%s2003 + $0x90] sm:$0xff]
      %v2023 = vld [vmem:[%s2003 + $0x98] sm:$0xff]
      %v2024 = vld [vmem:[%s2003 + $0xa0] sm:$0xff]
      %v2025 = vld [vmem:[%s2003 + $0xa8] sm:$0xff]
      %v2026 = vld [vmem:[%s2003 + $0xb0] sm:$0xff]
      %v2027 = vld [vmem:[%s2003 + $0xb8] sm:$0xff]
      %v2029 = vsel %vm1325, %v2002, 0
      %2031 = vmatpush.bf16.msra.mxu0 0
      %2032 = vmatpush.bf16.msra.mxu0 0
      %2033 = vmatpush.bf16.msra.mxu0 0
      %2034 = vmatpush.bf16.msra.mxu0 0
      %2035 = vmatpush.bf16.msra.mxu0 0
      %2036 = vmatpush.bf16.msra.mxu0 0
      %2037 = vmatpush.bf16.msra.mxu0 0
      %2038 = vmatpush.bf16.msra.mxu0 %v1298
      %2039 = vmatmul.bf16.gmra.mxu0 %v2029
      %v2040 = vpop.f32.mrf.mxu0
      %v2041 = vadd.f32 0.0, %v2040
      %v2042 = vpop.f32.mrf.mxu0
      %2043 = vdwg.mxu0
      %2044 = vmatpush.bf16.msra.mxu0 0
      %2045 = vmatpush.bf16.msra.mxu0 0
      %2046 = vmatpush.bf16.msra.mxu0 0
      %2047 = vmatpush.bf16.msra.mxu0 0
      %2048 = vmatpush.bf16.msra.mxu0 0
      %2049 = vmatpush.bf16.msra.mxu0 0
      %2050 = vmatpush.bf16.msra.mxu0 0
      %2051 = vmatpush.bf16.msra.mxu0 %v1299
      %2052 = vmatmul.bf16.gmra.mxu0 %v2029
      %v2053 = vpop.f32.mrf.mxu0
      %v2054 = vadd.f32 0.0, %v2053
      %v2055 = vpop.f32.mrf.mxu0
      %2056 = vdwg.mxu0
      %v2057 = vpack.c.bf16 %v2041, %v2041
      %v2058 = vpack.c.bf16 %v2054, %v2054
      %v2083 = vunpack.c.l.b16 %v2004
      %v2084 = vunpack.c.h.b16 %v2004
      %v2085 = vunpack.c.l.b16 %v2005
      %v2086 = vunpack.c.h.b16 %v2005
      %v2087 = vunpack.c.l.b16 %v2006
      %v2088 = vunpack.c.h.b16 %v2006
      %v2089 = vunpack.c.l.b16 %v2007
      %v2090 = vunpack.c.h.b16 %v2007
      %v2091 = vunpack.c.l.b16 %v2008
      %v2092 = vunpack.c.h.b16 %v2008
      %v2093 = vunpack.c.l.b16 %v2009
      %v2094 = vunpack.c.h.b16 %v2009
      %v2095 = vunpack.c.l.b16 %v2010
      %v2096 = vunpack.c.h.b16 %v2010
      %v2097 = vunpack.c.l.b16 %v2011
      %v2098 = vunpack.c.h.b16 %v2011
      %v2099 = vunpack.c.l.b16 %v2012
      %v2100 = vunpack.c.h.b16 %v2012
      %v2101 = vunpack.c.l.b16 %v2013
      %v2102 = vunpack.c.h.b16 %v2013
      %v2103 = vunpack.c.l.b16 %v2014
      %v2104 = vunpack.c.h.b16 %v2014
      %v2105 = vunpack.c.l.b16 %v2015
      %v2106 = vunpack.c.h.b16 %v2015
      %v2107 = vunpack.c.l.b16 %v2016
      %v2108 = vunpack.c.h.b16 %v2016
      %v2109 = vunpack.c.l.b16 %v2017
      %v2110 = vunpack.c.h.b16 %v2017
      %v2111 = vunpack.c.l.b16 %v2018
      %v2112 = vunpack.c.h.b16 %v2018
      %v2113 = vunpack.c.l.b16 %v2019
      %v2114 = vunpack.c.h.b16 %v2019
      %v2115 = vunpack.c.l.b16 %v2020
      %v2116 = vunpack.c.h.b16 %v2020
      %v2117 = vunpack.c.l.b16 %v2021
      %v2118 = vunpack.c.h.b16 %v2021
      %v2119 = vunpack.c.l.b16 %v2022
      %v2120 = vunpack.c.h.b16 %v2022
      %v2121 = vunpack.c.l.b16 %v2023
      %v2122 = vunpack.c.h.b16 %v2023
      %v2123 = vunpack.c.l.b16 %v2024
      %v2124 = vunpack.c.h.b16 %v2024
      %v2125 = vunpack.c.l.b16 %v2025
      %v2126 = vunpack.c.h.b16 %v2025
      %v2127 = vunpack.c.l.b16 %v2026
      %v2128 = vunpack.c.h.b16 %v2026
      %v2129 = vunpack.c.l.b16 %v2027
      %v2130 = vunpack.c.h.b16 %v2027
      %v2131 = vpack.c.b16 %v2085, %v2083
      %v2132 = vpack.c.b16 %v2086, %v2084
      %v2133 = vpack.c.b16 %v2089, %v2087
      %v2134 = vpack.c.b16 %v2090, %v2088
      %v2135 = vpack.c.b16 %v2093, %v2091
      %v2136 = vpack.c.b16 %v2094, %v2092
      %v2137 = vpack.c.b16 %v2097, %v2095
      %v2138 = vpack.c.b16 %v2098, %v2096
      %v2139 = vpack.c.b16 %v2101, %v2099
      %v2140 = vpack.c.b16 %v2102, %v2100
      %v2141 = vpack.c.b16 %v2105, %v2103
      %v2142 = vpack.c.b16 %v2106, %v2104
      %v2143 = vpack.c.b16 %v2109, %v2107
      %v2144 = vpack.c.b16 %v2110, %v2108
      %v2145 = vpack.c.b16 %v2113, %v2111
      %v2146 = vpack.c.b16 %v2114, %v2112
      %v2147 = vpack.c.b16 %v2117, %v2115
      %v2148 = vpack.c.b16 %v2118, %v2116
      %v2149 = vpack.c.b16 %v2121, %v2119
      %v2150 = vpack.c.b16 %v2122, %v2120
      %v2151 = vpack.c.b16 %v2125, %v2123
      %v2152 = vpack.c.b16 %v2126, %v2124
      %v2153 = vpack.c.b16 %v2129, %v2127
      %v2154 = vpack.c.b16 %v2130, %v2128
      %v2180 = vsel %vm1535, %v2058, 0
      %2182 = vmatpush.bf16.msra.mxu0 %v2145
      %2183 = vmatpush.bf16.msra.mxu0 %v2143
      %2184 = vmatpush.bf16.msra.mxu0 %v2141
      %2185 = vmatpush.bf16.msra.mxu0 %v2139
      %2186 = vmatpush.bf16.msra.mxu0 %v2137
      %2187 = vmatpush.bf16.msra.mxu0 %v2135
      %2188 = vmatpush.bf16.msra.mxu0 %v2133
      %2189 = vmatpush.bf16.msra.mxu0 %v2131
      %2190 = vmatmul.bf16.gmra.mxu0 %v2057
      %v2191 = vpop.f32.mrf.mxu0
      %v2192 = vadd.f32 0.0, %v2191
      %v2193 = vpop.f32.mrf.mxu0
      %2194 = vdwg.mxu0
      %2195 = vmatpush.bf16.msra.mxu0 0
      %2196 = vmatpush.bf16.msra.mxu0 0
      %2197 = vmatpush.bf16.msra.mxu0 0
      %2198 = vmatpush.bf16.msra.mxu0 0
      %2199 = vmatpush.bf16.msra.mxu0 %v2153
      %2200 = vmatpush.bf16.msra.mxu0 %v2151
      %2201 = vmatpush.bf16.msra.mxu0 %v2149
      %2202 = vmatpush.bf16.msra.mxu0 %v2147
      %2203 = vmatmul.bf16.gmra.mxu0 %v2180
      %v2204 = vpop.f32.mrf.mxu0
      %v2205 = vadd.f32 %v2192, %v2204
      %v2206 = vpop.f32.mrf.mxu0
      %2207 = vdwg.mxu0
      %2208 = vmatpush.bf16.msra.mxu0 %v2146
      %2209 = vmatpush.bf16.msra.mxu0 %v2144
      %2210 = vmatpush.bf16.msra.mxu0 %v2142
      %2211 = vmatpush.bf16.msra.mxu0 %v2140
      %2212 = vmatpush.bf16.msra.mxu0 %v2138
      %2213 = vmatpush.bf16.msra.mxu0 %v2136
      %2214 = vmatpush.bf16.msra.mxu0 %v2134
      %2215 = vmatpush.bf16.msra.mxu0 %v2132
      %2216 = vmatmul.bf16.gmra.mxu0 %v2057
      %v2217 = vpop.f32.mrf.mxu0
      %v2218 = vadd.f32 0.0, %v2217
      %v2219 = vpop.f32.mrf.mxu0
      %2220 = vdwg.mxu0
      %2221 = vmatpush.bf16.msra.mxu0 0
      %2222 = vmatpush.bf16.msra.mxu0 0
      %2223 = vmatpush.bf16.msra.mxu0 0
      %2224 = vmatpush.bf16.msra.mxu0 0
      %2225 = vmatpush.bf16.msra.mxu0 %v2154
      %2226 = vmatpush.bf16.msra.mxu0 %v2152
      %2227 = vmatpush.bf16.msra.mxu0 %v2150
      %2228 = vmatpush.bf16.msra.mxu0 %v2148
      %2229 = vmatmul.bf16.gmra.mxu0 %v2180
      %v2230 = vpop.f32.mrf.mxu0
      %v2231 = vadd.f32 %v2218, %v2230
      %v2232 = vpop.f32.mrf.mxu0
      %2233 = vdwg.mxu0
      %v2234 = vadd.f32 %v1999, %v2205
      %v2235 = vadd.f32 %v2000, %v2231
      %v2236 = vld [vmem:[%s6] sm:$0x3]
      %v2238 = vperm.slane %v2236, 0
      %v2239 = vperm.slane %v2236, 1
      %v2242 = vadd.f32 %v2234, %v2238
      %v2243 = vadd.f32 %v2235, %v2239
      %v2244 = vmin.f32 %v2242, 20.0
      %v2245 = vmin.f32 %v2243, 20.0
      %v2246 = vmul.f32 %v2244, 1.442695
      %v2247 = vpow.pop %v2246
      %v2248 = vmul.f32 %v2245, 1.442695
      %v2249 = vpow.pop %v2248
      %v2250 = vadd.f32 %v2247, 1.0
      %v2251 = vadd.f32 %v2249, 1.0
      %v2252 = vmul.f32 %v2250, %v2250
      %v2253 = vmul.f32 %v2251, %v2251
      %v2254 = vsub.f32 %v2252, 1.0
      %v2255 = vsub.f32 %v2253, 1.0
      %v2256 = vadd.f32 %v2252, 1.0
      %v2257 = vadd.f32 %v2253, 1.0
      %v2258 = vrcp.pop %v2256
      %v2259 = vmul.f32 %v2256, %v2258
      %v2260 = vsub.f32 1.0, %v2259
      %v2261 = vmul.f32 %v2258, %v2260
      %v2262 = vadd.f32 %v2258, %v2261
      %vm2263 = vweird.f32 %v2256
      %vm2264 = vweird.f32 %v2258
      %vm2265 = vmor %vm2263, %vm2264
      %v2266 = vsel %vm2265, %v2258, %v2262
      %v2267 = vand.u32 2147483647, %v2256
      %vm2268 = vcmp.eq.f32.partialorder %v2267, 8.507059e+37
      %v2269 = vand.u32 %v2256, 2147483648
      %v2270 = vor.u32 1.1754944e-38, %v2269
      %v2271 = vsel %vm2268, %v2270, %v2266
      %v2272 = vmul.f32 %v2254, %v2271
      %v2273 = vrcp.pop %v2257
      %v2274 = vmul.f32 %v2257, %v2273
      %v2275 = vsub.f32 1.0, %v2274
      %v2276 = vmul.f32 %v2273, %v2275
      %v2277 = vadd.f32 %v2273, %v2276
      %vm2278 = vweird.f32 %v2257
      %vm2279 = vweird.f32 %v2273
      %vm2280 = vmor %vm2278, %vm2279
      %v2281 = vsel %vm2280, %v2273, %v2277
      %v2282 = vand.u32 2147483647, %v2257
      %vm2283 = vcmp.eq.f32.partialorder %v2282, 8.507059e+37
      %v2284 = vand.u32 %v2257, 2147483648
      %v2285 = vor.u32 1.1754944e-38, %v2284
      %v2286 = vsel %vm2283, %v2285, %v2281
      %v2287 = vmul.f32 %v2255, %v2286
      %vm2288 = vcmp.gt.f32.partialorder %v2242, 20.0
      %vm2289 = vcmp.gt.f32.partialorder %v2243, 20.0
      %v2290 = vsel %vm2288, 1.0, %v2272
      %v2291 = vsel %vm2289, 1.0, %v2287
      %v2292 = vmul.f32 %v2242, %v2290
      %v2293 = vmul.f32 %v2243, %v2291
      %v2294 = vpack.c.bf16 %v2292, %v2292
      %v2295 = vpack.c.bf16 %v2293, %v2293
      %v2296 = vld [vmem:[%s7] sm:$0x3]
      %v2297 = vld [vmem:[%s8] sm:$0xff]
      %v2298 = vld [vmem:[%s8 + $0x8] sm:$0xff]
      %v2299 = vld [vmem:[%s8 + $0x10] sm:$0xff]
      %v2300 = vld [vmem:[%s8 + $0x18] sm:$0xff]
      %v2301 = vld [vmem:[%s8 + $0x20] sm:$0xff]
      %v2302 = vld [vmem:[%s8 + $0x28] sm:$0xff]
      %v2303 = vld [vmem:[%s8 + $0x30] sm:$0xff]
      %v2304 = vld [vmem:[%s8 + $0x38] sm:$0xff]
      %v2305 = vld [vmem:[%s8 + $0x40] sm:$0xff]
      %v2306 = vld [vmem:[%s8 + $0x48] sm:$0xff]
      %v2307 = vld [vmem:[%s8 + $0x50] sm:$0xff]
      %v2308 = vld [vmem:[%s8 + $0x58] sm:$0xff]
      %v2309 = vld [vmem:[%s8 + $0x60] sm:$0xff]
      %v2310 = vld [vmem:[%s8 + $0x68] sm:$0xff]
      %v2311 = vld [vmem:[%s8 + $0x70] sm:$0xff]
      %v2312 = vld [vmem:[%s8 + $0x78] sm:$0xff]
      %v2313 = vld [vmem:[%s8 + $0x80] sm:$0xff]
      %v2314 = vld [vmem:[%s8 + $0x88] sm:$0xff]
      %v2315 = vld [vmem:[%s8 + $0x90] sm:$0xff]
      %v2316 = vld [vmem:[%s8 + $0x98] sm:$0xff]
      %v2317 = vld [vmem:[%s8 + $0xa0] sm:$0xff]
      %v2318 = vld [vmem:[%s8 + $0xa8] sm:$0xff]
      %v2319 = vld [vmem:[%s8 + $0xb0] sm:$0xff]
      %v2320 = vld [vmem:[%s8 + $0xb8] sm:$0xff]
      %vm2321 = vcmask 64512
      %v2323 = vsel %vm2321, %v2296, 0
      %vm2325 = vcmask 1043456
      %v2327 = vsel %vm2325, %v2294, 0
      %v2330 = vsel %vm2325, %v2295, 0
      %2332 = vmatpush.bf16.msra.mxu0 0
      %2333 = vmatpush.bf16.msra.mxu0 0
      %2334 = vmatpush.bf16.msra.mxu0 0
      %2335 = vmatpush.bf16.msra.mxu0 0
      %2336 = vmatpush.bf16.msra.mxu0 0
      %2337 = vmatpush.bf16.msra.mxu0 0
      %2338 = vmatpush.bf16.msra.mxu0 0
      %2339 = vmatpush.bf16.msra.mxu0 %v2327
      %2340 = vmatmul.bf16.gmra.mxu0 %v2323
      %v2341 = vpop.f32.mrf.mxu0
      %v2342 = vadd.f32 0.0, %v2341
      %v2343 = vpop.f32.mrf.mxu0
      %2344 = vdwg.mxu0
      %2345 = vmatpush.bf16.msra.mxu0 0
      %2346 = vmatpush.bf16.msra.mxu0 0
      %2347 = vmatpush.bf16.msra.mxu0 0
      %2348 = vmatpush.bf16.msra.mxu0 0
      %2349 = vmatpush.bf16.msra.mxu0 0
      %2350 = vmatpush.bf16.msra.mxu0 0
      %2351 = vmatpush.bf16.msra.mxu0 0
      %2352 = vmatpush.bf16.msra.mxu0 %v2330
      %2353 = vmatmul.bf16.gmra.mxu0 %v2323
      %v2354 = vpop.f32.mrf.mxu0
      %v2355 = vadd.f32 0.0, %v2354
      %v2356 = vpop.f32.mrf.mxu0
      %2357 = vdwg.mxu0
      %v2358 = vpack.c.bf16 %v2342, %v2342
      %v2359 = vpack.c.bf16 %v2355, %v2355
      %s2360 = scalar_lea.vmem %s7, 2
      %v2361 = vld [vmem:[%s2360] sm:$0x3]
      %s2362 = scalar_lea.vmem %s8, 192
      %v2363 = vld [vmem:[%s2362] sm:$0xff]
      %v2364 = vld [vmem:[%s2362 + $0x8] sm:$0xff]
      %v2365 = vld [vmem:[%s2362 + $0x10] sm:$0xff]
      %v2366 = vld [vmem:[%s2362 + $0x18] sm:$0xff]
      %v2367 = vld [vmem:[%s2362 + $0x20] sm:$0xff]
      %v2368 = vld [vmem:[%s2362 + $0x28] sm:$0xff]
      %v2369 = vld [vmem:[%s2362 + $0x30] sm:$0xff]
      %v2370 = vld [vmem:[%s2362 + $0x38] sm:$0xff]
      %v2371 = vld [vmem:[%s2362 + $0x40] sm:$0xff]
      %v2372 = vld [vmem:[%s2362 + $0x48] sm:$0xff]
      %v2373 = vld [vmem:[%s2362 + $0x50] sm:$0xff]
      %v2374 = vld [vmem:[%s2362 + $0x58] sm:$0xff]
      %v2375 = vld [vmem:[%s2362 + $0x60] sm:$0xff]
      %v2376 = vld [vmem:[%s2362 + $0x68] sm:$0xff]
      %v2377 = vld [vmem:[%s2362 + $0x70] sm:$0xff]
      %v2378 = vld [vmem:[%s2362 + $0x78] sm:$0xff]
      %v2379 = vld [vmem:[%s2362 + $0x80] sm:$0xff]
      %v2380 = vld [vmem:[%s2362 + $0x88] sm:$0xff]
      %v2381 = vld [vmem:[%s2362 + $0x90] sm:$0xff]
      %v2382 = vld [vmem:[%s2362 + $0x98] sm:$0xff]
      %v2383 = vld [vmem:[%s2362 + $0xa0] sm:$0xff]
      %v2384 = vld [vmem:[%s2362 + $0xa8] sm:$0xff]
      %v2385 = vld [vmem:[%s2362 + $0xb0] sm:$0xff]
      %v2386 = vld [vmem:[%s2362 + $0xb8] sm:$0xff]
      %v2388 = vsel %vm2321, %v2361, 0
      %2390 = vmatpush.bf16.msra.mxu0 0
      %2391 = vmatpush.bf16.msra.mxu0 0
      %2392 = vmatpush.bf16.msra.mxu0 0
      %2393 = vmatpush.bf16.msra.mxu0 0
      %2394 = vmatpush.bf16.msra.mxu0 0
      %2395 = vmatpush.bf16.msra.mxu0 0
      %2396 = vmatpush.bf16.msra.mxu0 0
      %2397 = vmatpush.bf16.msra.mxu0 %v2327
      %2398 = vmatmul.bf16.gmra.mxu0 %v2388
      %v2399 = vpop.f32.mrf.mxu0
      %v2400 = vadd.f32 0.0, %v2399
      %v2401 = vpop.f32.mrf.mxu0
      %2402 = vdwg.mxu0
      %2403 = vmatpush.bf16.msra.mxu0 0
      %2404 = vmatpush.bf16.msra.mxu0 0
      %2405 = vmatpush.bf16.msra.mxu0 0
      %2406 = vmatpush.bf16.msra.mxu0 0
      %2407 = vmatpush.bf16.msra.mxu0 0
      %2408 = vmatpush.bf16.msra.mxu0 0
      %2409 = vmatpush.bf16.msra.mxu0 0
      %2410 = vmatpush.bf16.msra.mxu0 %v2330
      %2411 = vmatmul.bf16.gmra.mxu0 %v2388
      %v2412 = vpop.f32.mrf.mxu0
      %v2413 = vadd.f32 0.0, %v2412
      %v2414 = vpop.f32.mrf.mxu0
      %2415 = vdwg.mxu0
      %v2416 = vpack.c.bf16 %v2400, %v2400
      %v2417 = vpack.c.bf16 %v2413, %v2413
      %v2442 = vunpack.c.l.b16 %v2363
      %v2443 = vunpack.c.h.b16 %v2363
      %v2444 = vunpack.c.l.b16 %v2364
      %v2445 = vunpack.c.h.b16 %v2364
      %v2446 = vunpack.c.l.b16 %v2365
      %v2447 = vunpack.c.h.b16 %v2365
      %v2448 = vunpack.c.l.b16 %v2366
      %v2449 = vunpack.c.h.b16 %v2366
      %v2450 = vunpack.c.l.b16 %v2367
      %v2451 = vunpack.c.h.b16 %v2367
      %v2452 = vunpack.c.l.b16 %v2368
      %v2453 = vunpack.c.h.b16 %v2368
      %v2454 = vunpack.c.l.b16 %v2369
      %v2455 = vunpack.c.h.b16 %v2369
      %v2456 = vunpack.c.l.b16 %v2370
      %v2457 = vunpack.c.h.b16 %v2370
      %v2458 = vunpack.c.l.b16 %v2371
      %v2459 = vunpack.c.h.b16 %v2371
      %v2460 = vunpack.c.l.b16 %v2372
      %v2461 = vunpack.c.h.b16 %v2372
      %v2462 = vunpack.c.l.b16 %v2373
      %v2463 = vunpack.c.h.b16 %v2373
      %v2464 = vunpack.c.l.b16 %v2374
      %v2465 = vunpack.c.h.b16 %v2374
      %v2466 = vunpack.c.l.b16 %v2375
      %v2467 = vunpack.c.h.b16 %v2375
      %v2468 = vunpack.c.l.b16 %v2376
      %v2469 = vunpack.c.h.b16 %v2376
      %v2470 = vunpack.c.l.b16 %v2377
      %v2471 = vunpack.c.h.b16 %v2377
      %v2472 = vunpack.c.l.b16 %v2378
      %v2473 = vunpack.c.h.b16 %v2378
      %v2474 = vunpack.c.l.b16 %v2379
      %v2475 = vunpack.c.h.b16 %v2379
      %v2476 = vunpack.c.l.b16 %v2380
      %v2477 = vunpack.c.h.b16 %v2380
      %v2478 = vunpack.c.l.b16 %v2381
      %v2479 = vunpack.c.h.b16 %v2381
      %v2480 = vunpack.c.l.b16 %v2382
      %v2481 = vunpack.c.h.b16 %v2382
      %v2482 = vunpack.c.l.b16 %v2383
      %v2483 = vunpack.c.h.b16 %v2383
      %v2484 = vunpack.c.l.b16 %v2384
      %v2485 = vunpack.c.h.b16 %v2384
      %v2486 = vunpack.c.l.b16 %v2385
      %v2487 = vunpack.c.h.b16 %v2385
      %v2488 = vunpack.c.l.b16 %v2386
      %v2489 = vunpack.c.h.b16 %v2386
      %v2490 = vpack.c.b16 %v2444, %v2442
      %v2491 = vpack.c.b16 %v2445, %v2443
      %v2492 = vpack.c.b16 %v2448, %v2446
      %v2493 = vpack.c.b16 %v2449, %v2447
      %v2494 = vpack.c.b16 %v2452, %v2450
      %v2495 = vpack.c.b16 %v2453, %v2451
      %v2496 = vpack.c.b16 %v2456, %v2454
      %v2497 = vpack.c.b16 %v2457, %v2455
      %v2498 = vpack.c.b16 %v2460, %v2458
      %v2499 = vpack.c.b16 %v2461, %v2459
      %v2500 = vpack.c.b16 %v2464, %v2462
      %v2501 = vpack.c.b16 %v2465, %v2463
      %v2502 = vpack.c.b16 %v2468, %v2466
      %v2503 = vpack.c.b16 %v2469, %v2467
      %v2504 = vpack.c.b16 %v2472, %v2470
      %v2505 = vpack.c.b16 %v2473, %v2471
      %v2506 = vpack.c.b16 %v2476, %v2474
      %v2507 = vpack.c.b16 %v2477, %v2475
      %v2508 = vpack.c.b16 %v2480, %v2478
      %v2509 = vpack.c.b16 %v2481, %v2479
      %v2510 = vpack.c.b16 %v2484, %v2482
      %v2511 = vpack.c.b16 %v2485, %v2483
      %v2512 = vpack.c.b16 %v2488, %v2486
      %v2513 = vpack.c.b16 %v2489, %v2487
      %v2539 = vsel %vm1535, %v2417, 0
      %2541 = vmatpush.bf16.msra.mxu0 %v2504
      %2542 = vmatpush.bf16.msra.mxu0 %v2502
      %2543 = vmatpush.bf16.msra.mxu0 %v2500
      %2544 = vmatpush.bf16.msra.mxu0 %v2498
      %2545 = vmatpush.bf16.msra.mxu0 %v2496
      %2546 = vmatpush.bf16.msra.mxu0 %v2494
      %2547 = vmatpush.bf16.msra.mxu0 %v2492
      %2548 = vmatpush.bf16.msra.mxu0 %v2490
      %2549 = vmatmul.bf16.gmra.mxu0 %v2416
      %v2550 = vpop.f32.mrf.mxu0
      %v2551 = vadd.f32 0.0, %v2550
      %v2552 = vpop.f32.mrf.mxu0
      %2553 = vdwg.mxu0
      %2554 = vmatpush.bf16.msra.mxu0 0
      %2555 = vmatpush.bf16.msra.mxu0 0
      %2556 = vmatpush.bf16.msra.mxu0 0
      %2557 = vmatpush.bf16.msra.mxu0 0
      %2558 = vmatpush.bf16.msra.mxu0 %v2512
      %2559 = vmatpush.bf16.msra.mxu0 %v2510
      %2560 = vmatpush.bf16.msra.mxu0 %v2508
      %2561 = vmatpush.bf16.msra.mxu0 %v2506
      %2562 = vmatmul.bf16.gmra.mxu0 %v2539
      %v2563 = vpop.f32.mrf.mxu0
      %v2564 = vadd.f32 %v2551, %v2563
      %v2565 = vpop.f32.mrf.mxu0
      %2566 = vdwg.mxu0
      %2567 = vmatpush.bf16.msra.mxu0 %v2505
      %2568 = vmatpush.bf16.msra.mxu0 %v2503
      %2569 = vmatpush.bf16.msra.mxu0 %v2501
      %2570 = vmatpush.bf16.msra.mxu0 %v2499
      %2571 = vmatpush.bf16.msra.mxu0 %v2497
      %2572 = vmatpush.bf16.msra.mxu0 %v2495
      %2573 = vmatpush.bf16.msra.mxu0 %v2493
      %2574 = vmatpush.bf16.msra.mxu0 %v2491
      %2575 = vmatmul.bf16.gmra.mxu0 %v2416
      %v2576 = vpop.f32.mrf.mxu0
      %v2577 = vadd.f32 0.0, %v2576
      %v2578 = vpop.f32.mrf.mxu0
      %2579 = vdwg.mxu0
      %2580 = vmatpush.bf16.msra.mxu0 0
      %2581 = vmatpush.bf16.msra.mxu0 0
      %2582 = vmatpush.bf16.msra.mxu0 0
      %2583 = vmatpush.bf16.msra.mxu0 0
      %2584 = vmatpush.bf16.msra.mxu0 %v2513
      %2585 = vmatpush.bf16.msra.mxu0 %v2511
      %2586 = vmatpush.bf16.msra.mxu0 %v2509
      %2587 = vmatpush.bf16.msra.mxu0 %v2507
      %2588 = vmatmul.bf16.gmra.mxu0 %v2539
      %v2589 = vpop.f32.mrf.mxu0
      %v2590 = vadd.f32 %v2577, %v2589
      %v2591 = vpop.f32.mrf.mxu0
      %2592 = vdwg.mxu0
      %v2617 = vunpack.c.l.b16 %v2297
      %v2618 = vunpack.c.h.b16 %v2297
      %v2619 = vunpack.c.l.b16 %v2298
      %v2620 = vunpack.c.h.b16 %v2298
      %v2621 = vunpack.c.l.b16 %v2299
      %v2622 = vunpack.c.h.b16 %v2299
      %v2623 = vunpack.c.l.b16 %v2300
      %v2624 = vunpack.c.h.b16 %v2300
      %v2625 = vunpack.c.l.b16 %v2301
      %v2626 = vunpack.c.h.b16 %v2301
      %v2627 = vunpack.c.l.b16 %v2302
      %v2628 = vunpack.c.h.b16 %v2302
      %v2629 = vunpack.c.l.b16 %v2303
      %v2630 = vunpack.c.h.b16 %v2303
      %v2631 = vunpack.c.l.b16 %v2304
      %v2632 = vunpack.c.h.b16 %v2304
      %v2633 = vunpack.c.l.b16 %v2305
      %v2634 = vunpack.c.h.b16 %v2305
      %v2635 = vunpack.c.l.b16 %v2306
      %v2636 = vunpack.c.h.b16 %v2306
      %v2637 = vunpack.c.l.b16 %v2307
      %v2638 = vunpack.c.h.b16 %v2307
      %v2639 = vunpack.c.l.b16 %v2308
      %v2640 = vunpack.c.h.b16 %v2308
      %v2641 = vunpack.c.l.b16 %v2309
      %v2642 = vunpack.c.h.b16 %v2309
      %v2643 = vunpack.c.l.b16 %v2310
      %v2644 = vunpack.c.h.b16 %v2310
      %v2645 = vunpack.c.l.b16 %v2311
      %v2646 = vunpack.c.h.b16 %v2311
      %v2647 = vunpack.c.l.b16 %v2312
      %v2648 = vunpack.c.h.b16 %v2312
      %v2649 = vunpack.c.l.b16 %v2313
      %v2650 = vunpack.c.h.b16 %v2313
      %v2651 = vunpack.c.l.b16 %v2314
      %v2652 = vunpack.c.h.b16 %v2314
      %v2653 = vunpack.c.l.b16 %v2315
      %v2654 = vunpack.c.h.b16 %v2315
      %v2655 = vunpack.c.l.b16 %v2316
      %v2656 = vunpack.c.h.b16 %v2316
      %v2657 = vunpack.c.l.b16 %v2317
      %v2658 = vunpack.c.h.b16 %v2317
      %v2659 = vunpack.c.l.b16 %v2318
      %v2660 = vunpack.c.h.b16 %v2318
      %v2661 = vunpack.c.l.b16 %v2319
      %v2662 = vunpack.c.h.b16 %v2319
      %v2663 = vunpack.c.l.b16 %v2320
      %v2664 = vunpack.c.h.b16 %v2320
      %v2665 = vpack.c.b16 %v2619, %v2617
      %v2666 = vpack.c.b16 %v2620, %v2618
      %v2667 = vpack.c.b16 %v2623, %v2621
      %v2668 = vpack.c.b16 %v2624, %v2622
      %v2669 = vpack.c.b16 %v2627, %v2625
      %v2670 = vpack.c.b16 %v2628, %v2626
      %v2671 = vpack.c.b16 %v2631, %v2629
      %v2672 = vpack.c.b16 %v2632, %v2630
      %v2673 = vpack.c.b16 %v2635, %v2633
      %v2674 = vpack.c.b16 %v2636, %v2634
      %v2675 = vpack.c.b16 %v2639, %v2637
      %v2676 = vpack.c.b16 %v2640, %v2638
      %v2677 = vpack.c.b16 %v2643, %v2641
      %v2678 = vpack.c.b16 %v2644, %v2642
      %v2679 = vpack.c.b16 %v2647, %v2645
      %v2680 = vpack.c.b16 %v2648, %v2646
      %v2681 = vpack.c.b16 %v2651, %v2649
      %v2682 = vpack.c.b16 %v2652, %v2650
      %v2683 = vpack.c.b16 %v2655, %v2653
      %v2684 = vpack.c.b16 %v2656, %v2654
      %v2685 = vpack.c.b16 %v2659, %v2657
      %v2686 = vpack.c.b16 %v2660, %v2658
      %v2687 = vpack.c.b16 %v2663, %v2661
      %v2688 = vpack.c.b16 %v2664, %v2662
      %v2714 = vsel %vm1535, %v2359, 0
      %2716 = vmatpush.bf16.msra.mxu0 %v2679
      %2717 = vmatpush.bf16.msra.mxu0 %v2677
      %2718 = vmatpush.bf16.msra.mxu0 %v2675
      %2719 = vmatpush.bf16.msra.mxu0 %v2673
      %2720 = vmatpush.bf16.msra.mxu0 %v2671
      %2721 = vmatpush.bf16.msra.mxu0 %v2669
      %2722 = vmatpush.bf16.msra.mxu0 %v2667
      %2723 = vmatpush.bf16.msra.mxu0 %v2665
      %2724 = vmatmul.bf16.gmra.mxu0 %v2358
      %v2725 = vpop.f32.mrf.mxu0
      %v2726 = vadd.f32 %v2564, %v2725
      %v2727 = vpop.f32.mrf.mxu0
      %2728 = vdwg.mxu0
      %2729 = vmatpush.bf16.msra.mxu0 0
      %2730 = vmatpush.bf16.msra.mxu0 0
      %2731 = vmatpush.bf16.msra.mxu0 0
      %2732 = vmatpush.bf16.msra.mxu0 0
      %2733 = vmatpush.bf16.msra.mxu0 %v2687
      %2734 = vmatpush.bf16.msra.mxu0 %v2685
      %2735 = vmatpush.bf16.msra.mxu0 %v2683
      %2736 = vmatpush.bf16.msra.mxu0 %v2681
      %2737 = vmatmul.bf16.gmra.mxu0 %v2714
      %v2738 = vpop.f32.mrf.mxu0
      %v2739 = vadd.f32 %v2726, %v2738
      %v2740 = vpop.f32.mrf.mxu0
      %2741 = vdwg.mxu0
      %2742 = vmatpush.bf16.msra.mxu0 %v2680
      %2743 = vmatpush.bf16.msra.mxu0 %v2678
      %2744 = vmatpush.bf16.msra.mxu0 %v2676
      %2745 = vmatpush.bf16.msra.mxu0 %v2674
      %2746 = vmatpush.bf16.msra.mxu0 %v2672
      %2747 = vmatpush.bf16.msra.mxu0 %v2670
      %2748 = vmatpush.bf16.msra.mxu0 %v2668
      %2749 = vmatpush.bf16.msra.mxu0 %v2666
      %2750 = vmatmul.bf16.gmra.mxu0 %v2358
      %v2751 = vpop.f32.mrf.mxu0
      %v2752 = vadd.f32 %v2590, %v2751
      %v2753 = vpop.f32.mrf.mxu0
      %2754 = vdwg.mxu0
      %2755 = vmatpush.bf16.msra.mxu0 0
      %2756 = vmatpush.bf16.msra.mxu0 0
      %2757 = vmatpush.bf16.msra.mxu0 0
      %2758 = vmatpush.bf16.msra.mxu0 0
      %2759 = vmatpush.bf16.msra.mxu0 %v2688
      %2760 = vmatpush.bf16.msra.mxu0 %v2686
      %2761 = vmatpush.bf16.msra.mxu0 %v2684
      %2762 = vmatpush.bf16.msra.mxu0 %v2682
      %2763 = vmatmul.bf16.gmra.mxu0 %v2714
      %v2764 = vpop.f32.mrf.mxu0
      %v2765 = vadd.f32 %v2752, %v2764
      %v2766 = vpop.f32.mrf.mxu0
      %2767 = vdwg.mxu0
      %s2768 = scalar_lea.vmem %s7, 4
      %v2769 = vld [vmem:[%s2768] sm:$0x3]
      %s2770 = scalar_lea.vmem %s8, 384
      %v2771 = vld [vmem:[%s2770] sm:$0xff]
      %v2772 = vld [vmem:[%s2770 + $0x8] sm:$0xff]
      %v2773 = vld [vmem:[%s2770 + $0x10] sm:$0xff]
      %v2774 = vld [vmem:[%s2770 + $0x18] sm:$0xff]
      %v2775 = vld [vmem:[%s2770 + $0x20] sm:$0xff]
      %v2776 = vld [vmem:[%s2770 + $0x28] sm:$0xff]
      %v2777 = vld [vmem:[%s2770 + $0x30] sm:$0xff]
      %v2778 = vld [vmem:[%s2770 + $0x38] sm:$0xff]
      %v2779 = vld [vmem:[%s2770 + $0x40] sm:$0xff]
      %v2780 = vld [vmem:[%s2770 + $0x48] sm:$0xff]
      %v2781 = vld [vmem:[%s2770 + $0x50] sm:$0xff]
      %v2782 = vld [vmem:[%s2770 + $0x58] sm:$0xff]
      %v2783 = vld [vmem:[%s2770 + $0x60] sm:$0xff]
      %v2784 = vld [vmem:[%s2770 + $0x68] sm:$0xff]
      %v2785 = vld [vmem:[%s2770 + $0x70] sm:$0xff]
      %v2786 = vld [vmem:[%s2770 + $0x78] sm:$0xff]
      %v2787 = vld [vmem:[%s2770 + $0x80] sm:$0xff]
      %v2788 = vld [vmem:[%s2770 + $0x88] sm:$0xff]
      %v2789 = vld [vmem:[%s2770 + $0x90] sm:$0xff]
      %v2790 = vld [vmem:[%s2770 + $0x98] sm:$0xff]
      %v2791 = vld [vmem:[%s2770 + $0xa0] sm:$0xff]
      %v2792 = vld [vmem:[%s2770 + $0xa8] sm:$0xff]
      %v2793 = vld [vmem:[%s2770 + $0xb0] sm:$0xff]
      %v2794 = vld [vmem:[%s2770 + $0xb8] sm:$0xff]
      %v2796 = vsel %vm2321, %v2769, 0
      %2798 = vmatpush.bf16.msra.mxu0 0
      %2799 = vmatpush.bf16.msra.mxu0 0
      %2800 = vmatpush.bf16.msra.mxu0 0
      %2801 = vmatpush.bf16.msra.mxu0 0
      %2802 = vmatpush.bf16.msra.mxu0 0
      %2803 = vmatpush.bf16.msra.mxu0 0
      %2804 = vmatpush.bf16.msra.mxu0 0
      %2805 = vmatpush.bf16.msra.mxu0 %v2327
      %2806 = vmatmul.bf16.gmra.mxu0 %v2796
      %v2807 = vpop.f32.mrf.mxu0
      %v2808 = vadd.f32 0.0, %v2807
      %v2809 = vpop.f32.mrf.mxu0
      %2810 = vdwg.mxu0
      %2811 = vmatpush.bf16.msra.mxu0 0
      %2812 = vmatpush.bf16.msra.mxu0 0
      %2813 = vmatpush.bf16.msra.mxu0 0
      %2814 = vmatpush.bf16.msra.mxu0 0
      %2815 = vmatpush.bf16.msra.mxu0 0
      %2816 = vmatpush.bf16.msra.mxu0 0
      %2817 = vmatpush.bf16.msra.mxu0 0
      %2818 = vmatpush.bf16.msra.mxu0 %v2330
      %2819 = vmatmul.bf16.gmra.mxu0 %v2796
      %v2820 = vpop.f32.mrf.mxu0
      %v2821 = vadd.f32 0.0, %v2820
      %v2822 = vpop.f32.mrf.mxu0
      %2823 = vdwg.mxu0
      %v2824 = vpack.c.bf16 %v2808, %v2808
      %v2825 = vpack.c.bf16 %v2821, %v2821
      %v2850 = vunpack.c.l.b16 %v2771
      %v2851 = vunpack.c.h.b16 %v2771
      %v2852 = vunpack.c.l.b16 %v2772
      %v2853 = vunpack.c.h.b16 %v2772
      %v2854 = vunpack.c.l.b16 %v2773
      %v2855 = vunpack.c.h.b16 %v2773
      %v2856 = vunpack.c.l.b16 %v2774
      %v2857 = vunpack.c.h.b16 %v2774
      %v2858 = vunpack.c.l.b16 %v2775
      %v2859 = vunpack.c.h.b16 %v2775
      %v2860 = vunpack.c.l.b16 %v2776
      %v2861 = vunpack.c.h.b16 %v2776
      %v2862 = vunpack.c.l.b16 %v2777
      %v2863 = vunpack.c.h.b16 %v2777
      %v2864 = vunpack.c.l.b16 %v2778
      %v2865 = vunpack.c.h.b16 %v2778
      %v2866 = vunpack.c.l.b16 %v2779
      %v2867 = vunpack.c.h.b16 %v2779
      %v2868 = vunpack.c.l.b16 %v2780
      %v2869 = vunpack.c.h.b16 %v2780
      %v2870 = vunpack.c.l.b16 %v2781
      %v2871 = vunpack.c.h.b16 %v2781
      %v2872 = vunpack.c.l.b16 %v2782
      %v2873 = vunpack.c.h.b16 %v2782
      %v2874 = vunpack.c.l.b16 %v2783
      %v2875 = vunpack.c.h.b16 %v2783
      %v2876 = vunpack.c.l.b16 %v2784
      %v2877 = vunpack.c.h.b16 %v2784
      %v2878 = vunpack.c.l.b16 %v2785
      %v2879 = vunpack.c.h.b16 %v2785
      %v2880 = vunpack.c.l.b16 %v2786
      %v2881 = vunpack.c.h.b16 %v2786
      %v2882 = vunpack.c.l.b16 %v2787
      %v2883 = vunpack.c.h.b16 %v2787
      %v2884 = vunpack.c.l.b16 %v2788
      %v2885 = vunpack.c.h.b16 %v2788
      %v2886 = vunpack.c.l.b16 %v2789
      %v2887 = vunpack.c.h.b16 %v2789
      %v2888 = vunpack.c.l.b16 %v2790
      %v2889 = vunpack.c.h.b16 %v2790
      %v2890 = vunpack.c.l.b16 %v2791
      %v2891 = vunpack.c.h.b16 %v2791
      %v2892 = vunpack.c.l.b16 %v2792
      %v2893 = vunpack.c.h.b16 %v2792
      %v2894 = vunpack.c.l.b16 %v2793
      %v2895 = vunpack.c.h.b16 %v2793
      %v2896 = vunpack.c.l.b16 %v2794
      %v2897 = vunpack.c.h.b16 %v2794
      %v2898 = vpack.c.b16 %v2852, %v2850
      %v2899 = vpack.c.b16 %v2853, %v2851
      %v2900 = vpack.c.b16 %v2856, %v2854
      %v2901 = vpack.c.b16 %v2857, %v2855
      %v2902 = vpack.c.b16 %v2860, %v2858
      %v2903 = vpack.c.b16 %v2861, %v2859
      %v2904 = vpack.c.b16 %v2864, %v2862
      %v2905 = vpack.c.b16 %v2865, %v2863
      %v2906 = vpack.c.b16 %v2868, %v2866
      %v2907 = vpack.c.b16 %v2869, %v2867
      %v2908 = vpack.c.b16 %v2872, %v2870
      %v2909 = vpack.c.b16 %v2873, %v2871
      %v2910 = vpack.c.b16 %v2876, %v2874
      %v2911 = vpack.c.b16 %v2877, %v2875
      %v2912 = vpack.c.b16 %v2880, %v2878
      %v2913 = vpack.c.b16 %v2881, %v2879
      %v2914 = vpack.c.b16 %v2884, %v2882
      %v2915 = vpack.c.b16 %v2885, %v2883
      %v2916 = vpack.c.b16 %v2888, %v2886
      %v2917 = vpack.c.b16 %v2889, %v2887
      %v2918 = vpack.c.b16 %v2892, %v2890
      %v2919 = vpack.c.b16 %v2893, %v2891
      %v2920 = vpack.c.b16 %v2896, %v2894
      %v2921 = vpack.c.b16 %v2897, %v2895
      %v2947 = vsel %vm1535, %v2825, 0
      %2949 = vmatpush.bf16.msra.mxu0 %v2912
      %2950 = vmatpush.bf16.msra.mxu0 %v2910
      %2951 = vmatpush.bf16.msra.mxu0 %v2908
      %2952 = vmatpush.bf16.msra.mxu0 %v2906
      %2953 = vmatpush.bf16.msra.mxu0 %v2904
      %2954 = vmatpush.bf16.msra.mxu0 %v2902
      %2955 = vmatpush.bf16.msra.mxu0 %v2900
      %2956 = vmatpush.bf16.msra.mxu0 %v2898
      %2957 = vmatmul.bf16.gmra.mxu0 %v2824
      %v2958 = vpop.f32.mrf.mxu0
      %v2959 = vadd.f32 0.0, %v2958
      %v2960 = vpop.f32.mrf.mxu0
      %2961 = vdwg.mxu0
      %2962 = vmatpush.bf16.msra.mxu0 0
      %2963 = vmatpush.bf16.msra.mxu0 0
      %2964 = vmatpush.bf16.msra.mxu0 0
      %2965 = vmatpush.bf16.msra.mxu0 0
      %2966 = vmatpush.bf16.msra.mxu0 %v2920
      %2967 = vmatpush.bf16.msra.mxu0 %v2918
      %2968 = vmatpush.bf16.msra.mxu0 %v2916
      %2969 = vmatpush.bf16.msra.mxu0 %v2914
      %2970 = vmatmul.bf16.gmra.mxu0 %v2947
      %v2971 = vpop.f32.mrf.mxu0
      %v2972 = vadd.f32 %v2959, %v2971
      %v2973 = vpop.f32.mrf.mxu0
      %2974 = vdwg.mxu0
      %2975 = vmatpush.bf16.msra.mxu0 %v2913
      %2976 = vmatpush.bf16.msra.mxu0 %v2911
      %2977 = vmatpush.bf16.msra.mxu0 %v2909
      %2978 = vmatpush.bf16.msra.mxu0 %v2907
      %2979 = vmatpush.bf16.msra.mxu0 %v2905
      %2980 = vmatpush.bf16.msra.mxu0 %v2903
      %2981 = vmatpush.bf16.msra.mxu0 %v2901
      %2982 = vmatpush.bf16.msra.mxu0 %v2899
      %2983 = vmatmul.bf16.gmra.mxu0 %v2824
      %v2984 = vpop.f32.mrf.mxu0
      %v2985 = vadd.f32 0.0, %v2984
      %v2986 = vpop.f32.mrf.mxu0
      %2987 = vdwg.mxu0
      %2988 = vmatpush.bf16.msra.mxu0 0
      %2989 = vmatpush.bf16.msra.mxu0 0
      %2990 = vmatpush.bf16.msra.mxu0 0
      %2991 = vmatpush.bf16.msra.mxu0 0
      %2992 = vmatpush.bf16.msra.mxu0 %v2921
      %2993 = vmatpush.bf16.msra.mxu0 %v2919
      %2994 = vmatpush.bf16.msra.mxu0 %v2917
      %2995 = vmatpush.bf16.msra.mxu0 %v2915
      %2996 = vmatmul.bf16.gmra.mxu0 %v2947
      %v2997 = vpop.f32.mrf.mxu0
      %v2998 = vadd.f32 %v2985, %v2997
      %v2999 = vpop.f32.mrf.mxu0
      %3000 = vdwg.mxu0
      %v3001 = vadd.f32 %v2739, %v2972
      %v3002 = vadd.f32 %v2765, %v2998
      %s3003 = scalar_lea.vmem %s7, 6
      %v3004 = vld [vmem:[%s3003] sm:$0x3]
      %s3005 = scalar_lea.vmem %s8, 576
      %v3006 = vld [vmem:[%s3005] sm:$0xff]
      %v3007 = vld [vmem:[%s3005 + $0x8] sm:$0xff]
      %v3008 = vld [vmem:[%s3005 + $0x10] sm:$0xff]
      %v3009 = vld [vmem:[%s3005 + $0x18] sm:$0xff]
      %v3010 = vld [vmem:[%s3005 + $0x20] sm:$0xff]
      %v3011 = vld [vmem:[%s3005 + $0x28] sm:$0xff]
      %v3012 = vld [vmem:[%s3005 + $0x30] sm:$0xff]
      %v3013 = vld [vmem:[%s3005 + $0x38] sm:$0xff]
      %v3014 = vld [vmem:[%s3005 + $0x40] sm:$0xff]
      %v3015 = vld [vmem:[%s3005 + $0x48] sm:$0xff]
      %v3016 = vld [vmem:[%s3005 + $0x50] sm:$0xff]
      %v3017 = vld [vmem:[%s3005 + $0x58] sm:$0xff]
      %v3018 = vld [vmem:[%s3005 + $0x60] sm:$0xff]
      %v3019 = vld [vmem:[%s3005 + $0x68] sm:$0xff]
      %v3020 = vld [vmem:[%s3005 + $0x70] sm:$0xff]
      %v3021 = vld [vmem:[%s3005 + $0x78] sm:$0xff]
      %v3022 = vld [vmem:[%s3005 + $0x80] sm:$0xff]
      %v3023 = vld [vmem:[%s3005 + $0x88] sm:$0xff]
      %v3024 = vld [vmem:[%s3005 + $0x90] sm:$0xff]
      %v3025 = vld [vmem:[%s3005 + $0x98] sm:$0xff]
      %v3026 = vld [vmem:[%s3005 + $0xa0] sm:$0xff]
      %v3027 = vld [vmem:[%s3005 + $0xa8] sm:$0xff]
      %v3028 = vld [vmem:[%s3005 + $0xb0] sm:$0xff]
      %v3029 = vld [vmem:[%s3005 + $0xb8] sm:$0xff]
      %v3031 = vsel %vm2321, %v3004, 0
      %3033 = vmatpush.bf16.msra.mxu0 0
      %3034 = vmatpush.bf16.msra.mxu0 0
      %3035 = vmatpush.bf16.msra.mxu0 0
      %3036 = vmatpush.bf16.msra.mxu0 0
      %3037 = vmatpush.bf16.msra.mxu0 0
      %3038 = vmatpush.bf16.msra.mxu0 0
      %3039 = vmatpush.bf16.msra.mxu0 0
      %3040 = vmatpush.bf16.msra.mxu0 %v2327
      %3041 = vmatmul.bf16.gmra.mxu0 %v3031
      %v3042 = vpop.f32.mrf.mxu0
      %v3043 = vadd.f32 0.0, %v3042
      %v3044 = vpop.f32.mrf.mxu0
      %3045 = vdwg.mxu0
      %3046 = vmatpush.bf16.msra.mxu0 0
      %3047 = vmatpush.bf16.msra.mxu0 0
      %3048 = vmatpush.bf16.msra.mxu0 0
      %3049 = vmatpush.bf16.msra.mxu0 0
      %3050 = vmatpush.bf16.msra.mxu0 0
      %3051 = vmatpush.bf16.msra.mxu0 0
      %3052 = vmatpush.bf16.msra.mxu0 0
      %3053 = vmatpush.bf16.msra.mxu0 %v2330
      %3054 = vmatmul.bf16.gmra.mxu0 %v3031
      %v3055 = vpop.f32.mrf.mxu0
      %v3056 = vadd.f32 0.0, %v3055
      %v3057 = vpop.f32.mrf.mxu0
      %3058 = vdwg.mxu0
      %v3059 = vpack.c.bf16 %v3043, %v3043
      %v3060 = vpack.c.bf16 %v3056, %v3056
      %v3085 = vunpack.c.l.b16 %v3006
      %v3086 = vunpack.c.h.b16 %v3006
      %v3087 = vunpack.c.l.b16 %v3007
      %v3088 = vunpack.c.h.b16 %v3007
      %v3089 = vunpack.c.l.b16 %v3008
      %v3090 = vunpack.c.h.b16 %v3008
      %v3091 = vunpack.c.l.b16 %v3009
      %v3092 = vunpack.c.h.b16 %v3009
      %v3093 = vunpack.c.l.b16 %v3010
      %v3094 = vunpack.c.h.b16 %v3010
      %v3095 = vunpack.c.l.b16 %v3011
      %v3096 = vunpack.c.h.b16 %v3011
      %v3097 = vunpack.c.l.b16 %v3012
      %v3098 = vunpack.c.h.b16 %v3012
      %v3099 = vunpack.c.l.b16 %v3013
      %v3100 = vunpack.c.h.b16 %v3013
      %v3101 = vunpack.c.l.b16 %v3014
      %v3102 = vunpack.c.h.b16 %v3014
      %v3103 = vunpack.c.l.b16 %v3015
      %v3104 = vunpack.c.h.b16 %v3015
      %v3105 = vunpack.c.l.b16 %v3016
      %v3106 = vunpack.c.h.b16 %v3016
      %v3107 = vunpack.c.l.b16 %v3017
      %v3108 = vunpack.c.h.b16 %v3017
      %v3109 = vunpack.c.l.b16 %v3018
      %v3110 = vunpack.c.h.b16 %v3018
      %v3111 = vunpack.c.l.b16 %v3019
      %v3112 = vunpack.c.h.b16 %v3019
      %v3113 = vunpack.c.l.b16 %v3020
      %v3114 = vunpack.c.h.b16 %v3020
      %v3115 = vunpack.c.l.b16 %v3021
      %v3116 = vunpack.c.h.b16 %v3021
      %v3117 = vunpack.c.l.b16 %v3022
      %v3118 = vunpack.c.h.b16 %v3022
      %v3119 = vunpack.c.l.b16 %v3023
      %v3120 = vunpack.c.h.b16 %v3023
      %v3121 = vunpack.c.l.b16 %v3024
      %v3122 = vunpack.c.h.b16 %v3024
      %v3123 = vunpack.c.l.b16 %v3025
      %v3124 = vunpack.c.h.b16 %v3025
      %v3125 = vunpack.c.l.b16 %v3026
      %v3126 = vunpack.c.h.b16 %v3026
      %v3127 = vunpack.c.l.b16 %v3027
      %v3128 = vunpack.c.h.b16 %v3027
      %v3129 = vunpack.c.l.b16 %v3028
      %v3130 = vunpack.c.h.b16 %v3028
      %v3131 = vunpack.c.l.b16 %v3029
      %v3132 = vunpack.c.h.b16 %v3029
      %v3133 = vpack.c.b16 %v3087, %v3085
      %v3134 = vpack.c.b16 %v3088, %v3086
      %v3135 = vpack.c.b16 %v3091, %v3089
      %v3136 = vpack.c.b16 %v3092, %v3090
      %v3137 = vpack.c.b16 %v3095, %v3093
      %v3138 = vpack.c.b16 %v3096, %v3094
      %v3139 = vpack.c.b16 %v3099, %v3097
      %v3140 = vpack.c.b16 %v3100, %v3098
      %v3141 = vpack.c.b16 %v3103, %v3101
      %v3142 = vpack.c.b16 %v3104, %v3102
      %v3143 = vpack.c.b16 %v3107, %v3105
      %v3144 = vpack.c.b16 %v3108, %v3106
      %v3145 = vpack.c.b16 %v3111, %v3109
      %v3146 = vpack.c.b16 %v3112, %v3110
      %v3147 = vpack.c.b16 %v3115, %v3113
      %v3148 = vpack.c.b16 %v3116, %v3114
      %v3149 = vpack.c.b16 %v3119, %v3117
      %v3150 = vpack.c.b16 %v3120, %v3118
      %v3151 = vpack.c.b16 %v3123, %v3121
      %v3152 = vpack.c.b16 %v3124, %v3122
      %v3153 = vpack.c.b16 %v3127, %v3125
      %v3154 = vpack.c.b16 %v3128, %v3126
      %v3155 = vpack.c.b16 %v3131, %v3129
      %v3156 = vpack.c.b16 %v3132, %v3130
      %v3182 = vsel %vm1535, %v3060, 0
      %3184 = vmatpush.bf16.msra.mxu0 %v3147
      %3185 = vmatpush.bf16.msra.mxu0 %v3145
      %3186 = vmatpush.bf16.msra.mxu0 %v3143
      %3187 = vmatpush.bf16.msra.mxu0 %v3141
      %3188 = vmatpush.bf16.msra.mxu0 %v3139
      %3189 = vmatpush.bf16.msra.mxu0 %v3137
      %3190 = vmatpush.bf16.msra.mxu0 %v3135
      %3191 = vmatpush.bf16.msra.mxu0 %v3133
      %3192 = vmatmul.bf16.gmra.mxu0 %v3059
      %v3193 = vpop.f32.mrf.mxu0
      %v3194 = vadd.f32 0.0, %v3193
      %v3195 = vpop.f32.mrf.mxu0
      %3196 = vdwg.mxu0
      %3197 = vmatpush.bf16.msra.mxu0 0
      %3198 = vmatpush.bf16.msra.mxu0 0
      %3199 = vmatpush.bf16.msra.mxu0 0
      %3200 = vmatpush.bf16.msra.mxu0 0
      %3201 = vmatpush.bf16.msra.mxu0 %v3155
      %3202 = vmatpush.bf16.msra.mxu0 %v3153
      %3203 = vmatpush.bf16.msra.mxu0 %v3151
      %3204 = vmatpush.bf16.msra.mxu0 %v3149
      %3205 = vmatmul.bf16.gmra.mxu0 %v3182
      %v3206 = vpop.f32.mrf.mxu0
      %v3207 = vadd.f32 %v3194, %v3206
      %v3208 = vpop.f32.mrf.mxu0
      %3209 = vdwg.mxu0
      %3210 = vmatpush.bf16.msra.mxu0 %v3148
      %3211 = vmatpush.bf16.msra.mxu0 %v3146
      %3212 = vmatpush.bf16.msra.mxu0 %v3144
      %3213 = vmatpush.bf16.msra.mxu0 %v3142
      %3214 = vmatpush.bf16.msra.mxu0 %v3140
      %3215 = vmatpush.bf16.msra.mxu0 %v3138
      %3216 = vmatpush.bf16.msra.mxu0 %v3136
      %3217 = vmatpush.bf16.msra.mxu0 %v3134
      %3218 = vmatmul.bf16.gmra.mxu0 %v3059
      %v3219 = vpop.f32.mrf.mxu0
      %v3220 = vadd.f32 0.0, %v3219
      %v3221 = vpop.f32.mrf.mxu0
      %3222 = vdwg.mxu0
      %3223 = vmatpush.bf16.msra.mxu0 0
      %3224 = vmatpush.bf16.msra.mxu0 0
      %3225 = vmatpush.bf16.msra.mxu0 0
      %3226 = vmatpush.bf16.msra.mxu0 0
      %3227 = vmatpush.bf16.msra.mxu0 %v3156
      %3228 = vmatpush.bf16.msra.mxu0 %v3154
      %3229 = vmatpush.bf16.msra.mxu0 %v3152
      %3230 = vmatpush.bf16.msra.mxu0 %v3150
      %3231 = vmatmul.bf16.gmra.mxu0 %v3182
      %v3232 = vpop.f32.mrf.mxu0
      %v3233 = vadd.f32 %v3220, %v3232
      %v3234 = vpop.f32.mrf.mxu0
      %3235 = vdwg.mxu0
      %v3236 = vadd.f32 %v3001, %v3207
      %v3237 = vadd.f32 %v3002, %v3233
      %v3238 = vld [vmem:[%s9] sm:$0x3]
      %v3240 = vperm.slane %v3238, 0
      %v3241 = vperm.slane %v3238, 1
      %v3244 = vadd.f32 %v3236, %v3240
      %v3245 = vadd.f32 %v3237, %v3241
      %v3246 = vmin.f32 %v3244, 20.0
      %v3247 = vmin.f32 %v3245, 20.0
      %v3248 = vmul.f32 %v3246, 1.442695
      %v3249 = vpow.pop %v3248
      %v3250 = vmul.f32 %v3247, 1.442695
      %v3251 = vpow.pop %v3250
      %v3252 = vadd.f32 %v3249, 1.0
      %v3253 = vadd.f32 %v3251, 1.0
      %v3254 = vmul.f32 %v3252, %v3252
      %v3255 = vmul.f32 %v3253, %v3253
      %v3256 = vsub.f32 %v3254, 1.0
      %v3257 = vsub.f32 %v3255, 1.0
      %v3258 = vadd.f32 %v3254, 1.0
      %v3259 = vadd.f32 %v3255, 1.0
      %v3260 = vrcp.pop %v3258
      %v3261 = vmul.f32 %v3258, %v3260
      %v3262 = vsub.f32 1.0, %v3261
      %v3263 = vmul.f32 %v3260, %v3262
      %v3264 = vadd.f32 %v3260, %v3263
      %vm3265 = vweird.f32 %v3258
      %vm3266 = vweird.f32 %v3260
      %vm3267 = vmor %vm3265, %vm3266
      %v3268 = vsel %vm3267, %v3260, %v3264
      %v3269 = vand.u32 2147483647, %v3258
      %vm3270 = vcmp.eq.f32.partialorder %v3269, 8.507059e+37
      %v3271 = vand.u32 %v3258, 2147483648
      %v3272 = vor.u32 1.1754944e-38, %v3271
      %v3273 = vsel %vm3270, %v3272, %v3268
      %v3274 = vmul.f32 %v3256, %v3273
      %v3275 = vrcp.pop %v3259
      %v3276 = vmul.f32 %v3259, %v3275
      %v3277 = vsub.f32 1.0, %v3276
      %v3278 = vmul.f32 %v3275, %v3277
      %v3279 = vadd.f32 %v3275, %v3278
      %vm3280 = vweird.f32 %v3259
      %vm3281 = vweird.f32 %v3275
      %vm3282 = vmor %vm3280, %vm3281
      %v3283 = vsel %vm3282, %v3275, %v3279
      %v3284 = vand.u32 2147483647, %v3259
      %vm3285 = vcmp.eq.f32.partialorder %v3284, 8.507059e+37
      %v3286 = vand.u32 %v3259, 2147483648
      %v3287 = vor.u32 1.1754944e-38, %v3286
      %v3288 = vsel %vm3285, %v3287, %v3283
      %v3289 = vmul.f32 %v3257, %v3288
      %vm3290 = vcmp.gt.f32.partialorder %v3244, 20.0
      %vm3291 = vcmp.gt.f32.partialorder %v3245, 20.0
      %v3292 = vsel %vm3290, 1.0, %v3274
      %v3293 = vsel %vm3291, 1.0, %v3289
      %v3294 = vmul.f32 %v3244, %v3292
      %v3295 = vmul.f32 %v3245, %v3293
      %v3298 = vrot.slane %v3295, 4
      %v3299 = vsel %vm2325, %v3294, %v3298
      %vm3301 = vcmask 523268
      %vm3302 = vmor %vm3301, %vm2325
      %3303 = vst.msk [vmem:[%s637] sm:$0xff] %vm3302, %v3299
      %v3304 = vpack.c.bf16 %v3294, %v3294
      %v3305 = vpack.c.bf16 %v3295, %v3295
      %v3306 = vld [vmem:[%s10] sm:$0xf]
      %v3307 = vld [vmem:[%s11] sm:$0xff]
      %v3308 = vld [vmem:[%s11 + $0x8] sm:$0xff]
      %v3309 = vld [vmem:[%s11 + $0x10] sm:$0xff]
      %v3310 = vld [vmem:[%s11 + $0x18] sm:$0xff]
      %v3311 = vld [vmem:[%s11 + $0x20] sm:$0xff]
      %v3312 = vld [vmem:[%s11 + $0x28] sm:$0xff]
      %v3313 = vld [vmem:[%s11 + $0x30] sm:$0xff]
      %v3314 = vld [vmem:[%s11 + $0x38] sm:$0xff]
      %v3315 = vld [vmem:[%s11 + $0x40] sm:$0xff]
      %v3316 = vld [vmem:[%s11 + $0x48] sm:$0xff]
      %v3317 = vld [vmem:[%s11 + $0x50] sm:$0xff]
      %v3318 = vld [vmem:[%s11 + $0x58] sm:$0xff]
      %v3319 = vld [vmem:[%s11 + $0x60] sm:$0xff]
      %v3320 = vld [vmem:[%s11 + $0x68] sm:$0xff]
      %v3321 = vld [vmem:[%s11 + $0x70] sm:$0xff]
      %v3322 = vld [vmem:[%s11 + $0x78] sm:$0xff]
      %v3323 = vld [vmem:[%s11 + $0x80] sm:$0xff]
      %v3324 = vld [vmem:[%s11 + $0x88] sm:$0xff]
      %v3325 = vld [vmem:[%s11 + $0x90] sm:$0xff]
      %v3326 = vld [vmem:[%s11 + $0x98] sm:$0xff]
      %v3327 = vld [vmem:[%s11 + $0xa0] sm:$0xff]
      %v3328 = vld [vmem:[%s11 + $0xa8] sm:$0xff]
      %v3329 = vld [vmem:[%s11 + $0xb0] sm:$0xff]
      %v3330 = vld [vmem:[%s11 + $0xb8] sm:$0xff]
      %v3355 = vunpack.c.l.b16 %v3307
      %v3356 = vunpack.c.h.b16 %v3307
      %v3357 = vunpack.c.l.b16 %v3308
      %v3358 = vunpack.c.h.b16 %v3308
      %v3359 = vunpack.c.l.b16 %v3309
      %v3360 = vunpack.c.h.b16 %v3309
      %v3361 = vunpack.c.l.b16 %v3310
      %v3362 = vunpack.c.h.b16 %v3310
      %v3363 = vunpack.c.l.b16 %v3311
      %v3364 = vunpack.c.h.b16 %v3311
      %v3365 = vunpack.c.l.b16 %v3312
      %v3366 = vunpack.c.h.b16 %v3312
      %v3367 = vunpack.c.l.b16 %v3313
      %v3368 = vunpack.c.h.b16 %v3313
      %v3369 = vunpack.c.l.b16 %v3314
      %v3370 = vunpack.c.h.b16 %v3314
      %v3371 = vunpack.c.l.b16 %v3315
      %v3372 = vunpack.c.h.b16 %v3315
      %v3373 = vunpack.c.l.b16 %v3316
      %v3374 = vunpack.c.h.b16 %v3316
      %v3375 = vunpack.c.l.b16 %v3317
      %v3376 = vunpack.c.h.b16 %v3317
      %v3377 = vunpack.c.l.b16 %v3318
      %v3378 = vunpack.c.h.b16 %v3318
      %v3379 = vunpack.c.l.b16 %v3319
      %v3380 = vunpack.c.h.b16 %v3319
      %v3381 = vunpack.c.l.b16 %v3320
      %v3382 = vunpack.c.h.b16 %v3320
      %v3383 = vunpack.c.l.b16 %v3321
      %v3384 = vunpack.c.h.b16 %v3321
      %v3385 = vunpack.c.l.b16 %v3322
      %v3386 = vunpack.c.h.b16 %v3322
      %v3387 = vunpack.c.l.b16 %v3323
      %v3388 = vunpack.c.h.b16 %v3323
      %v3389 = vunpack.c.l.b16 %v3324
      %v3390 = vunpack.c.h.b16 %v3324
      %v3391 = vunpack.c.l.b16 %v3325
      %v3392 = vunpack.c.h.b16 %v3325
      %v3393 = vunpack.c.l.b16 %v3326
      %v3394 = vunpack.c.h.b16 %v3326
      %v3395 = vunpack.c.l.b16 %v3327
      %v3396 = vunpack.c.h.b16 %v3327
      %v3397 = vunpack.c.l.b16 %v3328
      %v3398 = vunpack.c.h.b16 %v3328
      %v3399 = vunpack.c.l.b16 %v3329
      %v3400 = vunpack.c.h.b16 %v3329
      %v3401 = vunpack.c.l.b16 %v3330
      %v3402 = vunpack.c.h.b16 %v3330
      %v3403 = vpack.c.b16 %v3357, %v3355
      %v3404 = vpack.c.b16 %v3358, %v3356
      %v3405 = vpack.c.b16 %v3361, %v3359
      %v3406 = vpack.c.b16 %v3362, %v3360
      %v3407 = vpack.c.b16 %v3365, %v3363
      %v3408 = vpack.c.b16 %v3366, %v3364
      %v3409 = vpack.c.b16 %v3369, %v3367
      %v3410 = vpack.c.b16 %v3370, %v3368
      %v3411 = vpack.c.b16 %v3373, %v3371
      %v3412 = vpack.c.b16 %v3374, %v3372
      %v3413 = vpack.c.b16 %v3377, %v3375
      %v3414 = vpack.c.b16 %v3378, %v3376
      %v3415 = vpack.c.b16 %v3381, %v3379
      %v3416 = vpack.c.b16 %v3382, %v3380
      %v3417 = vpack.c.b16 %v3385, %v3383
      %v3418 = vpack.c.b16 %v3386, %v3384
      %v3419 = vpack.c.b16 %v3389, %v3387
      %v3420 = vpack.c.b16 %v3390, %v3388
      %v3421 = vpack.c.b16 %v3393, %v3391
      %v3422 = vpack.c.b16 %v3394, %v3392
      %v3423 = vpack.c.b16 %v3397, %v3395
      %v3424 = vpack.c.b16 %v3398, %v3396
      %v3425 = vpack.c.b16 %v3401, %v3399
      %v3426 = vpack.c.b16 %v3402, %v3400
      %v3452 = vsel %vm1535, %v3305, 0
      %3454 = vmatpush.bf16.msra.mxu0 %v3417
      %3455 = vmatpush.bf16.msra.mxu0 %v3415
      %3456 = vmatpush.bf16.msra.mxu0 %v3413
      %3457 = vmatpush.bf16.msra.mxu0 %v3411
      %3458 = vmatpush.bf16.msra.mxu0 %v3409
      %3459 = vmatpush.bf16.msra.mxu0 %v3407
      %3460 = vmatpush.bf16.msra.mxu0 %v3405
      %3461 = vmatpush.bf16.msra.mxu0 %v3403
      %3462 = vmatmul.bf16.gmra.mxu0 %v3304
      %v3463 = vpop.f32.mrf.mxu0
      %v3464 = vadd.f32 0.0, %v3463
      %v3465 = vpop.f32.mrf.mxu0
      %3466 = vdwg.mxu0
      %3467 = vmatpush.bf16.msra.mxu0 0
      %3468 = vmatpush.bf16.msra.mxu0 0
      %3469 = vmatpush.bf16.msra.mxu0 0
      %3470 = vmatpush.bf16.msra.mxu0 0
      %3471 = vmatpush.bf16.msra.mxu0 %v3425
      %3472 = vmatpush.bf16.msra.mxu0 %v3423
      %3473 = vmatpush.bf16.msra.mxu0 %v3421
      %3474 = vmatpush.bf16.msra.mxu0 %v3419
      %3475 = vmatmul.bf16.gmra.mxu0 %v3452
      %v3476 = vpop.f32.mrf.mxu0
      %v3477 = vadd.f32 %v3464, %v3476
      %v3478 = vpop.f32.mrf.mxu0
      %3479 = vdwg.mxu0
      %3480 = vmatpush.bf16.msra.mxu0 %v3418
      %3481 = vmatpush.bf16.msra.mxu0 %v3416
      %3482 = vmatpush.bf16.msra.mxu0 %v3414
      %3483 = vmatpush.bf16.msra.mxu0 %v3412
      %3484 = vmatpush.bf16.msra.mxu0 %v3410
      %3485 = vmatpush.bf16.msra.mxu0 %v3408
      %3486 = vmatpush.bf16.msra.mxu0 %v3406
      %3487 = vmatpush.bf16.msra.mxu0 %v3404
      %3488 = vmatmul.bf16.gmra.mxu0 %v3304
      %v3489 = vpop.f32.mrf.mxu0
      %v3490 = vadd.f32 0.0, %v3489
      %v3491 = vpop.f32.mrf.mxu0
      %3492 = vdwg.mxu0
      %3493 = vmatpush.bf16.msra.mxu0 0
      %3494 = vmatpush.bf16.msra.mxu0 0
      %3495 = vmatpush.bf16.msra.mxu0 0
      %3496 = vmatpush.bf16.msra.mxu0 0
      %3497 = vmatpush.bf16.msra.mxu0 %v3426
      %3498 = vmatpush.bf16.msra.mxu0 %v3424
      %3499 = vmatpush.bf16.msra.mxu0 %v3422
      %3500 = vmatpush.bf16.msra.mxu0 %v3420
      %3501 = vmatmul.bf16.gmra.mxu0 %v3452
      %v3502 = vpop.f32.mrf.mxu0
      %v3503 = vadd.f32 %v3490, %v3502
      %v3504 = vpop.f32.mrf.mxu0
      %3505 = vdwg.mxu0
      %v3506 = vpack.c.bf16 %v3477, %v3477
      %v3507 = vpack.c.bf16 %v3503, %v3503
      %s3508 = scalar_lea.vmem %s10, 4
      %v3509 = vld [vmem:[%s3508] sm:$0xf]
      %s3510 = scalar_lea.vmem %s11, 192
      %v3511 = vld [vmem:[%s3510] sm:$0xff]
      %v3512 = vld [vmem:[%s3510 + $0x8] sm:$0xff]
      %v3513 = vld [vmem:[%s3510 + $0x10] sm:$0xff]
      %v3514 = vld [vmem:[%s3510 + $0x18] sm:$0xff]
      %v3515 = vld [vmem:[%s3510 + $0x20] sm:$0xff]
      %v3516 = vld [vmem:[%s3510 + $0x28] sm:$0xff]
      %v3517 = vld [vmem:[%s3510 + $0x30] sm:$0xff]
      %v3518 = vld [vmem:[%s3510 + $0x38] sm:$0xff]
      %v3519 = vld [vmem:[%s3510 + $0x40] sm:$0xff]
      %v3520 = vld [vmem:[%s3510 + $0x48] sm:$0xff]
      %v3521 = vld [vmem:[%s3510 + $0x50] sm:$0xff]
      %v3522 = vld [vmem:[%s3510 + $0x58] sm:$0xff]
      %v3523 = vld [vmem:[%s3510 + $0x60] sm:$0xff]
      %v3524 = vld [vmem:[%s3510 + $0x68] sm:$0xff]
      %v3525 = vld [vmem:[%s3510 + $0x70] sm:$0xff]
      %v3526 = vld [vmem:[%s3510 + $0x78] sm:$0xff]
      %v3527 = vld [vmem:[%s3510 + $0x80] sm:$0xff]
      %v3528 = vld [vmem:[%s3510 + $0x88] sm:$0xff]
      %v3529 = vld [vmem:[%s3510 + $0x90] sm:$0xff]
      %v3530 = vld [vmem:[%s3510 + $0x98] sm:$0xff]
      %v3531 = vld [vmem:[%s3510 + $0xa0] sm:$0xff]
      %v3532 = vld [vmem:[%s3510 + $0xa8] sm:$0xff]
      %v3533 = vld [vmem:[%s3510 + $0xb0] sm:$0xff]
      %v3534 = vld [vmem:[%s3510 + $0xb8] sm:$0xff]
      %v3559 = vunpack.c.l.b16 %v3511
      %v3560 = vunpack.c.h.b16 %v3511
      %v3561 = vunpack.c.l.b16 %v3512
      %v3562 = vunpack.c.h.b16 %v3512
      %v3563 = vunpack.c.l.b16 %v3513
      %v3564 = vunpack.c.h.b16 %v3513
      %v3565 = vunpack.c.l.b16 %v3514
      %v3566 = vunpack.c.h.b16 %v3514
      %v3567 = vunpack.c.l.b16 %v3515
      %v3568 = vunpack.c.h.b16 %v3515
      %v3569 = vunpack.c.l.b16 %v3516
      %v3570 = vunpack.c.h.b16 %v3516
      %v3571 = vunpack.c.l.b16 %v3517
      %v3572 = vunpack.c.h.b16 %v3517
      %v3573 = vunpack.c.l.b16 %v3518
      %v3574 = vunpack.c.h.b16 %v3518
      %v3575 = vunpack.c.l.b16 %v3519
      %v3576 = vunpack.c.h.b16 %v3519
      %v3577 = vunpack.c.l.b16 %v3520
      %v3578 = vunpack.c.h.b16 %v3520
      %v3579 = vunpack.c.l.b16 %v3521
      %v3580 = vunpack.c.h.b16 %v3521
      %v3581 = vunpack.c.l.b16 %v3522
      %v3582 = vunpack.c.h.b16 %v3522
      %v3583 = vunpack.c.l.b16 %v3523
      %v3584 = vunpack.c.h.b16 %v3523
      %v3585 = vunpack.c.l.b16 %v3524
      %v3586 = vunpack.c.h.b16 %v3524
      %v3587 = vunpack.c.l.b16 %v3525
      %v3588 = vunpack.c.h.b16 %v3525
      %v3589 = vunpack.c.l.b16 %v3526
      %v3590 = vunpack.c.h.b16 %v3526
      %v3591 = vunpack.c.l.b16 %v3527
      %v3592 = vunpack.c.h.b16 %v3527
      %v3593 = vunpack.c.l.b16 %v3528
      %v3594 = vunpack.c.h.b16 %v3528
      %v3595 = vunpack.c.l.b16 %v3529
      %v3596 = vunpack.c.h.b16 %v3529
      %v3597 = vunpack.c.l.b16 %v3530
      %v3598 = vunpack.c.h.b16 %v3530
      %v3599 = vunpack.c.l.b16 %v3531
      %v3600 = vunpack.c.h.b16 %v3531
      %v3601 = vunpack.c.l.b16 %v3532
      %v3602 = vunpack.c.h.b16 %v3532
      %v3603 = vunpack.c.l.b16 %v3533
      %v3604 = vunpack.c.h.b16 %v3533
      %v3605 = vunpack.c.l.b16 %v3534
      %v3606 = vunpack.c.h.b16 %v3534
      %v3607 = vpack.c.b16 %v3561, %v3559
      %v3608 = vpack.c.b16 %v3562, %v3560
      %v3609 = vpack.c.b16 %v3565, %v3563
      %v3610 = vpack.c.b16 %v3566, %v3564
      %v3611 = vpack.c.b16 %v3569, %v3567
      %v3612 = vpack.c.b16 %v3570, %v3568
      %v3613 = vpack.c.b16 %v3573, %v3571
      %v3614 = vpack.c.b16 %v3574, %v3572
      %v3615 = vpack.c.b16 %v3577, %v3575
      %v3616 = vpack.c.b16 %v3578, %v3576
      %v3617 = vpack.c.b16 %v3581, %v3579
      %v3618 = vpack.c.b16 %v3582, %v3580
      %v3619 = vpack.c.b16 %v3585, %v3583
      %v3620 = vpack.c.b16 %v3586, %v3584
      %v3621 = vpack.c.b16 %v3589, %v3587
      %v3622 = vpack.c.b16 %v3590, %v3588
      %v3623 = vpack.c.b16 %v3593, %v3591
      %v3624 = vpack.c.b16 %v3594, %v3592
      %v3625 = vpack.c.b16 %v3597, %v3595
      %v3626 = vpack.c.b16 %v3598, %v3596
      %v3627 = vpack.c.b16 %v3601, %v3599
      %v3628 = vpack.c.b16 %v3602, %v3600
      %v3629 = vpack.c.b16 %v3605, %v3603
      %v3630 = vpack.c.b16 %v3606, %v3604
      %3655 = vmatpush.bf16.msra.mxu0 %v3621
      %3656 = vmatpush.bf16.msra.mxu0 %v3619
      %3657 = vmatpush.bf16.msra.mxu0 %v3617
      %3658 = vmatpush.bf16.msra.mxu0 %v3615
      %3659 = vmatpush.bf16.msra.mxu0 %v3613
      %3660 = vmatpush.bf16.msra.mxu0 %v3611
      %3661 = vmatpush.bf16.msra.mxu0 %v3609
      %3662 = vmatpush.bf16.msra.mxu0 %v3607
      %3663 = vmatmul.bf16.gmra.mxu0 %v3304
      %v3664 = vpop.f32.mrf.mxu0
      %v3665 = vadd.f32 0.0, %v3664
      %v3666 = vpop.f32.mrf.mxu0
      %3667 = vdwg.mxu0
      %3668 = vmatpush.bf16.msra.mxu0 0
      %3669 = vmatpush.bf16.msra.mxu0 0
      %3670 = vmatpush.bf16.msra.mxu0 0
      %3671 = vmatpush.bf16.msra.mxu0 0
      %3672 = vmatpush.bf16.msra.mxu0 %v3629
      %3673 = vmatpush.bf16.msra.mxu0 %v3627
      %3674 = vmatpush.bf16.msra.mxu0 %v3625
      %3675 = vmatpush.bf16.msra.mxu0 %v3623
      %3676 = vmatmul.bf16.gmra.mxu0 %v3452
      %v3677 = vpop.f32.mrf.mxu0
      %v3678 = vadd.f32 %v3665, %v3677
      %v3679 = vpop.f32.mrf.mxu0
      %3680 = vdwg.mxu0
      %3681 = vmatpush.bf16.msra.mxu0 %v3622
      %3682 = vmatpush.bf16.msra.mxu0 %v3620
      %3683 = vmatpush.bf16.msra.mxu0 %v3618
      %3684 = vmatpush.bf16.msra.mxu0 %v3616
      %3685 = vmatpush.bf16.msra.mxu0 %v3614
      %3686 = vmatpush.bf16.msra.mxu0 %v3612
      %3687 = vmatpush.bf16.msra.mxu0 %v3610
      %3688 = vmatpush.bf16.msra.mxu0 %v3608
      %3689 = vmatmul.bf16.gmra.mxu0 %v3304
      %v3690 = vpop.f32.mrf.mxu0
      %v3691 = vadd.f32 0.0, %v3690
      %v3692 = vpop.f32.mrf.mxu0
      %3693 = vdwg.mxu0
      %3694 = vmatpush.bf16.msra.mxu0 0
      %3695 = vmatpush.bf16.msra.mxu0 0
      %3696 = vmatpush.bf16.msra.mxu0 0
      %3697 = vmatpush.bf16.msra.mxu0 0
      %3698 = vmatpush.bf16.msra.mxu0 %v3630
      %3699 = vmatpush.bf16.msra.mxu0 %v3628
      %3700 = vmatpush.bf16.msra.mxu0 %v3626
      %3701 = vmatpush.bf16.msra.mxu0 %v3624
      %3702 = vmatmul.bf16.gmra.mxu0 %v3452
      %v3703 = vpop.f32.mrf.mxu0
      %v3704 = vadd.f32 %v3691, %v3703
      %v3705 = vpop.f32.mrf.mxu0
      %3706 = vdwg.mxu0
      %v3707 = vpack.c.bf16 %v3678, %v3678
      %v3708 = vpack.c.bf16 %v3704, %v3704
      %vm3709 = vcmask 31744
      %v3711 = vsel %vm3709, %v3509, 0
      %vm3713 = vcmask 1041408
      %v3715 = vsel %vm3713, %v3707, 0
      %v3718 = vsel %vm3713, %v3708, 0
      %3720 = vmatpush.bf16.msra.mxu0 0
      %3721 = vmatpush.bf16.msra.mxu0 0
      %3722 = vmatpush.bf16.msra.mxu0 0
      %3723 = vmatpush.bf16.msra.mxu0 0
      %3724 = vmatpush.bf16.msra.mxu0 0
      %3725 = vmatpush.bf16.msra.mxu0 0
      %3726 = vmatpush.bf16.msra.mxu0 0
      %3727 = vmatpush.bf16.msra.mxu0 %v3715
      %3728 = vmatmul.bf16.gmra.mxu0 %v3711
      %v3729 = vpop.f32.mrf.mxu0
      %v3730 = vadd.f32 0.0, %v3729
      %v3731 = vpop.f32.mrf.mxu0
      %3732 = vdwg.mxu0
      %3733 = vmatpush.bf16.msra.mxu0 0
      %3734 = vmatpush.bf16.msra.mxu0 0
      %3735 = vmatpush.bf16.msra.mxu0 0
      %3736 = vmatpush.bf16.msra.mxu0 0
      %3737 = vmatpush.bf16.msra.mxu0 0
      %3738 = vmatpush.bf16.msra.mxu0 0
      %3739 = vmatpush.bf16.msra.mxu0 0
      %3740 = vmatpush.bf16.msra.mxu0 %v3718
      %3741 = vmatmul.bf16.gmra.mxu0 %v3711
      %v3742 = vpop.f32.mrf.mxu0
      %v3743 = vadd.f32 0.0, %v3742
      %v3744 = vpop.f32.mrf.mxu0
      %3745 = vdwg.mxu0
      %v3747 = vsel %vm3709, %v3306, 0
      %v3750 = vsel %vm3713, %v3506, 0
      %v3753 = vsel %vm3713, %v3507, 0
      %3755 = vmatpush.bf16.msra.mxu0 0
      %3756 = vmatpush.bf16.msra.mxu0 0
      %3757 = vmatpush.bf16.msra.mxu0 0
      %3758 = vmatpush.bf16.msra.mxu0 0
      %3759 = vmatpush.bf16.msra.mxu0 0
      %3760 = vmatpush.bf16.msra.mxu0 0
      %3761 = vmatpush.bf16.msra.mxu0 0
      %3762 = vmatpush.bf16.msra.mxu0 %v3750
      %3763 = vmatmul.bf16.gmra.mxu0 %v3747
      %v3764 = vpop.f32.mrf.mxu0
      %v3765 = vadd.f32 %v3730, %v3764
      %v3766 = vpop.f32.mrf.mxu0
      %3767 = vdwg.mxu0
      %3768 = vmatpush.bf16.msra.mxu0 0
      %3769 = vmatpush.bf16.msra.mxu0 0
      %3770 = vmatpush.bf16.msra.mxu0 0
      %3771 = vmatpush.bf16.msra.mxu0 0
      %3772 = vmatpush.bf16.msra.mxu0 0
      %3773 = vmatpush.bf16.msra.mxu0 0
      %3774 = vmatpush.bf16.msra.mxu0 0
      %3775 = vmatpush.bf16.msra.mxu0 %v3753
      %3776 = vmatmul.bf16.gmra.mxu0 %v3747
      %v3777 = vpop.f32.mrf.mxu0
      %v3778 = vadd.f32 %v3743, %v3777
      %v3779 = vpop.f32.mrf.mxu0
      %3780 = vdwg.mxu0
      %s3781 = scalar_lea.vmem %s10, 8
      %v3782 = vld [vmem:[%s3781] sm:$0xf]
      %s3783 = scalar_lea.vmem %s11, 384
      %v3784 = vld [vmem:[%s3783] sm:$0xff]
      %v3785 = vld [vmem:[%s3783 + $0x8] sm:$0xff]
      %v3786 = vld [vmem:[%s3783 + $0x10] sm:$0xff]
      %v3787 = vld [vmem:[%s3783 + $0x18] sm:$0xff]
      %v3788 = vld [vmem:[%s3783 + $0x20] sm:$0xff]
      %v3789 = vld [vmem:[%s3783 + $0x28] sm:$0xff]
      %v3790 = vld [vmem:[%s3783 + $0x30] sm:$0xff]
      %v3791 = vld [vmem:[%s3783 + $0x38] sm:$0xff]
      %v3792 = vld [vmem:[%s3783 + $0x40] sm:$0xff]
      %v3793 = vld [vmem:[%s3783 + $0x48] sm:$0xff]
      %v3794 = vld [vmem:[%s3783 + $0x50] sm:$0xff]
      %v3795 = vld [vmem:[%s3783 + $0x58] sm:$0xff]
      %v3796 = vld [vmem:[%s3783 + $0x60] sm:$0xff]
      %v3797 = vld [vmem:[%s3783 + $0x68] sm:$0xff]
      %v3798 = vld [vmem:[%s3783 + $0x70] sm:$0xff]
      %v3799 = vld [vmem:[%s3783 + $0x78] sm:$0xff]
      %v3800 = vld [vmem:[%s3783 + $0x80] sm:$0xff]
      %v3801 = vld [vmem:[%s3783 + $0x88] sm:$0xff]
      %v3802 = vld [vmem:[%s3783 + $0x90] sm:$0xff]
      %v3803 = vld [vmem:[%s3783 + $0x98] sm:$0xff]
      %v3804 = vld [vmem:[%s3783 + $0xa0] sm:$0xff]
      %v3805 = vld [vmem:[%s3783 + $0xa8] sm:$0xff]
      %v3806 = vld [vmem:[%s3783 + $0xb0] sm:$0xff]
      %v3807 = vld [vmem:[%s3783 + $0xb8] sm:$0xff]
      %v3832 = vunpack.c.l.b16 %v3784
      %v3833 = vunpack.c.h.b16 %v3784
      %v3834 = vunpack.c.l.b16 %v3785
      %v3835 = vunpack.c.h.b16 %v3785
      %v3836 = vunpack.c.l.b16 %v3786
      %v3837 = vunpack.c.h.b16 %v3786
      %v3838 = vunpack.c.l.b16 %v3787
      %v3839 = vunpack.c.h.b16 %v3787
      %v3840 = vunpack.c.l.b16 %v3788
      %v3841 = vunpack.c.h.b16 %v3788
      %v3842 = vunpack.c.l.b16 %v3789
      %v3843 = vunpack.c.h.b16 %v3789
      %v3844 = vunpack.c.l.b16 %v3790
      %v3845 = vunpack.c.h.b16 %v3790
      %v3846 = vunpack.c.l.b16 %v3791
      %v3847 = vunpack.c.h.b16 %v3791
      %v3848 = vunpack.c.l.b16 %v3792
      %v3849 = vunpack.c.h.b16 %v3792
      %v3850 = vunpack.c.l.b16 %v3793
      %v3851 = vunpack.c.h.b16 %v3793
      %v3852 = vunpack.c.l.b16 %v3794
      %v3853 = vunpack.c.h.b16 %v3794
      %v3854 = vunpack.c.l.b16 %v3795
      %v3855 = vunpack.c.h.b16 %v3795
      %v3856 = vunpack.c.l.b16 %v3796
      %v3857 = vunpack.c.h.b16 %v3796
      %v3858 = vunpack.c.l.b16 %v3797
      %v3859 = vunpack.c.h.b16 %v3797
      %v3860 = vunpack.c.l.b16 %v3798
      %v3861 = vunpack.c.h.b16 %v3798
      %v3862 = vunpack.c.l.b16 %v3799
      %v3863 = vunpack.c.h.b16 %v3799
      %v3864 = vunpack.c.l.b16 %v3800
      %v3865 = vunpack.c.h.b16 %v3800
      %v3866 = vunpack.c.l.b16 %v3801
      %v3867 = vunpack.c.h.b16 %v3801
      %v3868 = vunpack.c.l.b16 %v3802
      %v3869 = vunpack.c.h.b16 %v3802
      %v3870 = vunpack.c.l.b16 %v3803
      %v3871 = vunpack.c.h.b16 %v3803
      %v3872 = vunpack.c.l.b16 %v3804
      %v3873 = vunpack.c.h.b16 %v3804
      %v3874 = vunpack.c.l.b16 %v3805
      %v3875 = vunpack.c.h.b16 %v3805
      %v3876 = vunpack.c.l.b16 %v3806
      %v3877 = vunpack.c.h.b16 %v3806
      %v3878 = vunpack.c.l.b16 %v3807
      %v3879 = vunpack.c.h.b16 %v3807
      %v3880 = vpack.c.b16 %v3834, %v3832
      %v3881 = vpack.c.b16 %v3835, %v3833
      %v3882 = vpack.c.b16 %v3838, %v3836
      %v3883 = vpack.c.b16 %v3839, %v3837
      %v3884 = vpack.c.b16 %v3842, %v3840
      %v3885 = vpack.c.b16 %v3843, %v3841
      %v3886 = vpack.c.b16 %v3846, %v3844
      %v3887 = vpack.c.b16 %v3847, %v3845
      %v3888 = vpack.c.b16 %v3850, %v3848
      %v3889 = vpack.c.b16 %v3851, %v3849
      %v3890 = vpack.c.b16 %v3854, %v3852
      %v3891 = vpack.c.b16 %v3855, %v3853
      %v3892 = vpack.c.b16 %v3858, %v3856
      %v3893 = vpack.c.b16 %v3859, %v3857
      %v3894 = vpack.c.b16 %v3862, %v3860
      %v3895 = vpack.c.b16 %v3863, %v3861
      %v3896 = vpack.c.b16 %v3866, %v3864
      %v3897 = vpack.c.b16 %v3867, %v3865
      %v3898 = vpack.c.b16 %v3870, %v3868
      %v3899 = vpack.c.b16 %v3871, %v3869
      %v3900 = vpack.c.b16 %v3874, %v3872
      %v3901 = vpack.c.b16 %v3875, %v3873
      %v3902 = vpack.c.b16 %v3878, %v3876
      %v3903 = vpack.c.b16 %v3879, %v3877
      %3928 = vmatpush.bf16.msra.mxu0 %v3894
      %3929 = vmatpush.bf16.msra.mxu0 %v3892
      %3930 = vmatpush.bf16.msra.mxu0 %v3890
      %3931 = vmatpush.bf16.msra.mxu0 %v3888
      %3932 = vmatpush.bf16.msra.mxu0 %v3886
      %3933 = vmatpush.bf16.msra.mxu0 %v3884
      %3934 = vmatpush.bf16.msra.mxu0 %v3882
      %3935 = vmatpush.bf16.msra.mxu0 %v3880
      %3936 = vmatmul.bf16.gmra.mxu0 %v3304
      %v3937 = vpop.f32.mrf.mxu0
      %v3938 = vadd.f32 0.0, %v3937
      %v3939 = vpop.f32.mrf.mxu0
      %3940 = vdwg.mxu0
      %3941 = vmatpush.bf16.msra.mxu0 0
      %3942 = vmatpush.bf16.msra.mxu0 0
      %3943 = vmatpush.bf16.msra.mxu0 0
      %3944 = vmatpush.bf16.msra.mxu0 0
      %3945 = vmatpush.bf16.msra.mxu0 %v3902
      %3946 = vmatpush.bf16.msra.mxu0 %v3900
      %3947 = vmatpush.bf16.msra.mxu0 %v3898
      %3948 = vmatpush.bf16.msra.mxu0 %v3896
      %3949 = vmatmul.bf16.gmra.mxu0 %v3452
      %v3950 = vpop.f32.mrf.mxu0
      %v3951 = vadd.f32 %v3938, %v3950
      %v3952 = vpop.f32.mrf.mxu0
      %3953 = vdwg.mxu0
      %3954 = vmatpush.bf16.msra.mxu0 %v3895
      %3955 = vmatpush.bf16.msra.mxu0 %v3893
      %3956 = vmatpush.bf16.msra.mxu0 %v3891
      %3957 = vmatpush.bf16.msra.mxu0 %v3889
      %3958 = vmatpush.bf16.msra.mxu0 %v3887
      %3959 = vmatpush.bf16.msra.mxu0 %v3885
      %3960 = vmatpush.bf16.msra.mxu0 %v3883
      %3961 = vmatpush.bf16.msra.mxu0 %v3881
      %3962 = vmatmul.bf16.gmra.mxu0 %v3304
      %v3963 = vpop.f32.mrf.mxu0
      %v3964 = vadd.f32 0.0, %v3963
      %v3965 = vpop.f32.mrf.mxu0
      %3966 = vdwg.mxu0
      %3967 = vmatpush.bf16.msra.mxu0 0
      %3968 = vmatpush.bf16.msra.mxu0 0
      %3969 = vmatpush.bf16.msra.mxu0 0
      %3970 = vmatpush.bf16.msra.mxu0 0
      %3971 = vmatpush.bf16.msra.mxu0 %v3903
      %3972 = vmatpush.bf16.msra.mxu0 %v3901
      %3973 = vmatpush.bf16.msra.mxu0 %v3899
      %3974 = vmatpush.bf16.msra.mxu0 %v3897
      %3975 = vmatmul.bf16.gmra.mxu0 %v3452
      %v3976 = vpop.f32.mrf.mxu0
      %v3977 = vadd.f32 %v3964, %v3976
      %v3978 = vpop.f32.mrf.mxu0
      %3979 = vdwg.mxu0
      %v3980 = vpack.c.bf16 %v3951, %v3951
      %v3981 = vpack.c.bf16 %v3977, %v3977
      %v3983 = vsel %vm3709, %v3782, 0
      %v3986 = vsel %vm3713, %v3980, 0
      %v3989 = vsel %vm3713, %v3981, 0
      %3991 = vmatpush.bf16.msra.mxu0 0
      %3992 = vmatpush.bf16.msra.mxu0 0
      %3993 = vmatpush.bf16.msra.mxu0 0
      %3994 = vmatpush.bf16.msra.mxu0 0
      %3995 = vmatpush.bf16.msra.mxu0 0
      %3996 = vmatpush.bf16.msra.mxu0 0
      %3997 = vmatpush.bf16.msra.mxu0 0
      %3998 = vmatpush.bf16.msra.mxu0 %v3986
      %3999 = vmatmul.bf16.gmra.mxu0 %v3983
      %v4000 = vpop.f32.mrf.mxu0
      %v4001 = vadd.f32 0.0, %v4000
      %v4002 = vpop.f32.mrf.mxu0
      %4003 = vdwg.mxu0
      %4004 = vmatpush.bf16.msra.mxu0 0
      %4005 = vmatpush.bf16.msra.mxu0 0
      %4006 = vmatpush.bf16.msra.mxu0 0
      %4007 = vmatpush.bf16.msra.mxu0 0
      %4008 = vmatpush.bf16.msra.mxu0 0
      %4009 = vmatpush.bf16.msra.mxu0 0
      %4010 = vmatpush.bf16.msra.mxu0 0
      %4011 = vmatpush.bf16.msra.mxu0 %v3989
      %4012 = vmatmul.bf16.gmra.mxu0 %v3983
      %v4013 = vpop.f32.mrf.mxu0
      %v4014 = vadd.f32 0.0, %v4013
      %v4015 = vpop.f32.mrf.mxu0
      %4016 = vdwg.mxu0
      %v4017 = vadd.f32 %v3765, %v4001
      %v4018 = vadd.f32 %v3778, %v4014
      %s4019 = scalar_lea.vmem %s10, 12
      %v4020 = vld [vmem:[%s4019] sm:$0xf]
      %s4021 = scalar_lea.vmem %s11, 576
      %v4022 = vld [vmem:[%s4021] sm:$0xff]
      %v4023 = vld [vmem:[%s4021 + $0x8] sm:$0xff]
      %v4024 = vld [vmem:[%s4021 + $0x10] sm:$0xff]
      %v4025 = vld [vmem:[%s4021 + $0x18] sm:$0xff]
      %v4026 = vld [vmem:[%s4021 + $0x20] sm:$0xff]
      %v4027 = vld [vmem:[%s4021 + $0x28] sm:$0xff]
      %v4028 = vld [vmem:[%s4021 + $0x30] sm:$0xff]
      %v4029 = vld [vmem:[%s4021 + $0x38] sm:$0xff]
      %v4030 = vld [vmem:[%s4021 + $0x40] sm:$0xff]
      %v4031 = vld [vmem:[%s4021 + $0x48] sm:$0xff]
      %v4032 = vld [vmem:[%s4021 + $0x50] sm:$0xff]
      %v4033 = vld [vmem:[%s4021 + $0x58] sm:$0xff]
      %v4034 = vld [vmem:[%s4021 + $0x60] sm:$0xff]
      %v4035 = vld [vmem:[%s4021 + $0x68] sm:$0xff]
      %v4036 = vld [vmem:[%s4021 + $0x70] sm:$0xff]
      %v4037 = vld [vmem:[%s4021 + $0x78] sm:$0xff]
      %v4038 = vld [vmem:[%s4021 + $0x80] sm:$0xff]
      %v4039 = vld [vmem:[%s4021 + $0x88] sm:$0xff]
      %v4040 = vld [vmem:[%s4021 + $0x90] sm:$0xff]
      %v4041 = vld [vmem:[%s4021 + $0x98] sm:$0xff]
      %v4042 = vld [vmem:[%s4021 + $0xa0] sm:$0xff]
      %v4043 = vld [vmem:[%s4021 + $0xa8] sm:$0xff]
      %v4044 = vld [vmem:[%s4021 + $0xb0] sm:$0xff]
      %v4045 = vld [vmem:[%s4021 + $0xb8] sm:$0xff]
      %v4070 = vunpack.c.l.b16 %v4022
      %v4071 = vunpack.c.h.b16 %v4022
      %v4072 = vunpack.c.l.b16 %v4023
      %v4073 = vunpack.c.h.b16 %v4023
      %v4074 = vunpack.c.l.b16 %v4024
      %v4075 = vunpack.c.h.b16 %v4024
      %v4076 = vunpack.c.l.b16 %v4025
      %v4077 = vunpack.c.h.b16 %v4025
      %v4078 = vunpack.c.l.b16 %v4026
      %v4079 = vunpack.c.h.b16 %v4026
      %v4080 = vunpack.c.l.b16 %v4027
      %v4081 = vunpack.c.h.b16 %v4027
      %v4082 = vunpack.c.l.b16 %v4028
      %v4083 = vunpack.c.h.b16 %v4028
      %v4084 = vunpack.c.l.b16 %v4029
      %v4085 = vunpack.c.h.b16 %v4029
      %v4086 = vunpack.c.l.b16 %v4030
      %v4087 = vunpack.c.h.b16 %v4030
      %v4088 = vunpack.c.l.b16 %v4031
      %v4089 = vunpack.c.h.b16 %v4031
      %v4090 = vunpack.c.l.b16 %v4032
      %v4091 = vunpack.c.h.b16 %v4032
      %v4092 = vunpack.c.l.b16 %v4033
      %v4093 = vunpack.c.h.b16 %v4033
      %v4094 = vunpack.c.l.b16 %v4034
      %v4095 = vunpack.c.h.b16 %v4034
      %v4096 = vunpack.c.l.b16 %v4035
      %v4097 = vunpack.c.h.b16 %v4035
      %v4098 = vunpack.c.l.b16 %v4036
      %v4099 = vunpack.c.h.b16 %v4036
      %v4100 = vunpack.c.l.b16 %v4037
      %v4101 = vunpack.c.h.b16 %v4037
      %v4102 = vunpack.c.l.b16 %v4038
      %v4103 = vunpack.c.h.b16 %v4038
      %v4104 = vunpack.c.l.b16 %v4039
      %v4105 = vunpack.c.h.b16 %v4039
      %v4106 = vunpack.c.l.b16 %v4040
      %v4107 = vunpack.c.h.b16 %v4040
      %v4108 = vunpack.c.l.b16 %v4041
      %v4109 = vunpack.c.h.b16 %v4041
      %v4110 = vunpack.c.l.b16 %v4042
      %v4111 = vunpack.c.h.b16 %v4042
      %v4112 = vunpack.c.l.b16 %v4043
      %v4113 = vunpack.c.h.b16 %v4043
      %v4114 = vunpack.c.l.b16 %v4044
      %v4115 = vunpack.c.h.b16 %v4044
      %v4116 = vunpack.c.l.b16 %v4045
      %v4117 = vunpack.c.h.b16 %v4045
      %v4118 = vpack.c.b16 %v4072, %v4070
      %v4119 = vpack.c.b16 %v4073, %v4071
      %v4120 = vpack.c.b16 %v4076, %v4074
      %v4121 = vpack.c.b16 %v4077, %v4075
      %v4122 = vpack.c.b16 %v4080, %v4078
      %v4123 = vpack.c.b16 %v4081, %v4079
      %v4124 = vpack.c.b16 %v4084, %v4082
      %v4125 = vpack.c.b16 %v4085, %v4083
      %v4126 = vpack.c.b16 %v4088, %v4086
      %v4127 = vpack.c.b16 %v4089, %v4087
      %v4128 = vpack.c.b16 %v4092, %v4090
      %v4129 = vpack.c.b16 %v4093, %v4091
      %v4130 = vpack.c.b16 %v4096, %v4094
      %v4131 = vpack.c.b16 %v4097, %v4095
      %v4132 = vpack.c.b16 %v4100, %v4098
      %v4133 = vpack.c.b16 %v4101, %v4099
      %v4134 = vpack.c.b16 %v4104, %v4102
      %v4135 = vpack.c.b16 %v4105, %v4103
      %v4136 = vpack.c.b16 %v4108, %v4106
      %v4137 = vpack.c.b16 %v4109, %v4107
      %v4138 = vpack.c.b16 %v4112, %v4110
      %v4139 = vpack.c.b16 %v4113, %v4111
      %v4140 = vpack.c.b16 %v4116, %v4114
      %v4141 = vpack.c.b16 %v4117, %v4115
      %4166 = vmatpush.bf16.msra.mxu0 %v4132
      %4167 = vmatpush.bf16.msra.mxu0 %v4130
      %4168 = vmatpush.bf16.msra.mxu0 %v4128
      %4169 = vmatpush.bf16.msra.mxu0 %v4126
      %4170 = vmatpush.bf16.msra.mxu0 %v4124
      %4171 = vmatpush.bf16.msra.mxu0 %v4122
      %4172 = vmatpush.bf16.msra.mxu0 %v4120
      %4173 = vmatpush.bf16.msra.mxu0 %v4118
      %4174 = vmatmul.bf16.gmra.mxu0 %v3304
      %v4175 = vpop.f32.mrf.mxu0
      %v4176 = vadd.f32 0.0, %v4175
      %v4177 = vpop.f32.mrf.mxu0
      %4178 = vdwg.mxu0
      %4179 = vmatpush.bf16.msra.mxu0 0
      %4180 = vmatpush.bf16.msra.mxu0 0
      %4181 = vmatpush.bf16.msra.mxu0 0
      %4182 = vmatpush.bf16.msra.mxu0 0
      %4183 = vmatpush.bf16.msra.mxu0 %v4140
      %4184 = vmatpush.bf16.msra.mxu0 %v4138
      %4185 = vmatpush.bf16.msra.mxu0 %v4136
      %4186 = vmatpush.bf16.msra.mxu0 %v4134
      %4187 = vmatmul.bf16.gmra.mxu0 %v3452
      %v4188 = vpop.f32.mrf.mxu0
      %v4189 = vadd.f32 %v4176, %v4188
      %v4190 = vpop.f32.mrf.mxu0
      %4191 = vdwg.mxu0
      %4192 = vmatpush.bf16.msra.mxu0 %v4133
      %4193 = vmatpush.bf16.msra.mxu0 %v4131
      %4194 = vmatpush.bf16.msra.mxu0 %v4129
      %4195 = vmatpush.bf16.msra.mxu0 %v4127
      %4196 = vmatpush.bf16.msra.mxu0 %v4125
      %4197 = vmatpush.bf16.msra.mxu0 %v4123
      %4198 = vmatpush.bf16.msra.mxu0 %v4121
      %4199 = vmatpush.bf16.msra.mxu0 %v4119
      %4200 = vmatmul.bf16.gmra.mxu0 %v3304
      %v4201 = vpop.f32.mrf.mxu0
      %v4202 = vadd.f32 0.0, %v4201
      %v4203 = vpop.f32.mrf.mxu0
      %4204 = vdwg.mxu0
      %4205 = vmatpush.bf16.msra.mxu0 0
      %4206 = vmatpush.bf16.msra.mxu0 0
      %4207 = vmatpush.bf16.msra.mxu0 0
      %4208 = vmatpush.bf16.msra.mxu0 0
      %4209 = vmatpush.bf16.msra.mxu0 %v4141
      %4210 = vmatpush.bf16.msra.mxu0 %v4139
      %4211 = vmatpush.bf16.msra.mxu0 %v4137
      %4212 = vmatpush.bf16.msra.mxu0 %v4135
      %4213 = vmatmul.bf16.gmra.mxu0 %v3452
      %v4214 = vpop.f32.mrf.mxu0
      %v4215 = vadd.f32 %v4202, %v4214
      %v4216 = vpop.f32.mrf.mxu0
      %4217 = vdwg.mxu0
      %v4218 = vpack.c.bf16 %v4189, %v4189
      %v4219 = vpack.c.bf16 %v4215, %v4215
      %v4221 = vsel %vm3709, %v4020, 0
      %v4224 = vsel %vm3713, %v4218, 0
      %v4227 = vsel %vm3713, %v4219, 0
      %4229 = vmatpush.bf16.msra.mxu0 0
      %4230 = vmatpush.bf16.msra.mxu0 0
      %4231 = vmatpush.bf16.msra.mxu0 0
      %4232 = vmatpush.bf16.msra.mxu0 0
      %4233 = vmatpush.bf16.msra.mxu0 0
      %4234 = vmatpush.bf16.msra.mxu0 0
      %4235 = vmatpush.bf16.msra.mxu0 0
      %4236 = vmatpush.bf16.msra.mxu0 %v4224
      %4237 = vmatmul.bf16.gmra.mxu0 %v4221
      %v4238 = vpop.f32.mrf.mxu0
      %v4239 = vadd.f32 0.0, %v4238
      %v4240 = vpop.f32.mrf.mxu0
      %4241 = vdwg.mxu0
      %4242 = vmatpush.bf16.msra.mxu0 0
      %4243 = vmatpush.bf16.msra.mxu0 0
      %4244 = vmatpush.bf16.msra.mxu0 0
      %4245 = vmatpush.bf16.msra.mxu0 0
      %4246 = vmatpush.bf16.msra.mxu0 0
      %4247 = vmatpush.bf16.msra.mxu0 0
      %4248 = vmatpush.bf16.msra.mxu0 0
      %4249 = vmatpush.bf16.msra.mxu0 %v4227
      %4250 = vmatmul.bf16.gmra.mxu0 %v4221
      %v4251 = vpop.f32.mrf.mxu0
      %v4252 = vadd.f32 0.0, %v4251
      %v4253 = vpop.f32.mrf.mxu0
      %4254 = vdwg.mxu0
      %v4255 = vadd.f32 %v4017, %v4239
      %v4256 = vadd.f32 %v4018, %v4252
      %v4257 = vld [vmem:[%s12] sm:$0x3]
      %v4259 = vperm.slane %v4257, 0
      %v4260 = vperm.slane %v4257, 1
      %v4263 = vadd.f32 %v4255, %v4259
      %v4264 = vadd.f32 %v4256, %v4260
      %v4265 = vmin.f32 %v4263, 20.0
      %v4266 = vmin.f32 %v4264, 20.0
      %v4267 = vmul.f32 %v4265, 1.442695
      %v4268 = vpow.pop %v4267
      %v4269 = vmul.f32 %v4266, 1.442695
      %v4270 = vpow.pop %v4269
      %v4271 = vadd.f32 %v4268, 1.0
      %v4272 = vadd.f32 %v4270, 1.0
      %v4273 = vmul.f32 %v4271, %v4271
      %v4274 = vmul.f32 %v4272, %v4272
      %v4275 = vsub.f32 %v4273, 1.0
      %v4276 = vsub.f32 %v4274, 1.0
      %v4277 = vadd.f32 %v4273, 1.0
      %v4278 = vadd.f32 %v4274, 1.0
      %v4279 = vrcp.pop %v4277
      %v4280 = vmul.f32 %v4277, %v4279
      %v4281 = vsub.f32 1.0, %v4280
      %v4282 = vmul.f32 %v4279, %v4281
      %v4283 = vadd.f32 %v4279, %v4282
      %vm4284 = vweird.f32 %v4277
      %vm4285 = vweird.f32 %v4279
      %vm4286 = vmor %vm4284, %vm4285
      %v4287 = vsel %vm4286, %v4279, %v4283
      %v4288 = vand.u32 2147483647, %v4277
      %vm4289 = vcmp.eq.f32.partialorder %v4288, 8.507059e+37
      %v4290 = vand.u32 %v4277, 2147483648
      %v4291 = vor.u32 1.1754944e-38, %v4290
      %v4292 = vsel %vm4289, %v4291, %v4287
      %v4293 = vmul.f32 %v4275, %v4292
      %v4294 = vrcp.pop %v4278
      %v4295 = vmul.f32 %v4278, %v4294
      %v4296 = vsub.f32 1.0, %v4295
      %v4297 = vmul.f32 %v4294, %v4296
      %v4298 = vadd.f32 %v4294, %v4297
      %vm4299 = vweird.f32 %v4278
      %vm4300 = vweird.f32 %v4294
      %vm4301 = vmor %vm4299, %vm4300
      %v4302 = vsel %vm4301, %v4294, %v4298
      %v4303 = vand.u32 2147483647, %v4278
      %vm4304 = vcmp.eq.f32.partialorder %v4303, 8.507059e+37
      %v4305 = vand.u32 %v4278, 2147483648
      %v4306 = vor.u32 1.1754944e-38, %v4305
      %v4307 = vsel %vm4304, %v4306, %v4302
      %v4308 = vmul.f32 %v4276, %v4307
      %vm4309 = vcmp.gt.f32.partialorder %v4263, 20.0
      %vm4310 = vcmp.gt.f32.partialorder %v4264, 20.0
      %v4311 = vsel %vm4309, 1.0, %v4293
      %v4312 = vsel %vm4310, 1.0, %v4308
      %v4313 = vmul.f32 %v4263, %v4311
      %v4314 = vmul.f32 %v4264, %v4312
      %v4315 = vpack.c.bf16 %v4313, %v4313
      %v4316 = vpack.c.bf16 %v4314, %v4314
      %v4317 = vld [vmem:[%s13] sm:$0xf]
      %v4318 = vld [vmem:[%s13 + $0x4] sm:$0xf]
      %v4319 = vld [vmem:[%s14] sm:$0xff]
      %v4320 = vld [vmem:[%s14 + $0x8] sm:$0xff]
      %v4321 = vld [vmem:[%s14 + $0x10] sm:$0xff]
      %v4322 = vld [vmem:[%s14 + $0x18] sm:$0xff]
      %v4323 = vld [vmem:[%s14 + $0x20] sm:$0xff]
      %v4324 = vld [vmem:[%s14 + $0x28] sm:$0xff]
      %v4325 = vld [vmem:[%s14 + $0x30] sm:$0xff]
      %v4326 = vld [vmem:[%s14 + $0x38] sm:$0xff]
      %v4327 = vld [vmem:[%s14 + $0x40] sm:$0xff]
      %v4328 = vld [vmem:[%s14 + $0x48] sm:$0xff]
      %v4329 = vld [vmem:[%s14 + $0x50] sm:$0xff]
      %v4330 = vld [vmem:[%s14 + $0x58] sm:$0xff]
      %v4331 = vld [vmem:[%s14 + $0x60] sm:$0xff]
      %v4332 = vld [vmem:[%s14 + $0x68] sm:$0xff]
      %v4333 = vld [vmem:[%s14 + $0x70] sm:$0xff]
      %v4334 = vld [vmem:[%s14 + $0x78] sm:$0xff]
      %v4335 = vld [vmem:[%s14 + $0x80] sm:$0xff]
      %v4336 = vld [vmem:[%s14 + $0x88] sm:$0xff]
      %v4337 = vld [vmem:[%s14 + $0x90] sm:$0xff]
      %v4338 = vld [vmem:[%s14 + $0x98] sm:$0xff]
      %v4339 = vld [vmem:[%s14 + $0xa0] sm:$0xff]
      %v4340 = vld [vmem:[%s14 + $0xa8] sm:$0xff]
      %v4341 = vld [vmem:[%s14 + $0xb0] sm:$0xff]
      %v4342 = vld [vmem:[%s14 + $0xb8] sm:$0xff]
      %v4367 = vunpack.c.l.b16 %v4319
      %v4368 = vunpack.c.h.b16 %v4319
      %v4369 = vunpack.c.l.b16 %v4320
      %v4370 = vunpack.c.h.b16 %v4320
      %v4371 = vunpack.c.l.b16 %v4321
      %v4372 = vunpack.c.h.b16 %v4321
      %v4373 = vunpack.c.l.b16 %v4322
      %v4374 = vunpack.c.h.b16 %v4322
      %v4375 = vunpack.c.l.b16 %v4323
      %v4376 = vunpack.c.h.b16 %v4323
      %v4377 = vunpack.c.l.b16 %v4324
      %v4378 = vunpack.c.h.b16 %v4324
      %v4379 = vunpack.c.l.b16 %v4325
      %v4380 = vunpack.c.h.b16 %v4325
      %v4381 = vunpack.c.l.b16 %v4326
      %v4382 = vunpack.c.h.b16 %v4326
      %v4383 = vunpack.c.l.b16 %v4327
      %v4384 = vunpack.c.h.b16 %v4327
      %v4385 = vunpack.c.l.b16 %v4328
      %v4386 = vunpack.c.h.b16 %v4328
      %v4387 = vunpack.c.l.b16 %v4329
      %v4388 = vunpack.c.h.b16 %v4329
      %v4389 = vunpack.c.l.b16 %v4330
      %v4390 = vunpack.c.h.b16 %v4330
      %v4391 = vunpack.c.l.b16 %v4331
      %v4392 = vunpack.c.h.b16 %v4331
      %v4393 = vunpack.c.l.b16 %v4332
      %v4394 = vunpack.c.h.b16 %v4332
      %v4395 = vunpack.c.l.b16 %v4333
      %v4396 = vunpack.c.h.b16 %v4333
      %v4397 = vunpack.c.l.b16 %v4334
      %v4398 = vunpack.c.h.b16 %v4334
      %v4399 = vunpack.c.l.b16 %v4335
      %v4400 = vunpack.c.h.b16 %v4335
      %v4401 = vunpack.c.l.b16 %v4336
      %v4402 = vunpack.c.h.b16 %v4336
      %v4403 = vunpack.c.l.b16 %v4337
      %v4404 = vunpack.c.h.b16 %v4337
      %v4405 = vunpack.c.l.b16 %v4338
      %v4406 = vunpack.c.h.b16 %v4338
      %v4407 = vunpack.c.l.b16 %v4339
      %v4408 = vunpack.c.h.b16 %v4339
      %v4409 = vunpack.c.l.b16 %v4340
      %v4410 = vunpack.c.h.b16 %v4340
      %v4411 = vunpack.c.l.b16 %v4341
      %v4412 = vunpack.c.h.b16 %v4341
      %v4413 = vunpack.c.l.b16 %v4342
      %v4414 = vunpack.c.h.b16 %v4342
      %v4415 = vpack.c.b16 %v4369, %v4367
      %v4416 = vpack.c.b16 %v4370, %v4368
      %v4417 = vpack.c.b16 %v4373, %v4371
      %v4418 = vpack.c.b16 %v4374, %v4372
      %v4419 = vpack.c.b16 %v4377, %v4375
      %v4420 = vpack.c.b16 %v4378, %v4376
      %v4421 = vpack.c.b16 %v4381, %v4379
      %v4422 = vpack.c.b16 %v4382, %v4380
      %v4423 = vpack.c.b16 %v4385, %v4383
      %v4424 = vpack.c.b16 %v4386, %v4384
      %v4425 = vpack.c.b16 %v4389, %v4387
      %v4426 = vpack.c.b16 %v4390, %v4388
      %v4427 = vpack.c.b16 %v4393, %v4391
      %v4428 = vpack.c.b16 %v4394, %v4392
      %v4429 = vpack.c.b16 %v4397, %v4395
      %v4430 = vpack.c.b16 %v4398, %v4396
      %v4431 = vpack.c.b16 %v4401, %v4399
      %v4432 = vpack.c.b16 %v4402, %v4400
      %v4433 = vpack.c.b16 %v4405, %v4403
      %v4434 = vpack.c.b16 %v4406, %v4404
      %v4435 = vpack.c.b16 %v4409, %v4407
      %v4436 = vpack.c.b16 %v4410, %v4408
      %v4437 = vpack.c.b16 %v4413, %v4411
      %v4438 = vpack.c.b16 %v4414, %v4412
      %v4464 = vsel %vm1535, %v4316, 0
      %4466 = vmatpush.bf16.msra.mxu0 %v4429
      %4467 = vmatpush.bf16.msra.mxu0 %v4427
      %4468 = vmatpush.bf16.msra.mxu0 %v4425
      %4469 = vmatpush.bf16.msra.mxu0 %v4423
      %4470 = vmatpush.bf16.msra.mxu0 %v4421
      %4471 = vmatpush.bf16.msra.mxu0 %v4419
      %4472 = vmatpush.bf16.msra.mxu0 %v4417
      %4473 = vmatpush.bf16.msra.mxu0 %v4415
      %4474 = vmatmul.bf16.gmra.mxu0 %v4315
      %v4475 = vpop.f32.mrf.mxu0
      %v4476 = vadd.f32 0.0, %v4475
      %v4477 = vpop.f32.mrf.mxu0
      %4478 = vdwg.mxu0
      %4479 = vmatpush.bf16.msra.mxu0 0
      %4480 = vmatpush.bf16.msra.mxu0 0
      %4481 = vmatpush.bf16.msra.mxu0 0
      %4482 = vmatpush.bf16.msra.mxu0 0
      %4483 = vmatpush.bf16.msra.mxu0 %v4437
      %4484 = vmatpush.bf16.msra.mxu0 %v4435
      %4485 = vmatpush.bf16.msra.mxu0 %v4433
      %4486 = vmatpush.bf16.msra.mxu0 %v4431
      %4487 = vmatmul.bf16.gmra.mxu0 %v4464
      %v4488 = vpop.f32.mrf.mxu0
      %v4489 = vadd.f32 %v4476, %v4488
      %v4490 = vpop.f32.mrf.mxu0
      %4491 = vdwg.mxu0
      %4492 = vmatpush.bf16.msra.mxu0 %v4430
      %4493 = vmatpush.bf16.msra.mxu0 %v4428
      %4494 = vmatpush.bf16.msra.mxu0 %v4426
      %4495 = vmatpush.bf16.msra.mxu0 %v4424
      %4496 = vmatpush.bf16.msra.mxu0 %v4422
      %4497 = vmatpush.bf16.msra.mxu0 %v4420
      %4498 = vmatpush.bf16.msra.mxu0 %v4418
      %4499 = vmatpush.bf16.msra.mxu0 %v4416
      %4500 = vmatmul.bf16.gmra.mxu0 %v4315
      %v4501 = vpop.f32.mrf.mxu0
      %v4502 = vadd.f32 0.0, %v4501
      %v4503 = vpop.f32.mrf.mxu0
      %4504 = vdwg.mxu0
      %4505 = vmatpush.bf16.msra.mxu0 0
      %4506 = vmatpush.bf16.msra.mxu0 0
      %4507 = vmatpush.bf16.msra.mxu0 0
      %4508 = vmatpush.bf16.msra.mxu0 0
      %4509 = vmatpush.bf16.msra.mxu0 %v4438
      %4510 = vmatpush.bf16.msra.mxu0 %v4436
      %4511 = vmatpush.bf16.msra.mxu0 %v4434
      %4512 = vmatpush.bf16.msra.mxu0 %v4432
      %4513 = vmatmul.bf16.gmra.mxu0 %v4464
      %v4514 = vpop.f32.mrf.mxu0
      %v4515 = vadd.f32 %v4502, %v4514
      %v4516 = vpop.f32.mrf.mxu0
      %4517 = vdwg.mxu0
      %v4518 = vpack.c.bf16 %v4489, %v4489
      %v4519 = vpack.c.bf16 %v4515, %v4515
      %s4520 = scalar_lea.vmem %s13, 8
      %v4521 = vld [vmem:[%s4520] sm:$0xf]
      %v4522 = vld [vmem:[%s4520 + $0x4] sm:$0xf]
      %s4523 = scalar_lea.vmem %s14, 192
      %v4524 = vld [vmem:[%s4523] sm:$0xff]
      %v4525 = vld [vmem:[%s4523 + $0x8] sm:$0xff]
      %v4526 = vld [vmem:[%s4523 + $0x10] sm:$0xff]
      %v4527 = vld [vmem:[%s4523 + $0x18] sm:$0xff]
      %v4528 = vld [vmem:[%s4523 + $0x20] sm:$0xff]
      %v4529 = vld [vmem:[%s4523 + $0x28] sm:$0xff]
      %v4530 = vld [vmem:[%s4523 + $0x30] sm:$0xff]
      %v4531 = vld [vmem:[%s4523 + $0x38] sm:$0xff]
      %v4532 = vld [vmem:[%s4523 + $0x40] sm:$0xff]
      %v4533 = vld [vmem:[%s4523 + $0x48] sm:$0xff]
      %v4534 = vld [vmem:[%s4523 + $0x50] sm:$0xff]
      %v4535 = vld [vmem:[%s4523 + $0x58] sm:$0xff]
      %v4536 = vld [vmem:[%s4523 + $0x60] sm:$0xff]
      %v4537 = vld [vmem:[%s4523 + $0x68] sm:$0xff]
      %v4538 = vld [vmem:[%s4523 + $0x70] sm:$0xff]
      %v4539 = vld [vmem:[%s4523 + $0x78] sm:$0xff]
      %v4540 = vld [vmem:[%s4523 + $0x80] sm:$0xff]
      %v4541 = vld [vmem:[%s4523 + $0x88] sm:$0xff]
      %v4542 = vld [vmem:[%s4523 + $0x90] sm:$0xff]
      %v4543 = vld [vmem:[%s4523 + $0x98] sm:$0xff]
      %v4544 = vld [vmem:[%s4523 + $0xa0] sm:$0xff]
      %v4545 = vld [vmem:[%s4523 + $0xa8] sm:$0xff]
      %v4546 = vld [vmem:[%s4523 + $0xb0] sm:$0xff]
      %v4547 = vld [vmem:[%s4523 + $0xb8] sm:$0xff]
      %v4572 = vunpack.c.l.b16 %v4524
      %v4573 = vunpack.c.h.b16 %v4524
      %v4574 = vunpack.c.l.b16 %v4525
      %v4575 = vunpack.c.h.b16 %v4525
      %v4576 = vunpack.c.l.b16 %v4526
      %v4577 = vunpack.c.h.b16 %v4526
      %v4578 = vunpack.c.l.b16 %v4527
      %v4579 = vunpack.c.h.b16 %v4527
      %v4580 = vunpack.c.l.b16 %v4528
      %v4581 = vunpack.c.h.b16 %v4528
      %v4582 = vunpack.c.l.b16 %v4529
      %v4583 = vunpack.c.h.b16 %v4529
      %v4584 = vunpack.c.l.b16 %v4530
      %v4585 = vunpack.c.h.b16 %v4530
      %v4586 = vunpack.c.l.b16 %v4531
      %v4587 = vunpack.c.h.b16 %v4531
      %v4588 = vunpack.c.l.b16 %v4532
      %v4589 = vunpack.c.h.b16 %v4532
      %v4590 = vunpack.c.l.b16 %v4533
      %v4591 = vunpack.c.h.b16 %v4533
      %v4592 = vunpack.c.l.b16 %v4534
      %v4593 = vunpack.c.h.b16 %v4534
      %v4594 = vunpack.c.l.b16 %v4535
      %v4595 = vunpack.c.h.b16 %v4535
      %v4596 = vunpack.c.l.b16 %v4536
      %v4597 = vunpack.c.h.b16 %v4536
      %v4598 = vunpack.c.l.b16 %v4537
      %v4599 = vunpack.c.h.b16 %v4537
      %v4600 = vunpack.c.l.b16 %v4538
      %v4601 = vunpack.c.h.b16 %v4538
      %v4602 = vunpack.c.l.b16 %v4539
      %v4603 = vunpack.c.h.b16 %v4539
      %v4604 = vunpack.c.l.b16 %v4540
      %v4605 = vunpack.c.h.b16 %v4540
      %v4606 = vunpack.c.l.b16 %v4541
      %v4607 = vunpack.c.h.b16 %v4541
      %v4608 = vunpack.c.l.b16 %v4542
      %v4609 = vunpack.c.h.b16 %v4542
      %v4610 = vunpack.c.l.b16 %v4543
      %v4611 = vunpack.c.h.b16 %v4543
      %v4612 = vunpack.c.l.b16 %v4544
      %v4613 = vunpack.c.h.b16 %v4544
      %v4614 = vunpack.c.l.b16 %v4545
      %v4615 = vunpack.c.h.b16 %v4545
      %v4616 = vunpack.c.l.b16 %v4546
      %v4617 = vunpack.c.h.b16 %v4546
      %v4618 = vunpack.c.l.b16 %v4547
      %v4619 = vunpack.c.h.b16 %v4547
      %v4620 = vpack.c.b16 %v4574, %v4572
      %v4621 = vpack.c.b16 %v4575, %v4573
      %v4622 = vpack.c.b16 %v4578, %v4576
      %v4623 = vpack.c.b16 %v4579, %v4577
      %v4624 = vpack.c.b16 %v4582, %v4580
      %v4625 = vpack.c.b16 %v4583, %v4581
      %v4626 = vpack.c.b16 %v4586, %v4584
      %v4627 = vpack.c.b16 %v4587, %v4585
      %v4628 = vpack.c.b16 %v4590, %v4588
      %v4629 = vpack.c.b16 %v4591, %v4589
      %v4630 = vpack.c.b16 %v4594, %v4592
      %v4631 = vpack.c.b16 %v4595, %v4593
      %v4632 = vpack.c.b16 %v4598, %v4596
      %v4633 = vpack.c.b16 %v4599, %v4597
      %v4634 = vpack.c.b16 %v4602, %v4600
      %v4635 = vpack.c.b16 %v4603, %v4601
      %v4636 = vpack.c.b16 %v4606, %v4604
      %v4637 = vpack.c.b16 %v4607, %v4605
      %v4638 = vpack.c.b16 %v4610, %v4608
      %v4639 = vpack.c.b16 %v4611, %v4609
      %v4640 = vpack.c.b16 %v4614, %v4612
      %v4641 = vpack.c.b16 %v4615, %v4613
      %v4642 = vpack.c.b16 %v4618, %v4616
      %v4643 = vpack.c.b16 %v4619, %v4617
      %4668 = vmatpush.bf16.msra.mxu0 %v4634
      %4669 = vmatpush.bf16.msra.mxu0 %v4632
      %4670 = vmatpush.bf16.msra.mxu0 %v4630
      %4671 = vmatpush.bf16.msra.mxu0 %v4628
      %4672 = vmatpush.bf16.msra.mxu0 %v4626
      %4673 = vmatpush.bf16.msra.mxu0 %v4624
      %4674 = vmatpush.bf16.msra.mxu0 %v4622
      %4675 = vmatpush.bf16.msra.mxu0 %v4620
      %4676 = vmatmul.bf16.gmra.mxu0 %v4315
      %v4677 = vpop.f32.mrf.mxu0
      %v4678 = vadd.f32 0.0, %v4677
      %v4679 = vpop.f32.mrf.mxu0
      %4680 = vdwg.mxu0
      %4681 = vmatpush.bf16.msra.mxu0 0
      %4682 = vmatpush.bf16.msra.mxu0 0
      %4683 = vmatpush.bf16.msra.mxu0 0
      %4684 = vmatpush.bf16.msra.mxu0 0
      %4685 = vmatpush.bf16.msra.mxu0 %v4642
      %4686 = vmatpush.bf16.msra.mxu0 %v4640
      %4687 = vmatpush.bf16.msra.mxu0 %v4638
      %4688 = vmatpush.bf16.msra.mxu0 %v4636
      %4689 = vmatmul.bf16.gmra.mxu0 %v4464
      %v4690 = vpop.f32.mrf.mxu0
      %v4691 = vadd.f32 %v4678, %v4690
      %v4692 = vpop.f32.mrf.mxu0
      %4693 = vdwg.mxu0
      %4694 = vmatpush.bf16.msra.mxu0 %v4635
      %4695 = vmatpush.bf16.msra.mxu0 %v4633
      %4696 = vmatpush.bf16.msra.mxu0 %v4631
      %4697 = vmatpush.bf16.msra.mxu0 %v4629
      %4698 = vmatpush.bf16.msra.mxu0 %v4627
      %4699 = vmatpush.bf16.msra.mxu0 %v4625
      %4700 = vmatpush.bf16.msra.mxu0 %v4623
      %4701 = vmatpush.bf16.msra.mxu0 %v4621
      %4702 = vmatmul.bf16.gmra.mxu0 %v4315
      %v4703 = vpop.f32.mrf.mxu0
      %v4704 = vadd.f32 0.0, %v4703
      %v4705 = vpop.f32.mrf.mxu0
      %4706 = vdwg.mxu0
      %4707 = vmatpush.bf16.msra.mxu0 0
      %4708 = vmatpush.bf16.msra.mxu0 0
      %4709 = vmatpush.bf16.msra.mxu0 0
      %4710 = vmatpush.bf16.msra.mxu0 0
      %4711 = vmatpush.bf16.msra.mxu0 %v4643
      %4712 = vmatpush.bf16.msra.mxu0 %v4641
      %4713 = vmatpush.bf16.msra.mxu0 %v4639
      %4714 = vmatpush.bf16.msra.mxu0 %v4637
      %4715 = vmatmul.bf16.gmra.mxu0 %v4464
      %v4716 = vpop.f32.mrf.mxu0
      %v4717 = vadd.f32 %v4704, %v4716
      %v4718 = vpop.f32.mrf.mxu0
      %4719 = vdwg.mxu0
      %v4720 = vpack.c.bf16 %v4691, %v4691
      %v4721 = vpack.c.bf16 %v4717, %v4717
      %v4724 = vunpack.c.l.b16 %v4521
      %v4725 = vunpack.c.l.b16 %v4522
      %v4726 = vpack.c.b16 %v4725, %v4724
      %v4728 = vsel %vm2321, %v4726, 0
      %v4731 = vsel %vm2325, %v4720, 0
      %v4734 = vsel %vm2325, %v4721, 0
      %4736 = vmatpush.bf16.msra.mxu0 0
      %4737 = vmatpush.bf16.msra.mxu0 0
      %4738 = vmatpush.bf16.msra.mxu0 0
      %4739 = vmatpush.bf16.msra.mxu0 0
      %4740 = vmatpush.bf16.msra.mxu0 0
      %4741 = vmatpush.bf16.msra.mxu0 0
      %4742 = vmatpush.bf16.msra.mxu0 0
      %4743 = vmatpush.bf16.msra.mxu0 %v4731
      %4744 = vmatmul.bf16.gmra.mxu0 %v4728
      %v4745 = vpop.f32.mrf.mxu0
      %v4746 = vadd.f32 0.0, %v4745
      %v4747 = vpop.f32.mrf.mxu0
      %v4748 = vadd.f32 0.0, %v4747
      %4749 = vdwg.mxu0
      %4750 = vmatpush.bf16.msra.mxu0 0
      %4751 = vmatpush.bf16.msra.mxu0 0
      %4752 = vmatpush.bf16.msra.mxu0 0
      %4753 = vmatpush.bf16.msra.mxu0 0
      %4754 = vmatpush.bf16.msra.mxu0 0
      %4755 = vmatpush.bf16.msra.mxu0 0
      %4756 = vmatpush.bf16.msra.mxu0 0
      %4757 = vmatpush.bf16.msra.mxu0 %v4734
      %4758 = vmatmul.bf16.gmra.mxu0 %v4728
      %v4759 = vpop.f32.mrf.mxu0
      %v4760 = vadd.f32 0.0, %v4759
      %v4761 = vpop.f32.mrf.mxu0
      %v4762 = vadd.f32 0.0, %v4761
      %4763 = vdwg.mxu0
      %v4766 = vunpack.c.l.b16 %v4317
      %v4767 = vunpack.c.l.b16 %v4318
      %v4768 = vpack.c.b16 %v4767, %v4766
      %v4770 = vsel %vm2321, %v4768, 0
      %v4773 = vsel %vm2325, %v4518, 0
      %v4776 = vsel %vm2325, %v4519, 0
      %4778 = vmatpush.bf16.msra.mxu0 0
      %4779 = vmatpush.bf16.msra.mxu0 0
      %4780 = vmatpush.bf16.msra.mxu0 0
      %4781 = vmatpush.bf16.msra.mxu0 0
      %4782 = vmatpush.bf16.msra.mxu0 0
      %4783 = vmatpush.bf16.msra.mxu0 0
      %4784 = vmatpush.bf16.msra.mxu0 0
      %4785 = vmatpush.bf16.msra.mxu0 %v4773
      %4786 = vmatmul.bf16.gmra.mxu0 %v4770
      %v4787 = vpop.f32.mrf.mxu0
      %v4788 = vadd.f32 %v4746, %v4787
      %v4789 = vpop.f32.mrf.mxu0
      %v4790 = vadd.f32 %v4748, %v4789
      %4791 = vdwg.mxu0
      %4792 = vmatpush.bf16.msra.mxu0 0
      %4793 = vmatpush.bf16.msra.mxu0 0
      %4794 = vmatpush.bf16.msra.mxu0 0
      %4795 = vmatpush.bf16.msra.mxu0 0
      %4796 = vmatpush.bf16.msra.mxu0 0
      %4797 = vmatpush.bf16.msra.mxu0 0
      %4798 = vmatpush.bf16.msra.mxu0 0
      %4799 = vmatpush.bf16.msra.mxu0 %v4776
      %4800 = vmatmul.bf16.gmra.mxu0 %v4770
      %v4801 = vpop.f32.mrf.mxu0
      %v4802 = vadd.f32 %v4760, %v4801
      %v4803 = vpop.f32.mrf.mxu0
      %v4804 = vadd.f32 %v4762, %v4803
      %4805 = vdwg.mxu0
      %s4806 = scalar_lea.vmem %s13, 16
      %v4807 = vld [vmem:[%s4806] sm:$0xf]
      %v4808 = vld [vmem:[%s4806 + $0x4] sm:$0xf]
      %s4809 = scalar_lea.vmem %s14, 384
      %v4810 = vld [vmem:[%s4809] sm:$0xff]
      %v4811 = vld [vmem:[%s4809 + $0x8] sm:$0xff]
      %v4812 = vld [vmem:[%s4809 + $0x10] sm:$0xff]
      %v4813 = vld [vmem:[%s4809 + $0x18] sm:$0xff]
      %v4814 = vld [vmem:[%s4809 + $0x20] sm:$0xff]
      %v4815 = vld [vmem:[%s4809 + $0x28] sm:$0xff]
      %v4816 = vld [vmem:[%s4809 + $0x30] sm:$0xff]
      %v4817 = vld [vmem:[%s4809 + $0x38] sm:$0xff]
      %v4818 = vld [vmem:[%s4809 + $0x40] sm:$0xff]
      %v4819 = vld [vmem:[%s4809 + $0x48] sm:$0xff]
      %v4820 = vld [vmem:[%s4809 + $0x50] sm:$0xff]
      %v4821 = vld [vmem:[%s4809 + $0x58] sm:$0xff]
      %v4822 = vld [vmem:[%s4809 + $0x60] sm:$0xff]
      %v4823 = vld [vmem:[%s4809 + $0x68] sm:$0xff]
      %v4824 = vld [vmem:[%s4809 + $0x70] sm:$0xff]
      %v4825 = vld [vmem:[%s4809 + $0x78] sm:$0xff]
      %v4826 = vld [vmem:[%s4809 + $0x80] sm:$0xff]
      %v4827 = vld [vmem:[%s4809 + $0x88] sm:$0xff]
      %v4828 = vld [vmem:[%s4809 + $0x90] sm:$0xff]
      %v4829 = vld [vmem:[%s4809 + $0x98] sm:$0xff]
      %v4830 = vld [vmem:[%s4809 + $0xa0] sm:$0xff]
      %v4831 = vld [vmem:[%s4809 + $0xa8] sm:$0xff]
      %v4832 = vld [vmem:[%s4809 + $0xb0] sm:$0xff]
      %v4833 = vld [vmem:[%s4809 + $0xb8] sm:$0xff]
      %v4858 = vunpack.c.l.b16 %v4810
      %v4859 = vunpack.c.h.b16 %v4810
      %v4860 = vunpack.c.l.b16 %v4811
      %v4861 = vunpack.c.h.b16 %v4811
      %v4862 = vunpack.c.l.b16 %v4812
      %v4863 = vunpack.c.h.b16 %v4812
      %v4864 = vunpack.c.l.b16 %v4813
      %v4865 = vunpack.c.h.b16 %v4813
      %v4866 = vunpack.c.l.b16 %v4814
      %v4867 = vunpack.c.h.b16 %v4814
      %v4868 = vunpack.c.l.b16 %v4815
      %v4869 = vunpack.c.h.b16 %v4815
      %v4870 = vunpack.c.l.b16 %v4816
      %v4871 = vunpack.c.h.b16 %v4816
      %v4872 = vunpack.c.l.b16 %v4817
      %v4873 = vunpack.c.h.b16 %v4817
      %v4874 = vunpack.c.l.b16 %v4818
      %v4875 = vunpack.c.h.b16 %v4818
      %v4876 = vunpack.c.l.b16 %v4819
      %v4877 = vunpack.c.h.b16 %v4819
      %v4878 = vunpack.c.l.b16 %v4820
      %v4879 = vunpack.c.h.b16 %v4820
      %v4880 = vunpack.c.l.b16 %v4821
      %v4881 = vunpack.c.h.b16 %v4821
      %v4882 = vunpack.c.l.b16 %v4822
      %v4883 = vunpack.c.h.b16 %v4822
      %v4884 = vunpack.c.l.b16 %v4823
      %v4885 = vunpack.c.h.b16 %v4823
      %v4886 = vunpack.c.l.b16 %v4824
      %v4887 = vunpack.c.h.b16 %v4824
      %v4888 = vunpack.c.l.b16 %v4825
      %v4889 = vunpack.c.h.b16 %v4825
      %v4890 = vunpack.c.l.b16 %v4826
      %v4891 = vunpack.c.h.b16 %v4826
      %v4892 = vunpack.c.l.b16 %v4827
      %v4893 = vunpack.c.h.b16 %v4827
      %v4894 = vunpack.c.l.b16 %v4828
      %v4895 = vunpack.c.h.b16 %v4828
      %v4896 = vunpack.c.l.b16 %v4829
      %v4897 = vunpack.c.h.b16 %v4829
      %v4898 = vunpack.c.l.b16 %v4830
      %v4899 = vunpack.c.h.b16 %v4830
      %v4900 = vunpack.c.l.b16 %v4831
      %v4901 = vunpack.c.h.b16 %v4831
      %v4902 = vunpack.c.l.b16 %v4832
      %v4903 = vunpack.c.h.b16 %v4832
      %v4904 = vunpack.c.l.b16 %v4833
      %v4905 = vunpack.c.h.b16 %v4833
      %v4906 = vpack.c.b16 %v4860, %v4858
      %v4907 = vpack.c.b16 %v4861, %v4859
      %v4908 = vpack.c.b16 %v4864, %v4862
      %v4909 = vpack.c.b16 %v4865, %v4863
      %v4910 = vpack.c.b16 %v4868, %v4866
      %v4911 = vpack.c.b16 %v4869, %v4867
      %v4912 = vpack.c.b16 %v4872, %v4870
      %v4913 = vpack.c.b16 %v4873, %v4871
      %v4914 = vpack.c.b16 %v4876, %v4874
      %v4915 = vpack.c.b16 %v4877, %v4875
      %v4916 = vpack.c.b16 %v4880, %v4878
      %v4917 = vpack.c.b16 %v4881, %v4879
      %v4918 = vpack.c.b16 %v4884, %v4882
      %v4919 = vpack.c.b16 %v4885, %v4883
      %v4920 = vpack.c.b16 %v4888, %v4886
      %v4921 = vpack.c.b16 %v4889, %v4887
      %v4922 = vpack.c.b16 %v4892, %v4890
      %v4923 = vpack.c.b16 %v4893, %v4891
      %v4924 = vpack.c.b16 %v4896, %v4894
      %v4925 = vpack.c.b16 %v4897, %v4895
      %v4926 = vpack.c.b16 %v4900, %v4898
      %v4927 = vpack.c.b16 %v4901, %v4899
      %v4928 = vpack.c.b16 %v4904, %v4902
      %v4929 = vpack.c.b16 %v4905, %v4903
      %4954 = vmatpush.bf16.msra.mxu0 %v4920
      %4955 = vmatpush.bf16.msra.mxu0 %v4918
      %4956 = vmatpush.bf16.msra.mxu0 %v4916
      %4957 = vmatpush.bf16.msra.mxu0 %v4914
      %4958 = vmatpush.bf16.msra.mxu0 %v4912
      %4959 = vmatpush.bf16.msra.mxu0 %v4910
      %4960 = vmatpush.bf16.msra.mxu0 %v4908
      %4961 = vmatpush.bf16.msra.mxu0 %v4906
      %4962 = vmatmul.bf16.gmra.mxu0 %v4315
      %v4963 = vpop.f32.mrf.mxu0
      %v4964 = vadd.f32 0.0, %v4963
      %v4965 = vpop.f32.mrf.mxu0
      %4966 = vdwg.mxu0
      %4967 = vmatpush.bf16.msra.mxu0 0
      %4968 = vmatpush.bf16.msra.mxu0 0
      %4969 = vmatpush.bf16.msra.mxu0 0
      %4970 = vmatpush.bf16.msra.mxu0 0
      %4971 = vmatpush.bf16.msra.mxu0 %v4928
      %4972 = vmatpush.bf16.msra.mxu0 %v4926
      %4973 = vmatpush.bf16.msra.mxu0 %v4924
      %4974 = vmatpush.bf16.msra.mxu0 %v4922
      %4975 = vmatmul.bf16.gmra.mxu0 %v4464
      %v4976 = vpop.f32.mrf.mxu0
      %v4977 = vadd.f32 %v4964, %v4976
      %v4978 = vpop.f32.mrf.mxu0
      %4979 = vdwg.mxu0
      %4980 = vmatpush.bf16.msra.mxu0 %v4921
      %4981 = vmatpush.bf16.msra.mxu0 %v4919
      %4982 = vmatpush.bf16.msra.mxu0 %v4917
      %4983 = vmatpush.bf16.msra.mxu0 %v4915
      %4984 = vmatpush.bf16.msra.mxu0 %v4913
      %4985 = vmatpush.bf16.msra.mxu0 %v4911
      %4986 = vmatpush.bf16.msra.mxu0 %v4909
      %4987 = vmatpush.bf16.msra.mxu0 %v4907
      %4988 = vmatmul.bf16.gmra.mxu0 %v4315
      %v4989 = vpop.f32.mrf.mxu0
      %v4990 = vadd.f32 0.0, %v4989
      %v4991 = vpop.f32.mrf.mxu0
      %4992 = vdwg.mxu0
      %4993 = vmatpush.bf16.msra.mxu0 0
      %4994 = vmatpush.bf16.msra.mxu0 0
      %4995 = vmatpush.bf16.msra.mxu0 0
      %4996 = vmatpush.bf16.msra.mxu0 0
      %4997 = vmatpush.bf16.msra.mxu0 %v4929
      %4998 = vmatpush.bf16.msra.mxu0 %v4927
      %4999 = vmatpush.bf16.msra.mxu0 %v4925
      %5000 = vmatpush.bf16.msra.mxu0 %v4923
      %5001 = vmatmul.bf16.gmra.mxu0 %v4464
      %v5002 = vpop.f32.mrf.mxu0
      %v5003 = vadd.f32 %v4990, %v5002
      %v5004 = vpop.f32.mrf.mxu0
      %5005 = vdwg.mxu0
      %v5006 = vpack.c.bf16 %v4977, %v4977
      %v5007 = vpack.c.bf16 %v5003, %v5003
      %v5010 = vunpack.c.l.b16 %v4807
      %v5011 = vunpack.c.l.b16 %v4808
      %v5012 = vpack.c.b16 %v5011, %v5010
      %v5014 = vsel %vm2321, %v5012, 0
      %v5017 = vsel %vm2325, %v5006, 0
      %v5020 = vsel %vm2325, %v5007, 0
      %5022 = vmatpush.bf16.msra.mxu0 0
      %5023 = vmatpush.bf16.msra.mxu0 0
      %5024 = vmatpush.bf16.msra.mxu0 0
      %5025 = vmatpush.bf16.msra.mxu0 0
      %5026 = vmatpush.bf16.msra.mxu0 0
      %5027 = vmatpush.bf16.msra.mxu0 0
      %5028 = vmatpush.bf16.msra.mxu0 0
      %5029 = vmatpush.bf16.msra.mxu0 %v5017
      %5030 = vmatmul.bf16.gmra.mxu0 %v5014
      %v5031 = vpop.f32.mrf.mxu0
      %v5032 = vadd.f32 0.0, %v5031
      %v5033 = vpop.f32.mrf.mxu0
      %v5034 = vadd.f32 0.0, %v5033
      %5035 = vdwg.mxu0
      %5036 = vmatpush.bf16.msra.mxu0 0
      %5037 = vmatpush.bf16.msra.mxu0 0
      %5038 = vmatpush.bf16.msra.mxu0 0
      %5039 = vmatpush.bf16.msra.mxu0 0
      %5040 = vmatpush.bf16.msra.mxu0 0
      %5041 = vmatpush.bf16.msra.mxu0 0
      %5042 = vmatpush.bf16.msra.mxu0 0
      %5043 = vmatpush.bf16.msra.mxu0 %v5020
      %5044 = vmatmul.bf16.gmra.mxu0 %v5014
      %v5045 = vpop.f32.mrf.mxu0
      %v5046 = vadd.f32 0.0, %v5045
      %v5047 = vpop.f32.mrf.mxu0
      %v5048 = vadd.f32 0.0, %v5047
      %5049 = vdwg.mxu0
      %v5050 = vadd.f32 %v4788, %v5032
      %v5051 = vadd.f32 %v4802, %v5046
      %v5052 = vadd.f32 %v4790, %v5034
      %v5053 = vadd.f32 %v4804, %v5048
      %s5054 = scalar_lea.vmem %s13, 24
      %v5055 = vld [vmem:[%s5054] sm:$0xf]
      %v5056 = vld [vmem:[%s5054 + $0x4] sm:$0xf]
      %s5057 = scalar_lea.vmem %s14, 576
      %v5058 = vld [vmem:[%s5057] sm:$0xff]
      %v5059 = vld [vmem:[%s5057 + $0x8] sm:$0xff]
      %v5060 = vld [vmem:[%s5057 + $0x10] sm:$0xff]
      %v5061 = vld [vmem:[%s5057 + $0x18] sm:$0xff]
      %v5062 = vld [vmem:[%s5057 + $0x20] sm:$0xff]
      %v5063 = vld [vmem:[%s5057 + $0x28] sm:$0xff]
      %v5064 = vld [vmem:[%s5057 + $0x30] sm:$0xff]
      %v5065 = vld [vmem:[%s5057 + $0x38] sm:$0xff]
      %v5066 = vld [vmem:[%s5057 + $0x40] sm:$0xff]
      %v5067 = vld [vmem:[%s5057 + $0x48] sm:$0xff]
      %v5068 = vld [vmem:[%s5057 + $0x50] sm:$0xff]
      %v5069 = vld [vmem:[%s5057 + $0x58] sm:$0xff]
      %v5070 = vld [vmem:[%s5057 + $0x60] sm:$0xff]
      %v5071 = vld [vmem:[%s5057 + $0x68] sm:$0xff]
      %v5072 = vld [vmem:[%s5057 + $0x70] sm:$0xff]
      %v5073 = vld [vmem:[%s5057 + $0x78] sm:$0xff]
      %v5074 = vld [vmem:[%s5057 + $0x80] sm:$0xff]
      %v5075 = vld [vmem:[%s5057 + $0x88] sm:$0xff]
      %v5076 = vld [vmem:[%s5057 + $0x90] sm:$0xff]
      %v5077 = vld [vmem:[%s5057 + $0x98] sm:$0xff]
      %v5078 = vld [vmem:[%s5057 + $0xa0] sm:$0xff]
      %v5079 = vld [vmem:[%s5057 + $0xa8] sm:$0xff]
      %v5080 = vld [vmem:[%s5057 + $0xb0] sm:$0xff]
      %v5081 = vld [vmem:[%s5057 + $0xb8] sm:$0xff]
      %v5106 = vunpack.c.l.b16 %v5058
      %v5107 = vunpack.c.h.b16 %v5058
      %v5108 = vunpack.c.l.b16 %v5059
      %v5109 = vunpack.c.h.b16 %v5059
      %v5110 = vunpack.c.l.b16 %v5060
      %v5111 = vunpack.c.h.b16 %v5060
      %v5112 = vunpack.c.l.b16 %v5061
      %v5113 = vunpack.c.h.b16 %v5061
      %v5114 = vunpack.c.l.b16 %v5062
      %v5115 = vunpack.c.h.b16 %v5062
      %v5116 = vunpack.c.l.b16 %v5063
      %v5117 = vunpack.c.h.b16 %v5063
      %v5118 = vunpack.c.l.b16 %v5064
      %v5119 = vunpack.c.h.b16 %v5064
      %v5120 = vunpack.c.l.b16 %v5065
      %v5121 = vunpack.c.h.b16 %v5065
      %v5122 = vunpack.c.l.b16 %v5066
      %v5123 = vunpack.c.h.b16 %v5066
      %v5124 = vunpack.c.l.b16 %v5067
      %v5125 = vunpack.c.h.b16 %v5067
      %v5126 = vunpack.c.l.b16 %v5068
      %v5127 = vunpack.c.h.b16 %v5068
      %v5128 = vunpack.c.l.b16 %v5069
      %v5129 = vunpack.c.h.b16 %v5069
      %v5130 = vunpack.c.l.b16 %v5070
      %v5131 = vunpack.c.h.b16 %v5070
      %v5132 = vunpack.c.l.b16 %v5071
      %v5133 = vunpack.c.h.b16 %v5071
      %v5134 = vunpack.c.l.b16 %v5072
      %v5135 = vunpack.c.h.b16 %v5072
      %v5136 = vunpack.c.l.b16 %v5073
      %v5137 = vunpack.c.h.b16 %v5073
      %v5138 = vunpack.c.l.b16 %v5074
      %v5139 = vunpack.c.h.b16 %v5074
      %v5140 = vunpack.c.l.b16 %v5075
      %v5141 = vunpack.c.h.b16 %v5075
      %v5142 = vunpack.c.l.b16 %v5076
      %v5143 = vunpack.c.h.b16 %v5076
      %v5144 = vunpack.c.l.b16 %v5077
      %v5145 = vunpack.c.h.b16 %v5077
      %v5146 = vunpack.c.l.b16 %v5078
      %v5147 = vunpack.c.h.b16 %v5078
      %v5148 = vunpack.c.l.b16 %v5079
      %v5149 = vunpack.c.h.b16 %v5079
      %v5150 = vunpack.c.l.b16 %v5080
      %v5151 = vunpack.c.h.b16 %v5080
      %v5152 = vunpack.c.l.b16 %v5081
      %v5153 = vunpack.c.h.b16 %v5081
      %v5154 = vpack.c.b16 %v5108, %v5106
      %v5155 = vpack.c.b16 %v5109, %v5107
      %v5156 = vpack.c.b16 %v5112, %v5110
      %v5157 = vpack.c.b16 %v5113, %v5111
      %v5158 = vpack.c.b16 %v5116, %v5114
      %v5159 = vpack.c.b16 %v5117, %v5115
      %v5160 = vpack.c.b16 %v5120, %v5118
      %v5161 = vpack.c.b16 %v5121, %v5119
      %v5162 = vpack.c.b16 %v5124, %v5122
      %v5163 = vpack.c.b16 %v5125, %v5123
      %v5164 = vpack.c.b16 %v5128, %v5126
      %v5165 = vpack.c.b16 %v5129, %v5127
      %v5166 = vpack.c.b16 %v5132, %v5130
      %v5167 = vpack.c.b16 %v5133, %v5131
      %v5168 = vpack.c.b16 %v5136, %v5134
      %v5169 = vpack.c.b16 %v5137, %v5135
      %v5170 = vpack.c.b16 %v5140, %v5138
      %v5171 = vpack.c.b16 %v5141, %v5139
      %v5172 = vpack.c.b16 %v5144, %v5142
      %v5173 = vpack.c.b16 %v5145, %v5143
      %v5174 = vpack.c.b16 %v5148, %v5146
      %v5175 = vpack.c.b16 %v5149, %v5147
      %v5176 = vpack.c.b16 %v5152, %v5150
      %v5177 = vpack.c.b16 %v5153, %v5151
      %5202 = vmatpush.bf16.msra.mxu0 %v5168
      %5203 = vmatpush.bf16.msra.mxu0 %v5166
      %5204 = vmatpush.bf16.msra.mxu0 %v5164
      %5205 = vmatpush.bf16.msra.mxu0 %v5162
      %5206 = vmatpush.bf16.msra.mxu0 %v5160
      %5207 = vmatpush.bf16.msra.mxu0 %v5158
      %5208 = vmatpush.bf16.msra.mxu0 %v5156
      %5209 = vmatpush.bf16.msra.mxu0 %v5154
      %5210 = vmatmul.bf16.gmra.mxu0 %v4315
      %v5211 = vpop.f32.mrf.mxu0
      %v5212 = vadd.f32 0.0, %v5211
      %v5213 = vpop.f32.mrf.mxu0
      %5214 = vdwg.mxu0
      %5215 = vmatpush.bf16.msra.mxu0 0
      %5216 = vmatpush.bf16.msra.mxu0 0
      %5217 = vmatpush.bf16.msra.mxu0 0
      %5218 = vmatpush.bf16.msra.mxu0 0
      %5219 = vmatpush.bf16.msra.mxu0 %v5176
      %5220 = vmatpush.bf16.msra.mxu0 %v5174
      %5221 = vmatpush.bf16.msra.mxu0 %v5172
      %5222 = vmatpush.bf16.msra.mxu0 %v5170
      %5223 = vmatmul.bf16.gmra.mxu0 %v4464
      %v5224 = vpop.f32.mrf.mxu0
      %v5225 = vadd.f32 %v5212, %v5224
      %v5226 = vpop.f32.mrf.mxu0
      %5227 = vdwg.mxu0
      %5228 = vmatpush.bf16.msra.mxu0 %v5169
      %5229 = vmatpush.bf16.msra.mxu0 %v5167
      %5230 = vmatpush.bf16.msra.mxu0 %v5165
      %5231 = vmatpush.bf16.msra.mxu0 %v5163
      %5232 = vmatpush.bf16.msra.mxu0 %v5161
      %5233 = vmatpush.bf16.msra.mxu0 %v5159
      %5234 = vmatpush.bf16.msra.mxu0 %v5157
      %5235 = vmatpush.bf16.msra.mxu0 %v5155
      %5236 = vmatmul.bf16.gmra.mxu0 %v4315
      %v5237 = vpop.f32.mrf.mxu0
      %v5238 = vadd.f32 0.0, %v5237
      %v5239 = vpop.f32.mrf.mxu0
      %5240 = vdwg.mxu0
      %5241 = vmatpush.bf16.msra.mxu0 0
      %5242 = vmatpush.bf16.msra.mxu0 0
      %5243 = vmatpush.bf16.msra.mxu0 0
      %5244 = vmatpush.bf16.msra.mxu0 0
      %5245 = vmatpush.bf16.msra.mxu0 %v5177
      %5246 = vmatpush.bf16.msra.mxu0 %v5175
      %5247 = vmatpush.bf16.msra.mxu0 %v5173
      %5248 = vmatpush.bf16.msra.mxu0 %v5171
      %5249 = vmatmul.bf16.gmra.mxu0 %v4464
      %v5250 = vpop.f32.mrf.mxu0
      %v5251 = vadd.f32 %v5238, %v5250
      %v5252 = vpop.f32.mrf.mxu0
      %5253 = vdwg.mxu0
      %v5254 = vpack.c.bf16 %v5225, %v5225
      %v5255 = vpack.c.bf16 %v5251, %v5251
      %v5258 = vunpack.c.l.b16 %v5055
      %v5259 = vunpack.c.l.b16 %v5056
      %v5260 = vpack.c.b16 %v5259, %v5258
      %v5262 = vsel %vm2321, %v5260, 0
      %v5265 = vsel %vm2325, %v5254, 0
      %v5268 = vsel %vm2325, %v5255, 0
      %5270 = vmatpush.bf16.msra.mxu0 0
      %5271 = vmatpush.bf16.msra.mxu0 0
      %5272 = vmatpush.bf16.msra.mxu0 0
      %5273 = vmatpush.bf16.msra.mxu0 0
      %5274 = vmatpush.bf16.msra.mxu0 0
      %5275 = vmatpush.bf16.msra.mxu0 0
      %5276 = vmatpush.bf16.msra.mxu0 0
      %5277 = vmatpush.bf16.msra.mxu0 %v5265
      %5278 = vmatmul.bf16.gmra.mxu0 %v5262
      %v5279 = vpop.f32.mrf.mxu0
      %v5280 = vadd.f32 0.0, %v5279
      %v5281 = vpop.f32.mrf.mxu0
      %v5282 = vadd.f32 0.0, %v5281
      %5283 = vdwg.mxu0
      %5284 = vmatpush.bf16.msra.mxu0 0
      %5285 = vmatpush.bf16.msra.mxu0 0
      %5286 = vmatpush.bf16.msra.mxu0 0
      %5287 = vmatpush.bf16.msra.mxu0 0
      %5288 = vmatpush.bf16.msra.mxu0 0
      %5289 = vmatpush.bf16.msra.mxu0 0
      %5290 = vmatpush.bf16.msra.mxu0 0
      %5291 = vmatpush.bf16.msra.mxu0 %v5268
      %5292 = vmatmul.bf16.gmra.mxu0 %v5262
      %v5293 = vpop.f32.mrf.mxu0
      %v5294 = vadd.f32 0.0, %v5293
      %v5295 = vpop.f32.mrf.mxu0
      %v5296 = vadd.f32 0.0, %v5295
      %5297 = vdwg.mxu0
      %v5298 = vadd.f32 %v5050, %v5280
      %v5299 = vadd.f32 %v5051, %v5294
      %v5300 = vadd.f32 %v5052, %v5282
      %v5301 = vadd.f32 %v5053, %v5296
      %v5302 = vld [vmem:[%s15] sm:$0x3]
      %v5304 = vperm.slane %v5302, 0
      %v5305 = vperm.slane %v5302, 1
      %v5308 = vadd.f32 %v5298, %v5304
      %v5309 = vadd.f32 %v5299, %v5305
      %v5310 = vadd.f32 %v5300, %v5304
      %v5311 = vadd.f32 %v5301, %v5305
      %v5312 = vmin.f32 %v5308, 20.0
      %v5313 = vmin.f32 %v5309, 20.0
      %v5314 = vmin.f32 %v5310, 20.0
      %v5315 = vmin.f32 %v5311, 20.0
      %v5316 = vmul.f32 %v5312, 1.442695
      %v5317 = vpow.pop %v5316
      %v5318 = vmul.f32 %v5313, 1.442695
      %v5319 = vpow.pop %v5318
      %v5320 = vmul.f32 %v5314, 1.442695
      %v5321 = vpow.pop %v5320
      %v5322 = vmul.f32 %v5315, 1.442695
      %v5323 = vpow.pop %v5322
      %v5324 = vadd.f32 %v5317, 1.0
      %v5325 = vadd.f32 %v5319, 1.0
      %v5326 = vadd.f32 %v5321, 1.0
      %v5327 = vadd.f32 %v5323, 1.0
      %v5328 = vmul.f32 %v5324, %v5324
      %v5329 = vmul.f32 %v5325, %v5325
      %v5330 = vmul.f32 %v5326, %v5326
      %v5331 = vmul.f32 %v5327, %v5327
      %v5332 = vsub.f32 %v5328, 1.0
      %v5333 = vsub.f32 %v5329, 1.0
      %v5334 = vsub.f32 %v5330, 1.0
      %v5335 = vsub.f32 %v5331, 1.0
      %v5336 = vadd.f32 %v5328, 1.0
      %v5337 = vadd.f32 %v5329, 1.0
      %v5338 = vadd.f32 %v5330, 1.0
      %v5339 = vadd.f32 %v5331, 1.0
      %v5340 = vrcp.pop %v5336
      %v5341 = vmul.f32 %v5336, %v5340
      %v5342 = vsub.f32 1.0, %v5341
      %v5343 = vmul.f32 %v5340, %v5342
      %v5344 = vadd.f32 %v5340, %v5343
      %vm5345 = vweird.f32 %v5336
      %vm5346 = vweird.f32 %v5340
      %vm5347 = vmor %vm5345, %vm5346
      %v5348 = vsel %vm5347, %v5340, %v5344
      %v5349 = vand.u32 2147483647, %v5336
      %vm5350 = vcmp.eq.f32.partialorder %v5349, 8.507059e+37
      %v5351 = vand.u32 %v5336, 2147483648
      %v5352 = vor.u32 1.1754944e-38, %v5351
      %v5353 = vsel %vm5350, %v5352, %v5348
      %v5354 = vmul.f32 %v5332, %v5353
      %v5355 = vrcp.pop %v5337
      %v5356 = vmul.f32 %v5337, %v5355
      %v5357 = vsub.f32 1.0, %v5356
      %v5358 = vmul.f32 %v5355, %v5357
      %v5359 = vadd.f32 %v5355, %v5358
      %vm5360 = vweird.f32 %v5337
      %vm5361 = vweird.f32 %v5355
      %vm5362 = vmor %vm5360, %vm5361
      %v5363 = vsel %vm5362, %v5355, %v5359
      %v5364 = vand.u32 2147483647, %v5337
      %vm5365 = vcmp.eq.f32.partialorder %v5364, 8.507059e+37
      %v5366 = vand.u32 %v5337, 2147483648
      %v5367 = vor.u32 1.1754944e-38, %v5366
      %v5368 = vsel %vm5365, %v5367, %v5363
      %v5369 = vmul.f32 %v5333, %v5368
      %v5370 = vrcp.pop %v5338
      %v5371 = vmul.f32 %v5338, %v5370
      %v5372 = vsub.f32 1.0, %v5371
      %v5373 = vmul.f32 %v5370, %v5372
      %v5374 = vadd.f32 %v5370, %v5373
      %vm5375 = vweird.f32 %v5338
      %vm5376 = vweird.f32 %v5370
      %vm5377 = vmor %vm5375, %vm5376
      %v5378 = vsel %vm5377, %v5370, %v5374
      %v5379 = vand.u32 2147483647, %v5338
      %vm5380 = vcmp.eq.f32.partialorder %v5379, 8.507059e+37
      %v5381 = vand.u32 %v5338, 2147483648
      %v5382 = vor.u32 1.1754944e-38, %v5381
      %v5383 = vsel %vm5380, %v5382, %v5378
      %v5384 = vmul.f32 %v5334, %v5383
      %v5385 = vrcp.pop %v5339
      %v5386 = vmul.f32 %v5339, %v5385
      %v5387 = vsub.f32 1.0, %v5386
      %v5388 = vmul.f32 %v5385, %v5387
      %v5389 = vadd.f32 %v5385, %v5388
      %vm5390 = vweird.f32 %v5339
      %vm5391 = vweird.f32 %v5385
      %vm5392 = vmor %vm5390, %vm5391
      %v5393 = vsel %vm5392, %v5385, %v5389
      %v5394 = vand.u32 2147483647, %v5339
      %vm5395 = vcmp.eq.f32.partialorder %v5394, 8.507059e+37
      %v5396 = vand.u32 %v5339, 2147483648
      %v5397 = vor.u32 1.1754944e-38, %v5396
      %v5398 = vsel %vm5395, %v5397, %v5393
      %v5399 = vmul.f32 %v5335, %v5398
      %vm5400 = vcmp.gt.f32.partialorder %v5308, 20.0
      %vm5401 = vcmp.gt.f32.partialorder %v5309, 20.0
      %vm5402 = vcmp.gt.f32.partialorder %v5310, 20.0
      %vm5403 = vcmp.gt.f32.partialorder %v5311, 20.0
      %v5404 = vsel %vm5400, 1.0, %v5354
      %v5405 = vsel %vm5401, 1.0, %v5369
      %v5406 = vsel %vm5402, 1.0, %v5384
      %v5407 = vsel %vm5403, 1.0, %v5399
      %v5408 = vmul.f32 %v5308, %v5404
      %v5409 = vmul.f32 %v5309, %v5405
      %v5410 = vmul.f32 %v5310, %v5406
      %v5411 = vmul.f32 %v5311, %v5407
      %v5412 = vpack.c.bf16 %v5410, %v5408
      %v5413 = vpack.c.bf16 %v5411, %v5409
      %v5414 = vld [vmem:[%s16] sm:$0xf]
      %v5415 = vld [vmem:[%s16 + $0x4] sm:$0xf]
      %v5416 = vld [vmem:[%s16 + $0x8] sm:$0xf]
      %v5417 = vld [vmem:[%s16 + $0xc] sm:$0xf]
      %v5418 = vld [vmem:[%s17] sm:$0xf]
      %v5419 = vld [vmem:[%s17 + $0x4] sm:$0xf]
      %v5420 = vld [vmem:[%s17 + $0x8] sm:$0xf]
      %v5421 = vld [vmem:[%s17 + $0xc] sm:$0xf]
      %v5422 = vld [vmem:[%s17 + $0x10] sm:$0xf]
      %v5423 = vld [vmem:[%s17 + $0x14] sm:$0xf]
      %v5424 = vld [vmem:[%s17 + $0x18] sm:$0xf]
      %v5425 = vld [vmem:[%s17 + $0x1c] sm:$0xf]
      %v5426 = vld [vmem:[%s17 + $0x20] sm:$0xf]
      %v5427 = vld [vmem:[%s17 + $0x24] sm:$0xf]
      %v5428 = vld [vmem:[%s17 + $0x28] sm:$0xf]
      %v5429 = vld [vmem:[%s17 + $0x2c] sm:$0xf]
      %v5430 = vld [vmem:[%s17 + $0x30] sm:$0xf]
      %v5431 = vld [vmem:[%s17 + $0x34] sm:$0xf]
      %v5432 = vld [vmem:[%s17 + $0x38] sm:$0xf]
      %v5433 = vld [vmem:[%s17 + $0x3c] sm:$0xf]
      %v5434 = vld [vmem:[%s17 + $0x40] sm:$0xf]
      %v5435 = vld [vmem:[%s17 + $0x44] sm:$0xf]
      %v5436 = vld [vmem:[%s17 + $0x48] sm:$0xf]
      %v5437 = vld [vmem:[%s17 + $0x4c] sm:$0xf]
      %v5438 = vld [vmem:[%s17 + $0x50] sm:$0xf]
      %v5439 = vld [vmem:[%s17 + $0x54] sm:$0xf]
      %v5440 = vld [vmem:[%s17 + $0x58] sm:$0xf]
      %v5441 = vld [vmem:[%s17 + $0x5c] sm:$0xf]
      %v5466 = vunpack.c.l.b16 %v5418
      %v5467 = vunpack.c.l.b16 %v5419
      %v5468 = vunpack.c.l.b16 %v5420
      %v5469 = vunpack.c.l.b16 %v5421
      %v5470 = vunpack.c.l.b16 %v5422
      %v5471 = vunpack.c.l.b16 %v5423
      %v5472 = vunpack.c.l.b16 %v5424
      %v5473 = vunpack.c.l.b16 %v5425
      %v5474 = vunpack.c.l.b16 %v5426
      %v5475 = vunpack.c.l.b16 %v5427
      %v5476 = vunpack.c.l.b16 %v5428
      %v5477 = vunpack.c.l.b16 %v5429
      %v5478 = vunpack.c.l.b16 %v5430
      %v5479 = vunpack.c.l.b16 %v5431
      %v5480 = vunpack.c.l.b16 %v5432
      %v5481 = vunpack.c.l.b16 %v5433
      %v5482 = vunpack.c.l.b16 %v5434
      %v5483 = vunpack.c.l.b16 %v5435
      %v5484 = vunpack.c.l.b16 %v5436
      %v5485 = vunpack.c.l.b16 %v5437
      %v5486 = vunpack.c.l.b16 %v5438
      %v5487 = vunpack.c.l.b16 %v5439
      %v5488 = vunpack.c.l.b16 %v5440
      %v5489 = vunpack.c.l.b16 %v5441
      %v5490 = vpack.c.b16 %v5467, %v5466
      %v5491 = vpack.c.b16 %v5469, %v5468
      %v5492 = vpack.c.b16 %v5471, %v5470
      %v5493 = vpack.c.b16 %v5473, %v5472
      %v5494 = vpack.c.b16 %v5475, %v5474
      %v5495 = vpack.c.b16 %v5477, %v5476
      %v5496 = vpack.c.b16 %v5479, %v5478
      %v5497 = vpack.c.b16 %v5481, %v5480
      %v5498 = vpack.c.b16 %v5483, %v5482
      %v5499 = vpack.c.b16 %v5485, %v5484
      %v5500 = vpack.c.b16 %v5487, %v5486
      %v5501 = vpack.c.b16 %v5489, %v5488
      %v5515 = vsel %vm1535, %v5413, 0
      %5517 = vmatpush.bf16.msra.mxu0 %v5497
      %5518 = vmatpush.bf16.msra.mxu0 %v5496
      %5519 = vmatpush.bf16.msra.mxu0 %v5495
      %5520 = vmatpush.bf16.msra.mxu0 %v5494
      %5521 = vmatpush.bf16.msra.mxu0 %v5493
      %5522 = vmatpush.bf16.msra.mxu0 %v5492
      %5523 = vmatpush.bf16.msra.mxu0 %v5491
      %5524 = vmatpush.bf16.msra.mxu0 %v5490
      %5525 = vmatmul.bf16.gmra.mxu0 %v5412
      %v5526 = vpop.f32.mrf.mxu0
      %v5527 = vadd.f32 0.0, %v5526
      %v5528 = vpop.f32.mrf.mxu0
      %v5529 = vadd.f32 0.0, %v5528
      %5530 = vdwg.mxu0
      %5531 = vmatpush.bf16.msra.mxu0 0
      %5532 = vmatpush.bf16.msra.mxu0 0
      %5533 = vmatpush.bf16.msra.mxu0 0
      %5534 = vmatpush.bf16.msra.mxu0 0
      %5535 = vmatpush.bf16.msra.mxu0 %v5501
      %5536 = vmatpush.bf16.msra.mxu0 %v5500
      %5537 = vmatpush.bf16.msra.mxu0 %v5499
      %5538 = vmatpush.bf16.msra.mxu0 %v5498
      %5539 = vmatmul.bf16.gmra.mxu0 %v5515
      %v5540 = vpop.f32.mrf.mxu0
      %v5541 = vadd.f32 %v5527, %v5540
      %v5542 = vpop.f32.mrf.mxu0
      %v5543 = vadd.f32 %v5529, %v5542
      %5544 = vdwg.mxu0
      %v5545 = vpack.c.bf16 %v5543, %v5541
      %s5546 = scalar_lea.vmem %s16, 16
      %v5547 = vld [vmem:[%s5546] sm:$0xf]
      %v5548 = vld [vmem:[%s5546 + $0x4] sm:$0xf]
      %v5549 = vld [vmem:[%s5546 + $0x8] sm:$0xf]
      %v5550 = vld [vmem:[%s5546 + $0xc] sm:$0xf]
      %s5551 = scalar_lea.vmem %s17, 96
      %v5552 = vld [vmem:[%s5551] sm:$0xf]
      %v5553 = vld [vmem:[%s5551 + $0x4] sm:$0xf]
      %v5554 = vld [vmem:[%s5551 + $0x8] sm:$0xf]
      %v5555 = vld [vmem:[%s5551 + $0xc] sm:$0xf]
      %v5556 = vld [vmem:[%s5551 + $0x10] sm:$0xf]
      %v5557 = vld [vmem:[%s5551 + $0x14] sm:$0xf]
      %v5558 = vld [vmem:[%s5551 + $0x18] sm:$0xf]
      %v5559 = vld [vmem:[%s5551 + $0x1c] sm:$0xf]
      %v5560 = vld [vmem:[%s5551 + $0x20] sm:$0xf]
      %v5561 = vld [vmem:[%s5551 + $0x24] sm:$0xf]
      %v5562 = vld [vmem:[%s5551 + $0x28] sm:$0xf]
      %v5563 = vld [vmem:[%s5551 + $0x2c] sm:$0xf]
      %v5564 = vld [vmem:[%s5551 + $0x30] sm:$0xf]
      %v5565 = vld [vmem:[%s5551 + $0x34] sm:$0xf]
      %v5566 = vld [vmem:[%s5551 + $0x38] sm:$0xf]
      %v5567 = vld [vmem:[%s5551 + $0x3c] sm:$0xf]
      %v5568 = vld [vmem:[%s5551 + $0x40] sm:$0xf]
      %v5569 = vld [vmem:[%s5551 + $0x44] sm:$0xf]
      %v5570 = vld [vmem:[%s5551 + $0x48] sm:$0xf]
      %v5571 = vld [vmem:[%s5551 + $0x4c] sm:$0xf]
      %v5572 = vld [vmem:[%s5551 + $0x50] sm:$0xf]
      %v5573 = vld [vmem:[%s5551 + $0x54] sm:$0xf]
      %v5574 = vld [vmem:[%s5551 + $0x58] sm:$0xf]
      %v5575 = vld [vmem:[%s5551 + $0x5c] sm:$0xf]
      %v5600 = vunpack.c.l.b16 %v5552
      %v5601 = vunpack.c.l.b16 %v5553
      %v5602 = vunpack.c.l.b16 %v5554
      %v5603 = vunpack.c.l.b16 %v5555
      %v5604 = vunpack.c.l.b16 %v5556
      %v5605 = vunpack.c.l.b16 %v5557
      %v5606 = vunpack.c.l.b16 %v5558
      %v5607 = vunpack.c.l.b16 %v5559
      %v5608 = vunpack.c.l.b16 %v5560
      %v5609 = vunpack.c.l.b16 %v5561
      %v5610 = vunpack.c.l.b16 %v5562
      %v5611 = vunpack.c.l.b16 %v5563
      %v5612 = vunpack.c.l.b16 %v5564
      %v5613 = vunpack.c.l.b16 %v5565
      %v5614 = vunpack.c.l.b16 %v5566
      %v5615 = vunpack.c.l.b16 %v5567
      %v5616 = vunpack.c.l.b16 %v5568
      %v5617 = vunpack.c.l.b16 %v5569
      %v5618 = vunpack.c.l.b16 %v5570
      %v5619 = vunpack.c.l.b16 %v5571
      %v5620 = vunpack.c.l.b16 %v5572
      %v5621 = vunpack.c.l.b16 %v5573
      %v5622 = vunpack.c.l.b16 %v5574
      %v5623 = vunpack.c.l.b16 %v5575
      %v5624 = vpack.c.b16 %v5601, %v5600
      %v5625 = vpack.c.b16 %v5603, %v5602
      %v5626 = vpack.c.b16 %v5605, %v5604
      %v5627 = vpack.c.b16 %v5607, %v5606
      %v5628 = vpack.c.b16 %v5609, %v5608
      %v5629 = vpack.c.b16 %v5611, %v5610
      %v5630 = vpack.c.b16 %v5613, %v5612
      %v5631 = vpack.c.b16 %v5615, %v5614
      %v5632 = vpack.c.b16 %v5617, %v5616
      %v5633 = vpack.c.b16 %v5619, %v5618
      %v5634 = vpack.c.b16 %v5621, %v5620
      %v5635 = vpack.c.b16 %v5623, %v5622
      %5648 = vmatpush.bf16.msra.mxu0 %v5631
      %5649 = vmatpush.bf16.msra.mxu0 %v5630
      %5650 = vmatpush.bf16.msra.mxu0 %v5629
      %5651 = vmatpush.bf16.msra.mxu0 %v5628
      %5652 = vmatpush.bf16.msra.mxu0 %v5627
      %5653 = vmatpush.bf16.msra.mxu0 %v5626
      %5654 = vmatpush.bf16.msra.mxu0 %v5625
      %5655 = vmatpush.bf16.msra.mxu0 %v5624
      %5656 = vmatmul.bf16.gmra.mxu0 %v5412
      %v5657 = vpop.f32.mrf.mxu0
      %v5658 = vadd.f32 0.0, %v5657
      %v5659 = vpop.f32.mrf.mxu0
      %v5660 = vadd.f32 0.0, %v5659
      %5661 = vdwg.mxu0
      %5662 = vmatpush.bf16.msra.mxu0 0
      %5663 = vmatpush.bf16.msra.mxu0 0
      %5664 = vmatpush.bf16.msra.mxu0 0
      %5665 = vmatpush.bf16.msra.mxu0 0
      %5666 = vmatpush.bf16.msra.mxu0 %v5635
      %5667 = vmatpush.bf16.msra.mxu0 %v5634
      %5668 = vmatpush.bf16.msra.mxu0 %v5633
      %5669 = vmatpush.bf16.msra.mxu0 %v5632
      %5670 = vmatmul.bf16.gmra.mxu0 %v5515
      %v5671 = vpop.f32.mrf.mxu0
      %v5672 = vadd.f32 %v5658, %v5671
      %v5673 = vpop.f32.mrf.mxu0
      %v5674 = vadd.f32 %v5660, %v5673
      %5675 = vdwg.mxu0
      %v5676 = vpack.c.bf16 %v5674, %v5672
      %v5681 = vunpack.c.l.b16 %v5547
      %v5682 = vunpack.c.l.b16 %v5548
      %v5683 = vunpack.c.l.b16 %v5549
      %v5684 = vunpack.c.l.b16 %v5550
      %v5685 = vpack.c.b16 %v5682, %v5681
      %v5686 = vpack.c.b16 %v5684, %v5683
      %v5688 = vsel %vm1325, %v5685, 0
      %v5691 = vsel %vm1325, %v5686, 0
      %5693 = vmatpush.bf16.msra.mxu0 0
      %5694 = vmatpush.bf16.msra.mxu0 0
      %5695 = vmatpush.bf16.msra.mxu0 0
      %5696 = vmatpush.bf16.msra.mxu0 0
      %5697 = vmatpush.bf16.msra.mxu0 0
      %5698 = vmatpush.bf16.msra.mxu0 0
      %5699 = vmatpush.bf16.msra.mxu0 0
      %5700 = vmatpush.bf16.msra.mxu0 %v5676
      %5701 = vmatmul.bf16.gmra.mxu0 %v5688
      %v5702 = vpop.f32.mrf.mxu0
      %v5703 = vadd.f32 0.0, %v5702
      %v5704 = vpop.f32.mrf.mxu0
      %v5705 = vadd.f32 0.0, %v5704
      %5706 = vmatmul.bf16.gmra.mxu0 %v5691
      %v5707 = vpop.f32.mrf.mxu0
      %v5708 = vadd.f32 0.0, %v5707
      %v5709 = vpop.f32.mrf.mxu0
      %v5710 = vadd.f32 0.0, %v5709
      %5711 = vdwg.mxu0
      %v5716 = vunpack.c.l.b16 %v5414
      %v5717 = vunpack.c.l.b16 %v5415
      %v5718 = vunpack.c.l.b16 %v5416
      %v5719 = vunpack.c.l.b16 %v5417
      %v5720 = vpack.c.b16 %v5717, %v5716
      %v5721 = vpack.c.b16 %v5719, %v5718
      %v5723 = vsel %vm1325, %v5720, 0
      %v5726 = vsel %vm1325, %v5721, 0
      %5728 = vmatpush.bf16.msra.mxu0 0
      %5729 = vmatpush.bf16.msra.mxu0 0
      %5730 = vmatpush.bf16.msra.mxu0 0
      %5731 = vmatpush.bf16.msra.mxu0 0
      %5732 = vmatpush.bf16.msra.mxu0 0
      %5733 = vmatpush.bf16.msra.mxu0 0
      %5734 = vmatpush.bf16.msra.mxu0 0
      %5735 = vmatpush.bf16.msra.mxu0 %v5545
      %5736 = vmatmul.bf16.gmra.mxu0 %v5723
      %v5737 = vpop.f32.mrf.mxu0
      %v5738 = vadd.f32 %v5703, %v5737
      %v5739 = vpop.f32.mrf.mxu0
      %v5740 = vadd.f32 %v5705, %v5739
      %5741 = vmatmul.bf16.gmra.mxu0 %v5726
      %v5742 = vpop.f32.mrf.mxu0
      %v5743 = vadd.f32 %v5708, %v5742
      %v5744 = vpop.f32.mrf.mxu0
      %v5745 = vadd.f32 %v5710, %v5744
      %5746 = vdwg.mxu0
      %s5747 = scalar_lea.vmem %s16, 32
      %v5748 = vld [vmem:[%s5747] sm:$0xf]
      %v5749 = vld [vmem:[%s5747 + $0x4] sm:$0xf]
      %v5750 = vld [vmem:[%s5747 + $0x8] sm:$0xf]
      %v5751 = vld [vmem:[%s5747 + $0xc] sm:$0xf]
      %s5752 = scalar_lea.vmem %s17, 192
      %v5753 = vld [vmem:[%s5752] sm:$0xf]
      %v5754 = vld [vmem:[%s5752 + $0x4] sm:$0xf]
      %v5755 = vld [vmem:[%s5752 + $0x8] sm:$0xf]
      %v5756 = vld [vmem:[%s5752 + $0xc] sm:$0xf]
      %v5757 = vld [vmem:[%s5752 + $0x10] sm:$0xf]
      %v5758 = vld [vmem:[%s5752 + $0x14] sm:$0xf]
      %v5759 = vld [vmem:[%s5752 + $0x18] sm:$0xf]
      %v5760 = vld [vmem:[%s5752 + $0x1c] sm:$0xf]
      %v5761 = vld [vmem:[%s5752 + $0x20] sm:$0xf]
      %v5762 = vld [vmem:[%s5752 + $0x24] sm:$0xf]
      %v5763 = vld [vmem:[%s5752 + $0x28] sm:$0xf]
      %v5764 = vld [vmem:[%s5752 + $0x2c] sm:$0xf]
      %v5765 = vld [vmem:[%s5752 + $0x30] sm:$0xf]
      %v5766 = vld [vmem:[%s5752 + $0x34] sm:$0xf]
      %v5767 = vld [vmem:[%s5752 + $0x38] sm:$0xf]
      %v5768 = vld [vmem:[%s5752 + $0x3c] sm:$0xf]
      %v5769 = vld [vmem:[%s5752 + $0x40] sm:$0xf]
      %v5770 = vld [vmem:[%s5752 + $0x44] sm:$0xf]
      %v5771 = vld [vmem:[%s5752 + $0x48] sm:$0xf]
      %v5772 = vld [vmem:[%s5752 + $0x4c] sm:$0xf]
      %v5773 = vld [vmem:[%s5752 + $0x50] sm:$0xf]
      %v5774 = vld [vmem:[%s5752 + $0x54] sm:$0xf]
      %v5775 = vld [vmem:[%s5752 + $0x58] sm:$0xf]
      %v5776 = vld [vmem:[%s5752 + $0x5c] sm:$0xf]
      %v5801 = vunpack.c.l.b16 %v5753
      %v5802 = vunpack.c.l.b16 %v5754
      %v5803 = vunpack.c.l.b16 %v5755
      %v5804 = vunpack.c.l.b16 %v5756
      %v5805 = vunpack.c.l.b16 %v5757
      %v5806 = vunpack.c.l.b16 %v5758
      %v5807 = vunpack.c.l.b16 %v5759
      %v5808 = vunpack.c.l.b16 %v5760
      %v5809 = vunpack.c.l.b16 %v5761
      %v5810 = vunpack.c.l.b16 %v5762
      %v5811 = vunpack.c.l.b16 %v5763
      %v5812 = vunpack.c.l.b16 %v5764
      %v5813 = vunpack.c.l.b16 %v5765
      %v5814 = vunpack.c.l.b16 %v5766
      %v5815 = vunpack.c.l.b16 %v5767
      %v5816 = vunpack.c.l.b16 %v5768
      %v5817 = vunpack.c.l.b16 %v5769
      %v5818 = vunpack.c.l.b16 %v5770
      %v5819 = vunpack.c.l.b16 %v5771
      %v5820 = vunpack.c.l.b16 %v5772
      %v5821 = vunpack.c.l.b16 %v5773
      %v5822 = vunpack.c.l.b16 %v5774
      %v5823 = vunpack.c.l.b16 %v5775
      %v5824 = vunpack.c.l.b16 %v5776
      %v5825 = vpack.c.b16 %v5802, %v5801
      %v5826 = vpack.c.b16 %v5804, %v5803
      %v5827 = vpack.c.b16 %v5806, %v5805
      %v5828 = vpack.c.b16 %v5808, %v5807
      %v5829 = vpack.c.b16 %v5810, %v5809
      %v5830 = vpack.c.b16 %v5812, %v5811
      %v5831 = vpack.c.b16 %v5814, %v5813
      %v5832 = vpack.c.b16 %v5816, %v5815
      %v5833 = vpack.c.b16 %v5818, %v5817
      %v5834 = vpack.c.b16 %v5820, %v5819
      %v5835 = vpack.c.b16 %v5822, %v5821
      %v5836 = vpack.c.b16 %v5824, %v5823
      %5849 = vmatpush.bf16.msra.mxu0 %v5832
      %5850 = vmatpush.bf16.msra.mxu0 %v5831
      %5851 = vmatpush.bf16.msra.mxu0 %v5830
      %5852 = vmatpush.bf16.msra.mxu0 %v5829
      %5853 = vmatpush.bf16.msra.mxu0 %v5828
      %5854 = vmatpush.bf16.msra.mxu0 %v5827
      %5855 = vmatpush.bf16.msra.mxu0 %v5826
      %5856 = vmatpush.bf16.msra.mxu0 %v5825
      %5857 = vmatmul.bf16.gmra.mxu0 %v5412
      %v5858 = vpop.f32.mrf.mxu0
      %v5859 = vadd.f32 0.0, %v5858
      %v5860 = vpop.f32.mrf.mxu0
      %v5861 = vadd.f32 0.0, %v5860
      %5862 = vdwg.mxu0
      %5863 = vmatpush.bf16.msra.mxu0 0
      %5864 = vmatpush.bf16.msra.mxu0 0
      %5865 = vmatpush.bf16.msra.mxu0 0
      %5866 = vmatpush.bf16.msra.mxu0 0
      %5867 = vmatpush.bf16.msra.mxu0 %v5836
      %5868 = vmatpush.bf16.msra.mxu0 %v5835
      %5869 = vmatpush.bf16.msra.mxu0 %v5834
      %5870 = vmatpush.bf16.msra.mxu0 %v5833
      %5871 = vmatmul.bf16.gmra.mxu0 %v5515
      %v5872 = vpop.f32.mrf.mxu0
      %v5873 = vadd.f32 %v5859, %v5872
      %v5874 = vpop.f32.mrf.mxu0
      %v5875 = vadd.f32 %v5861, %v5874
      %5876 = vdwg.mxu0
      %v5877 = vpack.c.bf16 %v5875, %v5873
      %v5882 = vunpack.c.l.b16 %v5748
      %v5883 = vunpack.c.l.b16 %v5749
      %v5884 = vunpack.c.l.b16 %v5750
      %v5885 = vunpack.c.l.b16 %v5751
      %v5886 = vpack.c.b16 %v5883, %v5882
      %v5887 = vpack.c.b16 %v5885, %v5884
      %v5889 = vsel %vm1325, %v5886, 0
      %v5892 = vsel %vm1325, %v5887, 0
      %5894 = vmatpush.bf16.msra.mxu0 0
      %5895 = vmatpush.bf16.msra.mxu0 0
      %5896 = vmatpush.bf16.msra.mxu0 0
      %5897 = vmatpush.bf16.msra.mxu0 0
      %5898 = vmatpush.bf16.msra.mxu0 0
      %5899 = vmatpush.bf16.msra.mxu0 0
      %5900 = vmatpush.bf16.msra.mxu0 0
      %5901 = vmatpush.bf16.msra.mxu0 %v5877
      %5902 = vmatmul.bf16.gmra.mxu0 %v5889
      %v5903 = vpop.f32.mrf.mxu0
      %v5904 = vadd.f32 0.0, %v5903
      %v5905 = vpop.f32.mrf.mxu0
      %v5906 = vadd.f32 0.0, %v5905
      %5907 = vmatmul.bf16.gmra.mxu0 %v5892
      %v5908 = vpop.f32.mrf.mxu0
      %v5909 = vadd.f32 0.0, %v5908
      %v5910 = vpop.f32.mrf.mxu0
      %v5911 = vadd.f32 0.0, %v5910
      %5912 = vdwg.mxu0
      %v5913 = vadd.f32 %v5738, %v5904
      %v5914 = vadd.f32 %v5740, %v5906
      %v5915 = vadd.f32 %v5743, %v5909
      %v5916 = vadd.f32 %v5745, %v5911
      %s5917 = scalar_lea.vmem %s16, 48
      %v5918 = vld [vmem:[%s5917] sm:$0xf]
      %v5919 = vld [vmem:[%s5917 + $0x4] sm:$0xf]
      %v5920 = vld [vmem:[%s5917 + $0x8] sm:$0xf]
      %v5921 = vld [vmem:[%s5917 + $0xc] sm:$0xf]
      %s5922 = scalar_lea.vmem %s17, 288
      %v5923 = vld [vmem:[%s5922] sm:$0xf]
      %v5924 = vld [vmem:[%s5922 + $0x4] sm:$0xf]
      %v5925 = vld [vmem:[%s5922 + $0x8] sm:$0xf]
      %v5926 = vld [vmem:[%s5922 + $0xc] sm:$0xf]
      %v5927 = vld [vmem:[%s5922 + $0x10] sm:$0xf]
      %v5928 = vld [vmem:[%s5922 + $0x14] sm:$0xf]
      %v5929 = vld [vmem:[%s5922 + $0x18] sm:$0xf]
      %v5930 = vld [vmem:[%s5922 + $0x1c] sm:$0xf]
      %v5931 = vld [vmem:[%s5922 + $0x20] sm:$0xf]
      %v5932 = vld [vmem:[%s5922 + $0x24] sm:$0xf]
      %v5933 = vld [vmem:[%s5922 + $0x28] sm:$0xf]
      %v5934 = vld [vmem:[%s5922 + $0x2c] sm:$0xf]
      %v5935 = vld [vmem:[%s5922 + $0x30] sm:$0xf]
      %v5936 = vld [vmem:[%s5922 + $0x34] sm:$0xf]
      %v5937 = vld [vmem:[%s5922 + $0x38] sm:$0xf]
      %v5938 = vld [vmem:[%s5922 + $0x3c] sm:$0xf]
      %v5939 = vld [vmem:[%s5922 + $0x40] sm:$0xf]
      %v5940 = vld [vmem:[%s5922 + $0x44] sm:$0xf]
      %v5941 = vld [vmem:[%s5922 + $0x48] sm:$0xf]
      %v5942 = vld [vmem:[%s5922 + $0x4c] sm:$0xf]
      %v5943 = vld [vmem:[%s5922 + $0x50] sm:$0xf]
      %v5944 = vld [vmem:[%s5922 + $0x54] sm:$0xf]
      %v5945 = vld [vmem:[%s5922 + $0x58] sm:$0xf]
      %v5946 = vld [vmem:[%s5922 + $0x5c] sm:$0xf]
      %v5971 = vunpack.c.l.b16 %v5923
      %v5972 = vunpack.c.l.b16 %v5924
      %v5973 = vunpack.c.l.b16 %v5925
      %v5974 = vunpack.c.l.b16 %v5926
      %v5975 = vunpack.c.l.b16 %v5927
      %v5976 = vunpack.c.l.b16 %v5928
      %v5977 = vunpack.c.l.b16 %v5929
      %v5978 = vunpack.c.l.b16 %v5930
      %v5979 = vunpack.c.l.b16 %v5931
      %v5980 = vunpack.c.l.b16 %v5932
      %v5981 = vunpack.c.l.b16 %v5933
      %v5982 = vunpack.c.l.b16 %v5934
      %v5983 = vunpack.c.l.b16 %v5935
      %v5984 = vunpack.c.l.b16 %v5936
      %v5985 = vunpack.c.l.b16 %v5937
      %v5986 = vunpack.c.l.b16 %v5938
      %v5987 = vunpack.c.l.b16 %v5939
      %v5988 = vunpack.c.l.b16 %v5940
      %v5989 = vunpack.c.l.b16 %v5941
      %v5990 = vunpack.c.l.b16 %v5942
      %v5991 = vunpack.c.l.b16 %v5943
      %v5992 = vunpack.c.l.b16 %v5944
      %v5993 = vunpack.c.l.b16 %v5945
      %v5994 = vunpack.c.l.b16 %v5946
      %v5995 = vpack.c.b16 %v5972, %v5971
      %v5996 = vpack.c.b16 %v5974, %v5973
      %v5997 = vpack.c.b16 %v5976, %v5975
      %v5998 = vpack.c.b16 %v5978, %v5977
      %v5999 = vpack.c.b16 %v5980, %v5979
      %v6000 = vpack.c.b16 %v5982, %v5981
      %v6001 = vpack.c.b16 %v5984, %v5983
      %v6002 = vpack.c.b16 %v5986, %v5985
      %v6003 = vpack.c.b16 %v5988, %v5987
      %v6004 = vpack.c.b16 %v5990, %v5989
      %v6005 = vpack.c.b16 %v5992, %v5991
      %v6006 = vpack.c.b16 %v5994, %v5993
      %6019 = vmatpush.bf16.msra.mxu0 %v6002
      %6020 = vmatpush.bf16.msra.mxu0 %v6001
      %6021 = vmatpush.bf16.msra.mxu0 %v6000
      %6022 = vmatpush.bf16.msra.mxu0 %v5999
      %6023 = vmatpush.bf16.msra.mxu0 %v5998
      %6024 = vmatpush.bf16.msra.mxu0 %v5997
      %6025 = vmatpush.bf16.msra.mxu0 %v5996
      %6026 = vmatpush.bf16.msra.mxu0 %v5995
      %6027 = vmatmul.bf16.gmra.mxu0 %v5412
      %v6028 = vpop.f32.mrf.mxu0
      %v6029 = vadd.f32 0.0, %v6028
      %v6030 = vpop.f32.mrf.mxu0
      %v6031 = vadd.f32 0.0, %v6030
      %6032 = vdwg.mxu0
      %6033 = vmatpush.bf16.msra.mxu0 0
      %6034 = vmatpush.bf16.msra.mxu0 0
      %6035 = vmatpush.bf16.msra.mxu0 0
      %6036 = vmatpush.bf16.msra.mxu0 0
      %6037 = vmatpush.bf16.msra.mxu0 %v6006
      %6038 = vmatpush.bf16.msra.mxu0 %v6005
      %6039 = vmatpush.bf16.msra.mxu0 %v6004
      %6040 = vmatpush.bf16.msra.mxu0 %v6003
      %6041 = vmatmul.bf16.gmra.mxu0 %v5515
      %v6042 = vpop.f32.mrf.mxu0
      %v6043 = vadd.f32 %v6029, %v6042
      %v6044 = vpop.f32.mrf.mxu0
      %v6045 = vadd.f32 %v6031, %v6044
      %6046 = vdwg.mxu0
      %v6047 = vpack.c.bf16 %v6045, %v6043
      %v6052 = vunpack.c.l.b16 %v5918
      %v6053 = vunpack.c.l.b16 %v5919
      %v6054 = vunpack.c.l.b16 %v5920
      %v6055 = vunpack.c.l.b16 %v5921
      %v6056 = vpack.c.b16 %v6053, %v6052
      %v6057 = vpack.c.b16 %v6055, %v6054
      %v6059 = vsel %vm1325, %v6056, 0
      %v6062 = vsel %vm1325, %v6057, 0
      %6064 = vmatpush.bf16.msra.mxu0 0
      %6065 = vmatpush.bf16.msra.mxu0 0
      %6066 = vmatpush.bf16.msra.mxu0 0
      %6067 = vmatpush.bf16.msra.mxu0 0
      %6068 = vmatpush.bf16.msra.mxu0 0
      %6069 = vmatpush.bf16.msra.mxu0 0
      %6070 = vmatpush.bf16.msra.mxu0 0
      %6071 = vmatpush.bf16.msra.mxu0 %v6047
      %6072 = vmatmul.bf16.gmra.mxu0 %v6059
      %v6073 = vpop.f32.mrf.mxu0
      %v6074 = vadd.f32 0.0, %v6073
      %v6075 = vpop.f32.mrf.mxu0
      %v6076 = vadd.f32 0.0, %v6075
      %6077 = vmatmul.bf16.gmra.mxu0 %v6062
      %v6078 = vpop.f32.mrf.mxu0
      %v6079 = vadd.f32 0.0, %v6078
      %v6080 = vpop.f32.mrf.mxu0
      %v6081 = vadd.f32 0.0, %v6080
      %6082 = vdwg.mxu0
      %v6083 = vadd.f32 %v5913, %v6074
      %v6084 = vadd.f32 %v5914, %v6076
      %v6085 = vadd.f32 %v5915, %v6079
      %v6086 = vadd.f32 %v5916, %v6081
      %v6087 = vld [vmem:[%s18] sm:$0x1]
      %v6089 = vperm.slane %v6087, 0
      %v6091 = vadd.f32 %v6083, %v6089
      %v6092 = vadd.f32 %v6084, %v6089
      %v6093 = vadd.f32 %v6085, %v6089
      %v6094 = vadd.f32 %v6086, %v6089
      %v6095 = vxor.u32 %v6091, 2147483648
      %v6096 = vxor.u32 %v6092, 2147483648
      %v6097 = vxor.u32 %v6093, 2147483648
      %v6098 = vxor.u32 %v6094, 2147483648
      %v6099 = vmul.f32 %v6095, 1.442695
      %v6100 = vpow.pop %v6099
      %v6101 = vmul.f32 %v6096, 1.442695
      %v6102 = vpow.pop %v6101
      %v6103 = vmul.f32 %v6097, 1.442695
      %v6104 = vpow.pop %v6103
      %v6105 = vmul.f32 %v6098, 1.442695
      %v6106 = vpow.pop %v6105
      %v6107 = vadd.f32 %v6100, 1.0
      %v6108 = vadd.f32 %v6102, 1.0
      %v6109 = vadd.f32 %v6104, 1.0
      %v6110 = vadd.f32 %v6106, 1.0
      %v6111 = vrcp.pop %v6107
      %v6112 = vmul.f32 %v6107, %v6111
      %v6113 = vsub.f32 1.0, %v6112
      %v6114 = vmul.f32 %v6111, %v6113
      %v6115 = vadd.f32 %v6111, %v6114
      %vm6116 = vweird.f32 %v6107
      %vm6117 = vweird.f32 %v6111
      %vm6118 = vmor %vm6116, %vm6117
      %v6119 = vsel %vm6118, %v6111, %v6115
      %v6120 = vand.u32 2147483647, %v6107
      %vm6121 = vcmp.eq.f32.partialorder %v6120, 8.507059e+37
      %v6122 = vand.u32 %v6107, 2147483648
      %v6123 = vor.u32 1.1754944e-38, %v6122
      %v6124 = vsel %vm6121, %v6123, %v6119
      %v6125 = vmul.f32 1.0, %v6124
      %v6126 = vrcp.pop %v6108
      %v6127 = vmul.f32 %v6108, %v6126
      %v6128 = vsub.f32 1.0, %v6127
      %v6129 = vmul.f32 %v6126, %v6128
      %v6130 = vadd.f32 %v6126, %v6129
      %vm6131 = vweird.f32 %v6108
      %vm6132 = vweird.f32 %v6126
      %vm6133 = vmor %vm6131, %vm6132
      %v6134 = vsel %vm6133, %v6126, %v6130
      %v6135 = vand.u32 2147483647, %v6108
      %vm6136 = vcmp.eq.f32.partialorder %v6135, 8.507059e+37
      %v6137 = vand.u32 %v6108, 2147483648
      %v6138 = vor.u32 1.1754944e-38, %v6137
      %v6139 = vsel %vm6136, %v6138, %v6134
      %v6140 = vmul.f32 1.0, %v6139
      %v6141 = vrcp.pop %v6109
      %v6142 = vmul.f32 %v6109, %v6141
      %v6143 = vsub.f32 1.0, %v6142
      %v6144 = vmul.f32 %v6141, %v6143
      %v6145 = vadd.f32 %v6141, %v6144
      %vm6146 = vweird.f32 %v6109
      %vm6147 = vweird.f32 %v6141
      %vm6148 = vmor %vm6146, %vm6147
      %v6149 = vsel %vm6148, %v6141, %v6145
      %v6150 = vand.u32 2147483647, %v6109
      %vm6151 = vcmp.eq.f32.partialorder %v6150, 8.507059e+37
      %v6152 = vand.u32 %v6109, 2147483648
      %v6153 = vor.u32 1.1754944e-38, %v6152
      %v6154 = vsel %vm6151, %v6153, %v6149
      %v6155 = vmul.f32 1.0, %v6154
      %v6156 = vrcp.pop %v6110
      %v6157 = vmul.f32 %v6110, %v6156
      %v6158 = vsub.f32 1.0, %v6157
      %v6159 = vmul.f32 %v6156, %v6158
      %v6160 = vadd.f32 %v6156, %v6159
      %vm6161 = vweird.f32 %v6110
      %vm6162 = vweird.f32 %v6156
      %vm6163 = vmor %vm6161, %vm6162
      %v6164 = vsel %vm6163, %v6156, %v6160
      %v6165 = vand.u32 2147483647, %v6110
      %vm6166 = vcmp.eq.f32.partialorder %v6165, 8.507059e+37
      %v6167 = vand.u32 %v6110, 2147483648
      %v6168 = vor.u32 1.1754944e-38, %v6167
      %v6169 = vsel %vm6166, %v6168, %v6164
      %v6170 = vmul.f32 1.0, %v6169
      %6171 = vst.msk [vmem:[%s642] sm:$0xff] %vm797, %v6125
      %6172 = vst.msk [vmem:[%s642 + $0x8] sm:$0xff] %vm797, %v6140
      %6173 = vst.msk [vmem:[%s642 + $0x10] sm:$0xff] %vm797, %v6155
      %6174 = vst.msk [vmem:[%s642 + $0x18] sm:$0xff] %vm797, %v6170
      %p6175 = scmp.lt.s32.totalorder %s32, 1
      %s6176 = scalar_select %p6175, %s32, 1
      %s6177 = smul.addr %s6176, 2
      %s6178 = smul.addr %s6177, 4
      %s6179 = scalar_lea.vmem %s19, %s6178
      %p6180 = scmp.lt.s32.totalorder %s32, 1
      %s6181 = scalar_select %p6180, %s32, 1
      %s6182 = smul.addr %s6181, 4
      %s6183 = smul.addr %s6182, 8
      %s6184 = scalar_lea.vmem %s20, %s6183
      // Predicated region
      $region97: #{autoencoder_forward.1} parent=95 // pred_check
        %p6185 = pneg %p454
      $region98: #{autoencoder_forward.1} parent=95 // pred_check_branch
        %6187 = sbr.rel (%p6185) target = $region100
      $region99: #{autoencoder_forward.1} parent=95 // pred_region
        _
      $region100: #{autoencoder_forward.1} parent=95 // pred_fallthru
        _
      // Predicated region
      $region101: #{autoencoder_forward.1} parent=95 // pred_check
        %p6188 = pneg %p480
      $region102: #{autoencoder_forward.1} parent=95 // pred_check_branch
        %6190 = sbr.rel (%p6188) target = $region104
      $region103: #{autoencoder_forward.1} parent=95 // pred_region
        _
      $region104: #{autoencoder_forward.1} parent=95 // pred_fallthru
        _
    $region96: #{autoencoder_forward.1} parent=5 // pred_fallthru
      _
    %p6191 = scmp.le.s32.totalorder 2, %s27
    // Predicated region
    $region105: #{autoencoder_forward.1} parent=5 // pred_check
      %p6192 = pneg %p6191
    $region106: #{autoencoder_forward.1} parent=5 // pred_check_branch
      %6194 = sbr.rel (%p6192) target = $region108
    $region107: #{autoencoder_forward.1} parent=5 // pred_region
      %s6195 = ssub.s32 %s27, 2
      // Predicated region
      $region109: #{autoencoder_forward.1} parent=107 // pred_check
        %p6196 = pneg %p460
      $region110: #{autoencoder_forward.1} parent=107 // pred_check_branch
        %6198 = sbr.rel (%p6196) target = $region112
      $region111: #{autoencoder_forward.1} parent=107 // pred_region
        %p6199 = scmp.lt.s32.totalorder %s33, 1
        %s6200 = scalar_select %p6199, %s33, 1
        %s6201 = smul.addr %s6200, 2
        %s6202 = smul.addr %s6201, 4
        %s6203 = scalar_lea.vmem %s19, %s6202
      $region112: #{autoencoder_forward.1} parent=107 // pred_fallthru
        _
      // Predicated region
      $region113: #{autoencoder_forward.1} parent=107 // pred_check
        %p6204 = pneg %p486
      $region114: #{autoencoder_forward.1} parent=107 // pred_check_branch
        %6206 = sbr.rel (%p6204) target = $region116
      $region115: #{autoencoder_forward.1} parent=107 // pred_region
        %p6207 = scmp.lt.s32.totalorder %s33, 1
        %s6208 = scalar_select %p6207, %s33, 1
        %s6209 = smul.addr %s6208, 4
        %s6210 = smul.addr %s6209, 8
        %s6211 = scalar_lea.vmem %s20, %s6210
      $region116: #{autoencoder_forward.1} parent=107 // pred_fallthru
        _
    $region108: #{autoencoder_forward.1} parent=5 // pred_fallthru
      _
  $region6: #{autoencoder_forward.1} parent=0 // loop_footer
    %s31 = sadd.s32 1, %s27
  $region7: #{autoencoder_forward.1} parent=0 // loop_footer_branch
    %26 = sbr.rel target = $region3
  $region8: #{autoencoder_forward.1} parent=0 // loop_exit
    _

</llo_original>
